<compile_context>
chip_gen: v6e
topology: v6e:2x2x1
jax: 0.10.0
libtpu: 0.0.40
codegen_flags: <defaults>
</compile_context>

<pallas_src>
import functools
import math

import jax
import jax.numpy as jnp
from jax.experimental import pallas as pl
from jax.experimental.pallas import tpu as pltpu

# Small demo shapes standing in for the production config
# (embed_dim=768, heads=12, mlp_ratio=4, T~200). Tune block_b / buffering / VMEM
# limits only at production shapes: at these tiny dims every op is lane-masked.
EMBED_DIM = 32      # stands in for cfg.embed_dim = 768
NUM_HEADS = 4       # stands in for 12 heads (must divide EMBED_DIM)
MLP_RATIO = 4
SEQ_LEN = 8
BATCH = 2
LN_EPS = 1e-6

assert EMBED_DIM % NUM_HEADS == 0


def _layernorm(x, w, b, eps=LN_EPS):
    mu = jnp.mean(x, axis=-1, keepdims=True)
    xc = x - mu
    var = jnp.mean(xc * xc, axis=-1, keepdims=True)
    return xc * jax.lax.rsqrt(var + eps) * w + b


def _sx3hre_kernel(x_ref, mask_ref, tte_ref,
                   n1w_ref, n1b_ref, qkvw_ref, qkvb_ref, projw_ref, projb_ref, g1_ref,
                   n2w_ref, n2b_ref, fc1w_ref, fc1b_ref, fc2w_ref, fc2b_ref, g2_ref,
                   fnw_ref, fnb_ref, hw_ref, hb_ref,
                   enc_ref, xout_ref, xiout_ref,
                   *, num_heads):
    Bb, T, D = x_ref.shape            # block_b batch elements per grid step
    H = num_heads
    hd = D // H
    N = Bb * T
    scale = 1.0 / math.sqrt(hd)
    wdt = qkvw_ref.dtype              # bf16 matmul weights; accumulation stays f32

    # token-type embedding (pre-scaled by its LayerScale gamma in the wrapper)
    x3 = x_ref[...].astype(jnp.float32) + tte_ref[...].astype(jnp.float32)   # (Bb,T,D)
    x = x3.reshape(N, D)                                                     # rows = Bb*T
    key_bias = mask_ref[...].astype(jnp.float32) * (-1e9)                    # (Bb,1,T)

    # ---------- shared Block: attention branch ----------
    h = _layernorm(x, n1w_ref[...], n1b_ref[...])
    qkv = jnp.dot(h.astype(wdt), qkvw_ref[...],
                  preferred_element_type=jnp.float32) + qkvb_ref[...]        # (N,3D) f32

    # One relayout per tensor into batched-head form; all MXU operands in bf16.
    def to_heads(t):   # (N, D) -> (Bb*H, T, hd)
        return t.reshape(Bb, T, H, hd).transpose(0, 2, 1, 3).reshape(Bb * H, T, hd)

    q = to_heads((qkv[:, 0 * D:1 * D] * scale).astype(wdt))   # fold 1/sqrt(hd) into q
    k = to_heads(qkv[:, 1 * D:2 * D].astype(wdt))
    v = to_heads(qkv[:, 2 * D:3 * D].astype(wdt))

    s = jnp.einsum('bqd,bkd->bqk', q, k,
                   preferred_element_type=jnp.float32)                       # (Bb*H,T,T)
    bias = jnp.broadcast_to(key_bias[:, None, :, :], (Bb, H, 1, T)).reshape(Bb * H, 1, T)
    s = s + bias
    s = s - jnp.max(s, axis=-1, keepdims=True)
    p = jnp.exp(s)
    p = p * pl.reciprocal(jnp.sum(p, axis=-1, keepdims=True), approx=True)

    o = jnp.einsum('bqk,bkd->bqd', p.astype(wdt), v,
                   preferred_element_type=jnp.float32)                       # (Bb*H,T,hd)
    # back to a single bf16 (N, D) slab -> one K=D output-projection matmul
    o = o.astype(wdt).reshape(Bb, H, T, hd).transpose(0, 2, 1, 3).reshape(N, D)
    attn = jnp.dot(o, projw_ref[...],
                   preferred_element_type=jnp.float32) + projb_ref[...]      # (N, D)

    x = x + g1_ref[...] * attn            # gamma_1 LayerScale (init 0.2)
    x_interm = x                          # intermediate output of Block

    # ---------- shared Block: MLP branch ----------
    h2 = _layernorm(x, n2w_ref[...], n2b_ref[...])
    h2 = jnp.dot(h2.astype(wdt), fc1w_ref[...],
                 preferred_element_type=jnp.float32) + fc1b_ref[...]
    # tanh-approx GELU: EUP-friendly (the v5e recommendation).
    # TODO(synk): switch to approximate=False (exact-erf nn.GELU) where Mosaic's erf
    # lowering is available / on v6e+ if bit-fidelity to the PyTorch module is required.
    h2 = jax.nn.gelu(h2, approximate=True)
    h2 = jnp.dot(h2.astype(wdt), fc2w_ref[...],
                 preferred_element_type=jnp.float32) + fc2b_ref[...]
    x = x + g2_ref[...] * h2              # gamma_2 LayerScale

    # ---------- encode_shared tail ----------
    cls = x.reshape(Bb, T, D)[:, 0, :]              # (Bb, D), no per-row concat
    cls_i = x_interm.reshape(Bb, T, D)[:, 0, :]

    enc = _layernorm(cls, fnw_ref[...], fnb_ref[...])
    enc = jnp.dot(enc.astype(wdt), hw_ref[...],
                  preferred_element_type=jnp.float32) + hb_ref[...]          # (Bb, D)
    enc_ref[...] = enc.reshape(Bb, 1, D)

    inv_n = jax.lax.rsqrt(jnp.sum(cls * cls, axis=-1, keepdims=True) + 1e-12)
    xout_ref[...] = (cls * inv_n).reshape(Bb, 1, D)
    inv_ni = jax.lax.rsqrt(jnp.sum(cls_i * cls_i, axis=-1, keepdims=True) + 1e-12)
    xiout_ref[...] = (cls_i * inv_ni).reshape(Bb, 1, D)


def encode_shared_pallas(x_all, mask_all, tte_all, params, *, block_b=None,
                         num_heads=NUM_HEADS,
                         vmem_limit_bytes=64 * 1024 * 1024,
                         single_buffer_weights=False):
    """x_all: (Btot, T, D) token features (bf16); mask_all: (Btot, 1, T) with 1 == padded key;
    tte_all: (Btot, 1, D) token-type rows, already multiplied by the tte LayerScale gamma.

    Production tuning (D=768, Hm=3072, T~200):
      * v5e/v6e (128 MiB VMEM): raise vmem_limit_bytes to ~96 MiB and grow block_b to 4-8
        so M = block_b*T reaches 512-1024 rows per grid step.
      * v7x (64 MiB VMEM/TC): set single_buffer_weights=True (pl.Buffered(1) on the
        constant-index weight specs) and keep vmem_limit_bytes <= 64 MiB.
    """
    Btot, T, D = x_all.shape
    if block_b is None:
        # even number of grid steps keeps both v7x TensorCores busy
        block_b = 2 if Btot % 2 == 0 else 1
    assert Btot % block_b == 0
    grid = (Btot // block_b,)

    param_list = [
        params['n1_w'], params['n1_b'],
        params['qkv_w'], params['qkv_b'],
        params['proj_w'], params['proj_b'], params['gamma1'],
        params['n2_w'], params['n2_b'],
        params['fc1_w'], params['fc1_b'],
        params['fc2_w'], params['fc2_b'], params['gamma2'],
        params['fcn_w'], params['fcn_b'],
        params['head_w'], params['head_b'],
    ]

    # Constant index_map => weights stay resident in VMEM across the grid.
    def weight_spec(p):
        if single_buffer_weights:
            return pl.BlockSpec(p.shape, lambda i: (0, 0), pipeline_mode=pl.Buffered(1))
        return pl.BlockSpec(p.shape, lambda i: (0, 0))

    in_specs = [
        pl.BlockSpec((block_b, T, D), lambda i: (i, 0, 0)),   # x (bf16)
        pl.BlockSpec((block_b, 1, T), lambda i: (i, 0, 0)),   # key padding mask
        pl.BlockSpec((block_b, 1, D), lambda i: (i, 0, 0)),   # token-type rows
    ] + [weight_spec(p) for p in param_list]

    out_struct = jax.ShapeDtypeStruct((Btot, 1, D), jnp.float32)
    out_spec = pl.BlockSpec((block_b, 1, D), lambda i: (i, 0, 0))

    kernel = functools.partial(_sx3hre_kernel, num_heads=num_heads)

    enc, xn, xin = pl.pallas_call(
        kernel,
        out_shape=(out_struct, out_struct, out_struct),
        grid_spec=pltpu.PrefetchScalarGridSpec(
            num_scalar_prefetch=0,
            grid=grid,
            in_specs=in_specs,
            out_specs=[out_spec, out_spec, out_spec],
        ),
        compiler_params=pltpu.CompilerParams(
            dimension_semantics=("parallel",),
            vmem_limit_bytes=vmem_limit_bytes,
        ),
    )(x_all, mask_all, tte_all, *param_list)
    return {'encoder_out': enc[:, 0, :], 'x': xn[:, 0, :], 'x_interm': xin[:, 0, :]}


def init_params(key, D=EMBED_DIM, mlp_ratio=MLP_RATIO):
    Hm = int(D * mlp_ratio)
    ks = jax.random.split(key, 8)

    def w(k, shape, dtype=jnp.bfloat16):
        # init_bert_params-style; large matmul weights stored in bf16 (MXU fast path,
        # half the HBM/VMEM bytes); f32 accumulation happens in-kernel.
        return (jax.random.normal(k, shape, jnp.float32) * 0.02).astype(dtype)

    return dict(
        tte_emb=w(ks[0], (2, D), jnp.float32),                    # nn.Embedding(2, D)
        tte_gamma=jnp.full((1, D), 1e-5, jnp.float32),            # LayerScale init 1e-5
        n1_w=jnp.ones((1, D), jnp.float32), n1_b=jnp.zeros((1, D), jnp.float32),
        qkv_w=w(ks[1], (D, 3 * D)), qkv_b=jnp.zeros((1, 3 * D), jnp.float32),
        proj_w=w(ks[2], (D, D)), proj_b=jnp.zeros((1, D), jnp.float32),
        gamma1=jnp.full((1, D), 0.2, jnp.float32),                # Block init_values=0.2
        n2_w=jnp.ones((1, D), jnp.float32), n2_b=jnp.zeros((1, D), jnp.float32),
        fc1_w=w(ks[3], (D, Hm)), fc1_b=jnp.zeros((1, Hm), jnp.float32),
        fc2_w=w(ks[4], (Hm, D)), fc2_b=jnp.zeros((1, D), jnp.float32),
        gamma2=jnp.full((1, D), 0.2, jnp.float32),
        fcn_w=jnp.ones((1, D), jnp.float32), fcn_b=jnp.zeros((1, D), jnp.float32),
        head_w=w(ks[5], (D, D)), head_b=jnp.zeros((1, D), jnp.float32),
    )


@jax.jit
def sx3hre_forward(image_feats, text_feats, padding_mask, params):
    """Modality.VL forward: both modalities go through ONE pallas_call (weights DMA'd once)."""
    # TODO(synk): pretrained BEiTv2 / BERT / data2vec backbones have no clean Pallas
    # equivalent; the kernel consumes pre-extracted [B, T, D] token features.
    B, T, D = image_feats.shape

    # concat image (rows 0..B-1) and text (rows B..2B-1) along batch; activations in bf16
    x_all = jnp.concatenate([image_feats, text_feats], axis=0).astype(jnp.bfloat16)
    mask_all = jnp.concatenate(
        [jnp.zeros((B, T), jnp.float32), padding_mask.astype(jnp.float32)], axis=0
    ).reshape(2 * B, 1, T)

    # token-type rows, pre-scaled by the LayerScale gamma (tiny (2, D) op)
    tte_scaled = params['tte_gamma'] * params['tte_emb']            # (2, D)
    img_tte = jnp.broadcast_to(tte_scaled[1], (B, 1, D))            # token type id 1
    txt_tte = jnp.broadcast_to(tte_scaled[0], (B, 1, D))            # token type id 0
    tte_all = jnp.concatenate([img_tte, txt_tte], axis=0)           # (2B, 1, D)

    shared = encode_shared_pallas(x_all, mask_all, tte_all, params)

    out = {}
    for k, v in shared.items():
        out[k + '_image'] = v[:B]
        out[k + '_text'] = v[B:]
    return out


if __name__ == "__main__":
    key = jax.random.PRNGKey(0)
    k_img, k_txt, k_par = jax.random.split(key, 3)

    image_feats = jax.random.normal(k_img, (BATCH, SEQ_LEN, EMBED_DIM), jnp.float32)
    text_feats = jax.random.normal(k_txt, (BATCH, SEQ_LEN, EMBED_DIM), jnp.float32)
    padding_mask = jnp.zeros((BATCH, SEQ_LEN), jnp.int32).at[1, SEQ_LEN - 2:].set(1)

    params = init_params(k_par)

    out = sx3hre_forward(image_feats, text_feats, padding_mask, params)
    out = jax.tree_util.tree_map(jax.block_until_ready, out)

    # light sanity checks: shapes, finiteness, unit-norm contrastive features
    for name in ('encoder_out_image', 'x_image', 'x_interm_image',
                 'encoder_out_text', 'x_text', 'x_interm_text'):
        v = out[name]
        assert v.shape == (BATCH, EMBED_DIM), (name, v.shape)
        assert bool(jnp.all(jnp.isfinite(v))), name
    for name in ('x_image', 'x_interm_image', 'x_text', 'x_interm_text'):
        norms = jnp.linalg.norm(out[name], axis=-1)
        assert bool(jnp.allclose(norms, 1.0, atol=1e-3)), (name, norms)

    print("KERNEL_OK")
</pallas_src>

<mosaic_0001>
module attributes {stable_mosaic.version = 11 : i64} {
  func.func @_sx3hre_kernel(%arg0: i32, %arg1: memref<2x8x32xbf16, #tpu.memory_space<vmem>>, %arg2: memref<2x1x8xf32, #tpu.memory_space<vmem>>, %arg3: memref<2x1x32xf32, #tpu.memory_space<vmem>>, %arg4: memref<1x32xf32, #tpu.memory_space<vmem>>, %arg5: memref<1x32xf32, #tpu.memory_space<vmem>>, %arg6: memref<32x96xbf16, #tpu.memory_space<vmem>>, %arg7: memref<1x96xf32, #tpu.memory_space<vmem>>, %arg8: memref<32x32xbf16, #tpu.memory_space<vmem>>, %arg9: memref<1x32xf32, #tpu.memory_space<vmem>>, %arg10: memref<1x32xf32, #tpu.memory_space<vmem>>, %arg11: memref<1x32xf32, #tpu.memory_space<vmem>>, %arg12: memref<1x32xf32, #tpu.memory_space<vmem>>, %arg13: memref<32x128xbf16, #tpu.memory_space<vmem>>, %arg14: memref<1x128xf32, #tpu.memory_space<vmem>>, %arg15: memref<128x32xbf16, #tpu.memory_space<vmem>>, %arg16: memref<1x32xf32, #tpu.memory_space<vmem>>, %arg17: memref<1x32xf32, #tpu.memory_space<vmem>>, %arg18: memref<1x32xf32, #tpu.memory_space<vmem>>, %arg19: memref<1x32xf32, #tpu.memory_space<vmem>>, %arg20: memref<32x32xbf16, #tpu.memory_space<vmem>>, %arg21: memref<1x32xf32, #tpu.memory_space<vmem>>, %arg22: memref<2x1x32xf32, #tpu.memory_space<vmem>>, %arg23: memref<2x1x32xf32, #tpu.memory_space<vmem>>, %arg24: memref<2x1x32xf32, #tpu.memory_space<vmem>>) attributes {dimension_semantics = [#tpu.dimension_semantics<parallel>], iteration_bounds = array<i64: 2>, scalar_prefetch = 0 : i64, scratch_operands = 0 : i64, tpu.core_type = #tpu.core_type<tc>, window_params = [{transform_indices = @transform_0, window_bounds = array<i64: 2, 8, 32>}, {transform_indices = @transform_1, window_bounds = array<i64: 2, 1, 8>}, {transform_indices = @transform_2, window_bounds = array<i64: 2, 1, 32>}, {pipeline_mode = #tpu.pipeline_mode<synchronous>, transform_indices = @transform_3, window_bounds = array<i64: 1, 32>}, {pipeline_mode = #tpu.pipeline_mode<synchronous>, transform_indices = @transform_4, window_bounds = array<i64: 1, 32>}, {pipeline_mode = #tpu.pipeline_mode<synchronous>, transform_indices = @transform_5, window_bounds = array<i64: 32, 96>}, {pipeline_mode = #tpu.pipeline_mode<synchronous>, transform_indices = @transform_6, window_bounds = array<i64: 1, 96>}, {pipeline_mode = #tpu.pipeline_mode<synchronous>, transform_indices = @transform_7, window_bounds = array<i64: 32, 32>}, {pipeline_mode = #tpu.pipeline_mode<synchronous>, transform_indices = @transform_8, window_bounds = array<i64: 1, 32>}, {pipeline_mode = #tpu.pipeline_mode<synchronous>, transform_indices = @transform_9, window_bounds = array<i64: 1, 32>}, {pipeline_mode = #tpu.pipeline_mode<synchronous>, transform_indices = @transform_10, window_bounds = array<i64: 1, 32>}, {pipeline_mode = #tpu.pipeline_mode<synchronous>, transform_indices = @transform_11, window_bounds = array<i64: 1, 32>}, {pipeline_mode = #tpu.pipeline_mode<synchronous>, transform_indices = @transform_12, window_bounds = array<i64: 32, 128>}, {pipeline_mode = #tpu.pipeline_mode<synchronous>, transform_indices = @transform_13, window_bounds = array<i64: 1, 128>}, {pipeline_mode = #tpu.pipeline_mode<synchronous>, transform_indices = @transform_14, window_bounds = array<i64: 128, 32>}, {pipeline_mode = #tpu.pipeline_mode<synchronous>, transform_indices = @transform_15, window_bounds = array<i64: 1, 32>}, {pipeline_mode = #tpu.pipeline_mode<synchronous>, transform_indices = @transform_16, window_bounds = array<i64: 1, 32>}, {pipeline_mode = #tpu.pipeline_mode<synchronous>, transform_indices = @transform_17, window_bounds = array<i64: 1, 32>}, {pipeline_mode = #tpu.pipeline_mode<synchronous>, transform_indices = @transform_18, window_bounds = array<i64: 1, 32>}, {pipeline_mode = #tpu.pipeline_mode<synchronous>, transform_indices = @transform_19, window_bounds = array<i64: 32, 32>}, {pipeline_mode = #tpu.pipeline_mode<synchronous>, transform_indices = @transform_20, window_bounds = array<i64: 1, 32>}, {transform_indices = @transform_21, window_bounds = array<i64: 2, 1, 32>}, {transform_indices = @transform_22, window_bounds = array<i64: 2, 1, 32>}, {transform_indices = @transform_23, window_bounds = array<i64: 2, 1, 32>}]} {
    %c0 = arith.constant 0 : index
    %c0_0 = arith.constant 0 : index
    %c0_1 = arith.constant 0 : index
    %0 = vector.load %arg1[%c0, %c0_0, %c0_1] : memref<2x8x32xbf16, #tpu.memory_space<vmem>>, vector<2x8x32xbf16>
    %1 = arith.extf %0 : vector<2x8x32xbf16> to vector<2x8x32xf32>
    %c0_2 = arith.constant 0 : index
    %c0_3 = arith.constant 0 : index
    %c0_4 = arith.constant 0 : index
    %2 = vector.load %arg3[%c0_2, %c0_3, %c0_4] : memref<2x1x32xf32, #tpu.memory_space<vmem>>, vector<2x1x32xf32>
    %3 = vector.broadcast %2 : vector<2x1x32xf32> to vector<2x8x32xf32>
    %4 = arith.addf %1, %3 : vector<2x8x32xf32>
    %5 = vector.shape_cast %4 : vector<2x8x32xf32> to vector<16x32xf32>
    %c0_5 = arith.constant 0 : index
    %c0_6 = arith.constant 0 : index
    %c0_7 = arith.constant 0 : index
    %6 = vector.load %arg2[%c0_5, %c0_6, %c0_7] : memref<2x1x8xf32, #tpu.memory_space<vmem>>, vector<2x1x8xf32>
    %cst = arith.constant -1.000000e+09 : f32
    %7 = vector.broadcast %cst : f32 to vector<2x1x8xf32>
    %8 = arith.mulf %6, %7 : vector<2x1x8xf32>
    %c0_8 = arith.constant 0 : index
    %c0_9 = arith.constant 0 : index
    %9 = vector.load %arg4[%c0_8, %c0_9] : memref<1x32xf32, #tpu.memory_space<vmem>>, vector<1x32xf32>
    %c0_10 = arith.constant 0 : index
    %c0_11 = arith.constant 0 : index
    %10 = vector.load %arg5[%c0_10, %c0_11] : memref<1x32xf32, #tpu.memory_space<vmem>>, vector<1x32xf32>
    %cst_12 = arith.constant dense<0.000000e+00> : vector<16xf32>
    %11 = vector.multi_reduction <add>, %5, %cst_12 [1] : vector<16x32xf32> to vector<16xf32>
    %12 = vector.shape_cast %11 : vector<16xf32> to vector<16x1xf32>
    %cst_13 = arith.constant 3.200000e+01 : f32
    %13 = vector.broadcast %cst_13 : f32 to vector<16x1xf32>
    %14 = arith.divf %12, %13 : vector<16x1xf32>
    %15 = vector.broadcast %14 : vector<16x1xf32> to vector<16x32xf32>
    %16 = arith.subf %5, %15 : vector<16x32xf32>
    %17 = arith.mulf %16, %16 : vector<16x32xf32>
    %cst_14 = arith.constant dense<0.000000e+00> : vector<16xf32>
    %18 = vector.multi_reduction <add>, %17, %cst_14 [1] : vector<16x32xf32> to vector<16xf32>
    %19 = vector.shape_cast %18 : vector<16xf32> to vector<16x1xf32>
    %cst_15 = arith.constant 3.200000e+01 : f32
    %20 = vector.broadcast %cst_15 : f32 to vector<16x1xf32>
    %21 = arith.divf %19, %20 : vector<16x1xf32>
    %cst_16 = arith.constant 9.99999997E-7 : f32
    %22 = vector.broadcast %cst_16 : f32 to vector<16x1xf32>
    %23 = arith.addf %21, %22 : vector<16x1xf32>
    %24 = math.rsqrt %23 : vector<16x1xf32>
    %25 = vector.broadcast %24 : vector<16x1xf32> to vector<16x32xf32>
    %26 = arith.mulf %16, %25 : vector<16x32xf32>
    %27 = vector.broadcast %9 : vector<1x32xf32> to vector<16x32xf32>
    %28 = arith.mulf %26, %27 : vector<16x32xf32>
    %29 = vector.broadcast %10 : vector<1x32xf32> to vector<16x32xf32>
    %30 = arith.addf %28, %29 : vector<16x32xf32>
    %31 = arith.truncf %30 : vector<16x32xf32> to vector<16x32xbf16>
    %c0_17 = arith.constant 0 : index
    %c0_18 = arith.constant 0 : index
    %32 = vector.load %arg6[%c0_17, %c0_18] : memref<32x96xbf16, #tpu.memory_space<vmem>>, vector<32x96xbf16>
    %cst_19 = arith.constant dense<0.000000e+00> : vector<16x96xf32>
    %33 = tpu.matmul %31, %32, %cst_19 {dimension_numbers = #tpu.dot_dimension_numbers<[1], [0], [0], [1], [0, 0, 1, 1], [], []>} : vector<16x32xbf16>, vector<32x96xbf16>, vector<16x96xf32> -> vector<16x96xf32>
    %c0_20 = arith.constant 0 : index
    %c0_21 = arith.constant 0 : index
    %34 = vector.load %arg7[%c0_20, %c0_21] : memref<1x96xf32, #tpu.memory_space<vmem>>, vector<1x96xf32>
    %35 = vector.broadcast %34 : vector<1x96xf32> to vector<16x96xf32>
    %36 = arith.addf %33, %35 : vector<16x96xf32>
    %37 = vector.extract_strided_slice %36 {offsets = [0, 0], sizes = [16, 32], strides = [1, 1]} : vector<16x96xf32> to vector<16x32xf32>
    %cst_22 = arith.constant 0.353553385 : f32
    %38 = vector.broadcast %cst_22 : f32 to vector<16x32xf32>
    %39 = arith.mulf %37, %38 : vector<16x32xf32>
    %40 = arith.truncf %39 : vector<16x32xf32> to vector<16x32xbf16>
    %41 = vector.shape_cast %40 : vector<16x32xbf16> to vector<2x8x4x8xbf16>
    %42 = tpu.transpose %41, [0, 2, 1, 3] : vector<2x8x4x8xbf16> -> vector<2x4x8x8xbf16>
    %43 = vector.shape_cast %42 : vector<2x4x8x8xbf16> to vector<8x8x8xbf16>
    %44 = vector.extract_strided_slice %36 {offsets = [0, 32], sizes = [16, 32], strides = [1, 1]} : vector<16x96xf32> to vector<16x32xf32>
    %45 = arith.truncf %44 : vector<16x32xf32> to vector<16x32xbf16>
    %46 = vector.shape_cast %45 : vector<16x32xbf16> to vector<2x8x4x8xbf16>
    %47 = tpu.transpose %46, [0, 2, 1, 3] : vector<2x8x4x8xbf16> -> vector<2x4x8x8xbf16>
    %48 = vector.shape_cast %47 : vector<2x4x8x8xbf16> to vector<8x8x8xbf16>
    %49 = vector.extract_strided_slice %36 {offsets = [0, 64], sizes = [16, 32], strides = [1, 1]} : vector<16x96xf32> to vector<16x32xf32>
    %50 = arith.truncf %49 : vector<16x32xf32> to vector<16x32xbf16>
    %51 = vector.shape_cast %50 : vector<16x32xbf16> to vector<2x8x4x8xbf16>
    %52 = tpu.transpose %51, [0, 2, 1, 3] : vector<2x8x4x8xbf16> -> vector<2x4x8x8xbf16>
    %53 = vector.shape_cast %52 : vector<2x4x8x8xbf16> to vector<8x8x8xbf16>
    "tpu.trace_start"() <{level = 10 : i32, message = "bqd,bkd->bqk"}> : () -> ()
    %cst_23 = arith.constant dense<0.000000e+00> : vector<8x8x8xf32>
    %54 = tpu.matmul %43, %48, %cst_23 {dimension_numbers = #tpu.dot_dimension_numbers<[2], [2], [1], [1], [0, 0, 0, 1, 1, 1], [0], [0]>} : vector<8x8x8xbf16>, vector<8x8x8xbf16>, vector<8x8x8xf32> -> vector<8x8x8xf32>
    "tpu.trace_stop"() : () -> ()
    %55 = vector.shape_cast %8 : vector<2x1x8xf32> to vector<2x1x1x8xf32>
    %56 = vector.shape_cast %55 : vector<2x1x1x8xf32> to vector<2x1x1x8xf32>
    %57 = vector.broadcast %56 : vector<2x1x1x8xf32> to vector<2x4x1x8xf32>
    %58 = vector.shape_cast %57 : vector<2x4x1x8xf32> to vector<8x1x8xf32>
    %59 = vector.broadcast %58 : vector<8x1x8xf32> to vector<8x8x8xf32>
    %60 = arith.addf %54, %59 : vector<8x8x8xf32>
    %cst_24 = arith.constant dense<0xFF800000> : vector<8x8xf32>
    %61 = vector.multi_reduction <maximumf>, %60, %cst_24 [2] : vector<8x8x8xf32> to vector<8x8xf32>
    %62 = vector.shape_cast %61 : vector<8x8xf32> to vector<8x8x1xf32>
    %63 = vector.broadcast %62 : vector<8x8x1xf32> to vector<8x8x8xf32>
    %64 = arith.subf %60, %63 : vector<8x8x8xf32>
    %65 = math.exp %64 : vector<8x8x8xf32>
    %cst_25 = arith.constant dense<0.000000e+00> : vector<8x8xf32>
    %66 = vector.multi_reduction <add>, %65, %cst_25 [2] : vector<8x8x8xf32> to vector<8x8xf32>
    %67 = vector.shape_cast %66 : vector<8x8xf32> to vector<8x8x1xf32>
    %68 = tpu.reciprocal %67 {approx = true} : vector<8x8x1xf32> -> vector<8x8x1xf32>
    %69 = vector.broadcast %68 : vector<8x8x1xf32> to vector<8x8x8xf32>
    %70 = arith.mulf %65, %69 : vector<8x8x8xf32>
    %71 = arith.truncf %70 : vector<8x8x8xf32> to vector<8x8x8xbf16>
    "tpu.trace_start"() <{level = 10 : i32, message = "bqk,bkd->bqd"}> : () -> ()
    %cst_26 = arith.constant dense<0.000000e+00> : vector<8x8x8xf32>
    %72 = tpu.matmul %71, %53, %cst_26 {dimension_numbers = #tpu.dot_dimension_numbers<[2], [1], [1], [2], [0, 0, 0, 1, 1, 2], [0], [0]>} : vector<8x8x8xbf16>, vector<8x8x8xbf16>, vector<8x8x8xf32> -> vector<8x8x8xf32>
    "tpu.trace_stop"() : () -> ()
    %73 = arith.truncf %72 : vector<8x8x8xf32> to vector<8x8x8xbf16>
    %74 = vector.shape_cast %73 : vector<8x8x8xbf16> to vector<2x4x8x8xbf16>
    %75 = tpu.transpose %74, [0, 2, 1, 3] : vector<2x4x8x8xbf16> -> vector<2x8x4x8xbf16>
    %76 = vector.shape_cast %75 : vector<2x8x4x8xbf16> to vector<16x32xbf16>
    %c0_27 = arith.constant 0 : index
    %c0_28 = arith.constant 0 : index
    %77 = vector.load %arg8[%c0_27, %c0_28] : memref<32x32xbf16, #tpu.memory_space<vmem>>, vector<32x32xbf16>
    %cst_29 = arith.constant dense<0.000000e+00> : vector<16x32xf32>
    %78 = tpu.matmul %76, %77, %cst_29 {dimension_numbers = #tpu.dot_dimension_numbers<[1], [0], [0], [1], [0, 0, 1, 1], [], []>} : vector<16x32xbf16>, vector<32x32xbf16>, vector<16x32xf32> -> vector<16x32xf32>
    %c0_30 = arith.constant 0 : index
    %c0_31 = arith.constant 0 : index
    %79 = vector.load %arg9[%c0_30, %c0_31] : memref<1x32xf32, #tpu.memory_space<vmem>>, vector<1x32xf32>
    %80 = vector.broadcast %79 : vector<1x32xf32> to vector<16x32xf32>
    %81 = arith.addf %78, %80 : vector<16x32xf32>
    %c0_32 = arith.constant 0 : index
    %c0_33 = arith.constant 0 : index
    %82 = vector.load %arg10[%c0_32, %c0_33] : memref<1x32xf32, #tpu.memory_space<vmem>>, vector<1x32xf32>
    %83 = vector.broadcast %82 : vector<1x32xf32> to vector<16x32xf32>
    %84 = arith.mulf %83, %81 : vector<16x32xf32>
    %85 = arith.addf %5, %84 : vector<16x32xf32>
    %c0_34 = arith.constant 0 : index
    %c0_35 = arith.constant 0 : index
    %86 = vector.load %arg11[%c0_34, %c0_35] : memref<1x32xf32, #tpu.memory_space<vmem>>, vector<1x32xf32>
    %c0_36 = arith.constant 0 : index
    %c0_37 = arith.constant 0 : index
    %87 = vector.load %arg12[%c0_36, %c0_37] : memref<1x32xf32, #tpu.memory_space<vmem>>, vector<1x32xf32>
    %cst_38 = arith.constant dense<0.000000e+00> : vector<16xf32>
    %88 = vector.multi_reduction <add>, %85, %cst_38 [1] : vector<16x32xf32> to vector<16xf32>
    %89 = vector.shape_cast %88 : vector<16xf32> to vector<16x1xf32>
    %cst_39 = arith.constant 3.200000e+01 : f32
    %90 = vector.broadcast %cst_39 : f32 to vector<16x1xf32>
    %91 = arith.divf %89, %90 : vector<16x1xf32>
    %92 = vector.broadcast %91 : vector<16x1xf32> to vector<16x32xf32>
    %93 = arith.subf %85, %92 : vector<16x32xf32>
    %94 = arith.mulf %93, %93 : vector<16x32xf32>
    %cst_40 = arith.constant dense<0.000000e+00> : vector<16xf32>
    %95 = vector.multi_reduction <add>, %94, %cst_40 [1] : vector<16x32xf32> to vector<16xf32>
    %96 = vector.shape_cast %95 : vector<16xf32> to vector<16x1xf32>
    %cst_41 = arith.constant 3.200000e+01 : f32
    %97 = vector.broadcast %cst_41 : f32 to vector<16x1xf32>
    %98 = arith.divf %96, %97 : vector<16x1xf32>
    %cst_42 = arith.constant 9.99999997E-7 : f32
    %99 = vector.broadcast %cst_42 : f32 to vector<16x1xf32>
    %100 = arith.addf %98, %99 : vector<16x1xf32>
    %101 = math.rsqrt %100 : vector<16x1xf32>
    %102 = vector.broadcast %101 : vector<16x1xf32> to vector<16x32xf32>
    %103 = arith.mulf %93, %102 : vector<16x32xf32>
    %104 = vector.broadcast %86 : vector<1x32xf32> to vector<16x32xf32>
    %105 = arith.mulf %103, %104 : vector<16x32xf32>
    %106 = vector.broadcast %87 : vector<1x32xf32> to vector<16x32xf32>
    %107 = arith.addf %105, %106 : vector<16x32xf32>
    %108 = arith.truncf %107 : vector<16x32xf32> to vector<16x32xbf16>
    %c0_43 = arith.constant 0 : index
    %c0_44 = arith.constant 0 : index
    %109 = vector.load %arg13[%c0_43, %c0_44] : memref<32x128xbf16, #tpu.memory_space<vmem>>, vector<32x128xbf16>
    %cst_45 = arith.constant dense<0.000000e+00> : vector<16x128xf32>
    %110 = tpu.matmul %108, %109, %cst_45 {dimension_numbers = #tpu.dot_dimension_numbers<[1], [0], [0], [1], [0, 0, 1, 1], [], []>} : vector<16x32xbf16>, vector<32x128xbf16>, vector<16x128xf32> -> vector<16x128xf32>
    %c0_46 = arith.constant 0 : index
    %c0_47 = arith.constant 0 : index
    %111 = vector.load %arg14[%c0_46, %c0_47] : memref<1x128xf32, #tpu.memory_space<vmem>>, vector<1x128xf32>
    %112 = vector.broadcast %111 : vector<1x128xf32> to vector<16x128xf32>
    %113 = arith.addf %110, %112 : vector<16x128xf32>
    %114 = arith.mulf %113, %113 : vector<16x128xf32>
    %115 = arith.mulf %113, %114 : vector<16x128xf32>
    %cst_48 = arith.constant 4.471500e-02 : f32
    %116 = vector.broadcast %cst_48 : f32 to vector<16x128xf32>
    %117 = arith.mulf %116, %115 : vector<16x128xf32>
    %118 = arith.addf %113, %117 : vector<16x128xf32>
    %cst_49 = arith.constant 0.797884583 : f32
    %119 = vector.broadcast %cst_49 : f32 to vector<16x128xf32>
    %120 = arith.mulf %119, %118 : vector<16x128xf32>
    %121 = math.tanh %120 : vector<16x128xf32>
    %cst_50 = arith.constant 1.000000e+00 : f32
    %122 = vector.broadcast %cst_50 : f32 to vector<16x128xf32>
    %123 = arith.addf %122, %121 : vector<16x128xf32>
    %cst_51 = arith.constant 5.000000e-01 : f32
    %124 = vector.broadcast %cst_51 : f32 to vector<16x128xf32>
    %125 = arith.mulf %124, %123 : vector<16x128xf32>
    %126 = arith.mulf %113, %125 : vector<16x128xf32>
    %127 = arith.truncf %126 : vector<16x128xf32> to vector<16x128xbf16>
    %c0_52 = arith.constant 0 : index
    %c0_53 = arith.constant 0 : index
    %128 = vector.load %arg15[%c0_52, %c0_53] : memref<128x32xbf16, #tpu.memory_space<vmem>>, vector<128x32xbf16>
    %cst_54 = arith.constant dense<0.000000e+00> : vector<16x32xf32>
    %129 = tpu.matmul %127, %128, %cst_54 {dimension_numbers = #tpu.dot_dimension_numbers<[1], [0], [0], [1], [0, 0, 1, 1], [], []>} : vector<16x128xbf16>, vector<128x32xbf16>, vector<16x32xf32> -> vector<16x32xf32>
    %c0_55 = arith.constant 0 : index
    %c0_56 = arith.constant 0 : index
    %130 = vector.load %arg16[%c0_55, %c0_56] : memref<1x32xf32, #tpu.memory_space<vmem>>, vector<1x32xf32>
    %131 = vector.broadcast %130 : vector<1x32xf32> to vector<16x32xf32>
    %132 = arith.addf %129, %131 : vector<16x32xf32>
    %c0_57 = arith.constant 0 : index
    %c0_58 = arith.constant 0 : index
    %133 = vector.load %arg17[%c0_57, %c0_58] : memref<1x32xf32, #tpu.memory_space<vmem>>, vector<1x32xf32>
    %134 = vector.broadcast %133 : vector<1x32xf32> to vector<16x32xf32>
    %135 = arith.mulf %134, %132 : vector<16x32xf32>
    %136 = arith.addf %85, %135 : vector<16x32xf32>
    %137 = vector.shape_cast %136 : vector<16x32xf32> to vector<2x8x32xf32>
    %138 = vector.extract_strided_slice %137 {offsets = [0, 0, 0], sizes = [2, 1, 32], strides = [1, 1, 1]} : vector<2x8x32xf32> to vector<2x1x32xf32>
    %139 = vector.shape_cast %138 : vector<2x1x32xf32> to vector<2x32xf32>
    %140 = vector.shape_cast %85 : vector<16x32xf32> to vector<2x8x32xf32>
    %141 = vector.extract_strided_slice %140 {offsets = [0, 0, 0], sizes = [2, 1, 32], strides = [1, 1, 1]} : vector<2x8x32xf32> to vector<2x1x32xf32>
    %142 = vector.shape_cast %141 : vector<2x1x32xf32> to vector<2x32xf32>
    %c0_59 = arith.constant 0 : index
    %c0_60 = arith.constant 0 : index
    %143 = vector.load %arg18[%c0_59, %c0_60] : memref<1x32xf32, #tpu.memory_space<vmem>>, vector<1x32xf32>
    %c0_61 = arith.constant 0 : index
    %c0_62 = arith.constant 0 : index
    %144 = vector.load %arg19[%c0_61, %c0_62] : memref<1x32xf32, #tpu.memory_space<vmem>>, vector<1x32xf32>
    %cst_63 = arith.constant dense<0.000000e+00> : vector<2xf32>
    %145 = vector.multi_reduction <add>, %139, %cst_63 [1] : vector<2x32xf32> to vector<2xf32>
    %146 = vector.shape_cast %145 : vector<2xf32> to vector<2x1xf32>
    %cst_64 = arith.constant 3.200000e+01 : f32
    %147 = vector.broadcast %cst_64 : f32 to vector<2x1xf32>
    %148 = arith.divf %146, %147 : vector<2x1xf32>
    %149 = vector.broadcast %148 : vector<2x1xf32> to vector<2x32xf32>
    %150 = arith.subf %139, %149 : vector<2x32xf32>
    %151 = arith.mulf %150, %150 : vector<2x32xf32>
    %cst_65 = arith.constant dense<0.000000e+00> : vector<2xf32>
    %152 = vector.multi_reduction <add>, %151, %cst_65 [1] : vector<2x32xf32> to vector<2xf32>
    %153 = vector.shape_cast %152 : vector<2xf32> to vector<2x1xf32>
    %cst_66 = arith.constant 3.200000e+01 : f32
    %154 = vector.broadcast %cst_66 : f32 to vector<2x1xf32>
    %155 = arith.divf %153, %154 : vector<2x1xf32>
    %cst_67 = arith.constant 9.99999997E-7 : f32
    %156 = vector.broadcast %cst_67 : f32 to vector<2x1xf32>
    %157 = arith.addf %155, %156 : vector<2x1xf32>
    %158 = math.rsqrt %157 : vector<2x1xf32>
    %159 = vector.broadcast %158 : vector<2x1xf32> to vector<2x32xf32>
    %160 = arith.mulf %150, %159 : vector<2x32xf32>
    %161 = vector.broadcast %143 : vector<1x32xf32> to vector<2x32xf32>
    %162 = arith.mulf %160, %161 : vector<2x32xf32>
    %163 = vector.broadcast %144 : vector<1x32xf32> to vector<2x32xf32>
    %164 = arith.addf %162, %163 : vector<2x32xf32>
    %165 = arith.truncf %164 : vector<2x32xf32> to vector<2x32xbf16>
    %c0_68 = arith.constant 0 : index
    %c0_69 = arith.constant 0 : index
    %166 = vector.load %arg20[%c0_68, %c0_69] : memref<32x32xbf16, #tpu.memory_space<vmem>>, vector<32x32xbf16>
    %cst_70 = arith.constant dense<0.000000e+00> : vector<2x32xf32>
    %167 = tpu.matmul %165, %166, %cst_70 {dimension_numbers = #tpu.dot_dimension_numbers<[1], [0], [0], [1], [0, 0, 1, 1], [], []>} : vector<2x32xbf16>, vector<32x32xbf16>, vector<2x32xf32> -> vector<2x32xf32>
    %c0_71 = arith.constant 0 : index
    %c0_72 = arith.constant 0 : index
    %168 = vector.load %arg21[%c0_71, %c0_72] : memref<1x32xf32, #tpu.memory_space<vmem>>, vector<1x32xf32>
    %169 = vector.broadcast %168 : vector<1x32xf32> to vector<2x32xf32>
    %170 = arith.addf %167, %169 : vector<2x32xf32>
    %171 = vector.shape_cast %170 : vector<2x32xf32> to vector<2x1x32xf32>
    %c0_73 = arith.constant 0 : index
    %c0_74 = arith.constant 0 : index
    %c0_75 = arith.constant 0 : index
    %172 = vector.load %arg22[%c0_73, %c0_74, %c0_75] : memref<2x1x32xf32, #tpu.memory_space<vmem>>, vector<2x1x32xf32>
    tpu.vector_store %arg22[%c0_73, %c0_74, %c0_75], %171 {strides = array<i32>} : memref<2x1x32xf32, #tpu.memory_space<vmem>>, vector<2x1x32xf32>,
    %173 = arith.mulf %139, %139 : vector<2x32xf32>
    %cst_76 = arith.constant dense<0.000000e+00> : vector<2xf32>
    %174 = vector.multi_reduction <add>, %173, %cst_76 [1] : vector<2x32xf32> to vector<2xf32>
    %175 = vector.shape_cast %174 : vector<2xf32> to vector<2x1xf32>
    %cst_77 = arith.constant 9.99999996E-13 : f32
    %176 = vector.broadcast %cst_77 : f32 to vector<2x1xf32>
    %177 = arith.addf %175, %176 : vector<2x1xf32>
    %178 = math.rsqrt %177 : vector<2x1xf32>
    %179 = vector.broadcast %178 : vector<2x1xf32> to vector<2x32xf32>
    %180 = arith.mulf %139, %179 : vector<2x32xf32>
    %181 = vector.shape_cast %180 : vector<2x32xf32> to vector<2x1x32xf32>
    %c0_78 = arith.constant 0 : index
    %c0_79 = arith.constant 0 : index
    %c0_80 = arith.constant 0 : index
    %182 = vector.load %arg23[%c0_78, %c0_79, %c0_80] : memref<2x1x32xf32, #tpu.memory_space<vmem>>, vector<2x1x32xf32>
    tpu.vector_store %arg23[%c0_78, %c0_79, %c0_80], %181 {strides = array<i32>} : memref<2x1x32xf32, #tpu.memory_space<vmem>>, vector<2x1x32xf32>,
    %183 = arith.mulf %142, %142 : vector<2x32xf32>
    %cst_81 = arith.constant dense<0.000000e+00> : vector<2xf32>
    %184 = vector.multi_reduction <add>, %183, %cst_81 [1] : vector<2x32xf32> to vector<2xf32>
    %185 = vector.shape_cast %184 : vector<2xf32> to vector<2x1xf32>
    %cst_82 = arith.constant 9.99999996E-13 : f32
    %186 = vector.broadcast %cst_82 : f32 to vector<2x1xf32>
    %187 = arith.addf %185, %186 : vector<2x1xf32>
    %188 = math.rsqrt %187 : vector<2x1xf32>
    %189 = vector.broadcast %188 : vector<2x1xf32> to vector<2x32xf32>
    %190 = arith.mulf %142, %189 : vector<2x32xf32>
    %191 = vector.shape_cast %190 : vector<2x32xf32> to vector<2x1x32xf32>
    %c0_83 = arith.constant 0 : index
    %c0_84 = arith.constant 0 : index
    %c0_85 = arith.constant 0 : index
    %192 = vector.load %arg24[%c0_83, %c0_84, %c0_85] : memref<2x1x32xf32, #tpu.memory_space<vmem>>, vector<2x1x32xf32>
    tpu.vector_store %arg24[%c0_83, %c0_84, %c0_85], %191 {strides = array<i32>} : memref<2x1x32xf32, #tpu.memory_space<vmem>>, vector<2x1x32xf32>,
    return
  }
  func.func @transform_0(%arg0: i32) -> (i32, i32, i32) {
    %c0_i32 = arith.constant 0 : i32
    %c0_i32_0 = arith.constant 0 : i32
    %c0_i32_1 = arith.constant 0 : i32
    return %arg0, %c0_i32, %c0_i32_0 : i32, i32, i32
  }
  func.func @transform_1(%arg0: i32) -> (i32, i32, i32) {
    %c0_i32 = arith.constant 0 : i32
    %c0_i32_0 = arith.constant 0 : i32
    %c0_i32_1 = arith.constant 0 : i32
    return %arg0, %c0_i32, %c0_i32_0 : i32, i32, i32
  }
  func.func @transform_2(%arg0: i32) -> (i32, i32, i32) {
    %c0_i32 = arith.constant 0 : i32
    %c0_i32_0 = arith.constant 0 : i32
    %c0_i32_1 = arith.constant 0 : i32
    return %arg0, %c0_i32, %c0_i32_0 : i32, i32, i32
  }
  func.func @transform_3(%arg0: i32) -> (i32, i32) {
    %c0_i32 = arith.constant 0 : i32
    %c0_i32_0 = arith.constant 0 : i32
    %c0_i32_1 = arith.constant 0 : i32
    return %c0_i32, %c0_i32_0 : i32, i32
  }
  func.func @transform_4(%arg0: i32) -> (i32, i32) {
    %c0_i32 = arith.constant 0 : i32
    %c0_i32_0 = arith.constant 0 : i32
    %c0_i32_1 = arith.constant 0 : i32
    return %c0_i32, %c0_i32_0 : i32, i32
  }
  func.func @transform_5(%arg0: i32) -> (i32, i32) {
    %c0_i32 = arith.constant 0 : i32
    %c0_i32_0 = arith.constant 0 : i32
    %c0_i32_1 = arith.constant 0 : i32
    return %c0_i32, %c0_i32_0 : i32, i32
  }
  func.func @transform_6(%arg0: i32) -> (i32, i32) {
    %c0_i32 = arith.constant 0 : i32
    %c0_i32_0 = arith.constant 0 : i32
    %c0_i32_1 = arith.constant 0 : i32
    return %c0_i32, %c0_i32_0 : i32, i32
  }
  func.func @transform_7(%arg0: i32) -> (i32, i32) {
    %c0_i32 = arith.constant 0 : i32
    %c0_i32_0 = arith.constant 0 : i32
    %c0_i32_1 = arith.constant 0 : i32
    return %c0_i32, %c0_i32_0 : i32, i32
  }
  func.func @transform_8(%arg0: i32) -> (i32, i32) {
    %c0_i32 = arith.constant 0 : i32
    %c0_i32_0 = arith.constant 0 : i32
    %c0_i32_1 = arith.constant 0 : i32
    return %c0_i32, %c0_i32_0 : i32, i32
  }
  func.func @transform_9(%arg0: i32) -> (i32, i32) {
    %c0_i32 = arith.constant 0 : i32
    %c0_i32_0 = arith.constant 0 : i32
    %c0_i32_1 = arith.constant 0 : i32
    return %c0_i32, %c0_i32_0 : i32, i32
  }
  func.func @transform_10(%arg0: i32) -> (i32, i32) {
    %c0_i32 = arith.constant 0 : i32
    %c0_i32_0 = arith.constant 0 : i32
    %c0_i32_1 = arith.constant 0 : i32
    return %c0_i32, %c0_i32_0 : i32, i32
  }
  func.func @transform_11(%arg0: i32) -> (i32, i32) {
    %c0_i32 = arith.constant 0 : i32
    %c0_i32_0 = arith.constant 0 : i32
    %c0_i32_1 = arith.constant 0 : i32
    return %c0_i32, %c0_i32_0 : i32, i32
  }
  func.func @transform_12(%arg0: i32) -> (i32, i32) {
    %c0_i32 = arith.constant 0 : i32
    %c0_i32_0 = arith.constant 0 : i32
    %c0_i32_1 = arith.constant 0 : i32
    return %c0_i32, %c0_i32_0 : i32, i32
  }
  func.func @transform_13(%arg0: i32) -> (i32, i32) {
    %c0_i32 = arith.constant 0 : i32
    %c0_i32_0 = arith.constant 0 : i32
    %c0_i32_1 = arith.constant 0 : i32
    return %c0_i32, %c0_i32_0 : i32, i32
  }
  func.func @transform_14(%arg0: i32) -> (i32, i32) {
    %c0_i32 = arith.constant 0 : i32
    %c0_i32_0 = arith.constant 0 : i32
    %c0_i32_1 = arith.constant 0 : i32
    return %c0_i32, %c0_i32_0 : i32, i32
  }
  func.func @transform_15(%arg0: i32) -> (i32, i32) {
    %c0_i32 = arith.constant 0 : i32
    %c0_i32_0 = arith.constant 0 : i32
    %c0_i32_1 = arith.constant 0 : i32
    return %c0_i32, %c0_i32_0 : i32, i32
  }
  func.func @transform_16(%arg0: i32) -> (i32, i32) {
    %c0_i32 = arith.constant 0 : i32
    %c0_i32_0 = arith.constant 0 : i32
    %c0_i32_1 = arith.constant 0 : i32
    return %c0_i32, %c0_i32_0 : i32, i32
  }
  func.func @transform_17(%arg0: i32) -> (i32, i32) {
    %c0_i32 = arith.constant 0 : i32
    %c0_i32_0 = arith.constant 0 : i32
    %c0_i32_1 = arith.constant 0 : i32
    return %c0_i32, %c0_i32_0 : i32, i32
  }
  func.func @transform_18(%arg0: i32) -> (i32, i32) {
    %c0_i32 = arith.constant 0 : i32
    %c0_i32_0 = arith.constant 0 : i32
    %c0_i32_1 = arith.constant 0 : i32
    return %c0_i32, %c0_i32_0 : i32, i32
  }
  func.func @transform_19(%arg0: i32) -> (i32, i32) {
    %c0_i32 = arith.constant 0 : i32
    %c0_i32_0 = arith.constant 0 : i32
    %c0_i32_1 = arith.constant 0 : i32
    return %c0_i32, %c0_i32_0 : i32, i32
  }
  func.func @transform_20(%arg0: i32) -> (i32, i32) {
    %c0_i32 = arith.constant 0 : i32
    %c0_i32_0 = arith.constant 0 : i32
    %c0_i32_1 = arith.constant 0 : i32
    return %c0_i32, %c0_i32_0 : i32, i32
  }
  func.func @transform_21(%arg0: i32) -> (i32, i32, i32) {
    %c0_i32 = arith.constant 0 : i32
    %c0_i32_0 = arith.constant 0 : i32
    %c0_i32_1 = arith.constant 0 : i32
    return %arg0, %c0_i32, %c0_i32_0 : i32, i32, i32
  }
  func.func @transform_22(%arg0: i32) -> (i32, i32, i32) {
    %c0_i32 = arith.constant 0 : i32
    %c0_i32_0 = arith.constant 0 : i32
    %c0_i32_1 = arith.constant 0 : i32
    return %arg0, %c0_i32, %c0_i32_0 : i32, i32, i32
  }
  func.func @transform_23(%arg0: i32) -> (i32, i32, i32) {
    %c0_i32 = arith.constant 0 : i32
    %c0_i32_0 = arith.constant 0 : i32
    %c0_i32_1 = arith.constant 0 : i32
    return %arg0, %c0_i32, %c0_i32_0 : i32, i32, i32
  }
}

</mosaic_0001>

<llo_original>
// kernel: sx3hre_forward.1
$region0: #{sx3hre_forward.1}
  #allocation0 [shape = 'u32[]', space=smem, size = 0x4, offset = 0x4, fixed_abs, tag = 'smem constant byte address 0x4 - core index']
  #allocation1 [shape = 'u32[144,128]{1,0:T(1,128)}', space=vmem, size = 0x12000, scoped, tag = 'internal scratch']
  %s0 = inlined_call_operand.vmem [shape: bf16[4,8,32], index: 0, kind: input, shape index: {}]
  %s1 = inlined_call_operand.vmem [shape: f32[4,1,8], index: 1, kind: input, shape index: {}]
  %s2 = inlined_call_operand.vmem [shape: f32[4,1,32], index: 2, kind: input, shape index: {}]
  %s3 = inlined_call_operand.vmem [shape: f32[1,32], index: 3, kind: input, shape index: {}]
  %s4 = inlined_call_operand.vmem [shape: f32[1,32], index: 4, kind: input, shape index: {}]
  %s5 = inlined_call_operand.vmem [shape: bf16[32,96], index: 5, kind: input, shape index: {}]
  %s6 = inlined_call_operand.vmem [shape: f32[1,96], index: 6, kind: input, shape index: {}]
  %s7 = inlined_call_operand.vmem [shape: bf16[32,32], index: 7, kind: input, shape index: {}]
  %s8 = inlined_call_operand.vmem [shape: f32[1,32], index: 8, kind: input, shape index: {}]
  %s9 = inlined_call_operand.vmem [shape: f32[1,32], index: 9, kind: input, shape index: {}]
  %s10 = inlined_call_operand.vmem [shape: f32[1,32], index: 10, kind: input, shape index: {}]
  %s11 = inlined_call_operand.vmem [shape: f32[1,32], index: 11, kind: input, shape index: {}]
  %s12 = inlined_call_operand.vmem [shape: bf16[32,128], index: 12, kind: input, shape index: {}]
  %s13 = inlined_call_operand.vmem [shape: f32[1,128], index: 13, kind: input, shape index: {}]
  %s14 = inlined_call_operand.vmem [shape: bf16[128,32], index: 14, kind: input, shape index: {}]
  %s15 = inlined_call_operand.vmem [shape: f32[1,32], index: 15, kind: input, shape index: {}]
  %s16 = inlined_call_operand.vmem [shape: f32[1,32], index: 16, kind: input, shape index: {}]
  %s17 = inlined_call_operand.vmem [shape: f32[1,32], index: 17, kind: input, shape index: {}]
  %s18 = inlined_call_operand.vmem [shape: f32[1,32], index: 18, kind: input, shape index: {}]
  %s19 = inlined_call_operand.vmem [shape: bf16[32,32], index: 19, kind: input, shape index: {}]
  %s20 = inlined_call_operand.vmem [shape: f32[1,32], index: 20, kind: input, shape index: {}]
  %s21 = inlined_call_operand.vmem [shape: f32[4,1,32], index: 21, kind: output, shape index: {0}]
  %s22 = inlined_call_operand.vmem [shape: f32[4,1,32], index: 22, kind: output, shape index: {1}]
  %s23 = inlined_call_operand.vmem [shape: f32[4,1,32], index: 23, kind: output, shape index: {2}]
  %24 = xla_tuple %s21, %s22, %s23
  %s25 = sld [smem:[#allocation0]]
  $region133: #{sx3hre_forward.1} parent=0
    _
  %s27 = ssub.s32 1, %s25
  %s28 = scalar_select 0, %s27, %s25
  loop: start=0, step=1, limit=4
  $region2: #{sx3hre_forward.1} parent=0 // loop_pre_header
    _
  $region3: #{sx3hre_forward.1} parent=0 // loop_header
    %s30 = sphi 0, %s34
    %p31 = scmp.ge.s32.totalorder %s30, 4
    %s40 = sphi 0, %s42
    %s43 = sphi 0, %s40
    %s44 = sphi 0, %s43
    %s60 = sphi 0, %s44
    %s66 = sphi 0, %s68
    %s69 = sphi 0, %s66
    %s70 = sphi 0, %s69
    %s86 = sphi 0, %s70
    %s92 = sphi 0, %s94
    %s95 = sphi 0, %s92
    %s96 = sphi 0, %s95
    %s112 = sphi 0, %s96
    %s116 = sphi 0, %s116
    %s118 = sphi 0, %s116
    %s119 = sphi 0, %s118
    %s133 = sphi 0, %s119
    %s137 = sphi 0, %s137
    %s139 = sphi 0, %s137
    %s140 = sphi 0, %s139
    %s154 = sphi 0, %s140
    %s158 = sphi 0, %s158
    %s160 = sphi 0, %s158
    %s161 = sphi 0, %s160
    %s175 = sphi 0, %s161
    %s179 = sphi 0, %s179
    %s181 = sphi 0, %s179
    %s182 = sphi 0, %s181
    %s196 = sphi 0, %s182
    %s200 = sphi 0, %s200
    %s202 = sphi 0, %s200
    %s203 = sphi 0, %s202
    %s217 = sphi 0, %s203
    %s221 = sphi 0, %s221
    %s223 = sphi 0, %s221
    %s224 = sphi 0, %s223
    %s238 = sphi 0, %s224
    %s242 = sphi 0, %s242
    %s244 = sphi 0, %s242
    %s245 = sphi 0, %s244
    %s259 = sphi 0, %s245
    %s263 = sphi 0, %s263
    %s265 = sphi 0, %s263
    %s266 = sphi 0, %s265
    %s280 = sphi 0, %s266
    %s284 = sphi 0, %s284
    %s286 = sphi 0, %s284
    %s287 = sphi 0, %s286
    %s301 = sphi 0, %s287
    %s305 = sphi 0, %s305
    %s307 = sphi 0, %s305
    %s308 = sphi 0, %s307
    %s322 = sphi 0, %s308
    %s326 = sphi 0, %s326
    %s328 = sphi 0, %s326
    %s329 = sphi 0, %s328
    %s343 = sphi 0, %s329
    %s347 = sphi 0, %s347
    %s349 = sphi 0, %s347
    %s350 = sphi 0, %s349
    %s364 = sphi 0, %s350
    %s368 = sphi 0, %s368
    %s370 = sphi 0, %s368
    %s371 = sphi 0, %s370
    %s385 = sphi 0, %s371
    %s389 = sphi 0, %s389
    %s391 = sphi 0, %s389
    %s392 = sphi 0, %s391
    %s406 = sphi 0, %s392
    %s410 = sphi 0, %s410
    %s412 = sphi 0, %s410
    %s413 = sphi 0, %s412
    %s427 = sphi 0, %s413
    %s431 = sphi 0, %s431
    %s433 = sphi 0, %s431
    %s434 = sphi 0, %s433
    %s448 = sphi 0, %s434
    %s452 = sphi 0, %s452
    %s454 = sphi 0, %s452
    %s455 = sphi 0, %s454
    %s469 = sphi 0, %s455
    %s473 = sphi 0, %s473
    %s475 = sphi 0, %s473
    %s476 = sphi 0, %s475
    %s490 = sphi 0, %s476
    %s496 = sphi 0, %s498
    %s499 = sphi 0, %s496
    %s500 = sphi 0, %s499
    %s516 = sphi 0, %s500
    %s522 = sphi 0, %s524
    %s525 = sphi 0, %s522
    %s526 = sphi 0, %s525
    %s542 = sphi 0, %s526
    %s548 = sphi 0, %s550
    %s551 = sphi 0, %s548
    %s552 = sphi 0, %s551
    %s568 = sphi 0, %s552
  $region4: #{sx3hre_forward.1} parent=0 // loop_header_branch
    %33 = sbr.rel (%p31) target = $region8
  $region5: #{sx3hre_forward.1} parent=0 // loop_body
    %s35 = ssub.s32 %s30, 1
    %s36 = ssub.s32 %s30, 2
    %s37 = sadd.s32 %s30, 1
    %s38 = ssub.s32 %s30, %s37
    %p39 = scmp.eq.s32.totalorder %s38, 0
    %s41 = sadd.s32 %s40, 1
    %s42 = scalar_select %p39, %s40, %s41
    %p45 = pneg %p39
    %p46 = scmp.eq.s32.totalorder %s30, 1
    %p47 = por %p45, %p46
    %p48 = scmp.ne.s32.totalorder %s40, %s43
    %p49 = scmp.eq.s32.totalorder %s30, 0
    %p50 = por %p48, %p49
    %p51 = scmp.ne.s32.totalorder %s40, %s43
    %p52 = scmp.eq.s32.totalorder %s35, 1
    %p53 = por %p51, %p52
    %p54 = scmp.ne.s32.totalorder %s43, %s44
    %p55 = scmp.eq.s32.totalorder %s35, 0
    %p56 = por %p54, %p55
    %p57 = scmp.ne.s32.totalorder %s43, %s44
    %p58 = scmp.eq.s32.totalorder %s36, 1
    %p59 = por %p57, %p58
    %p61 = scmp.ne.s32.totalorder %s44, %s60
    %p62 = scmp.eq.s32.totalorder %s36, 0
    %p63 = por %p61, %p62
    %s64 = ssub.s32 %s30, %s37
    %p65 = scmp.eq.s32.totalorder %s64, 0
    %s67 = sadd.s32 %s66, 1
    %s68 = scalar_select %p65, %s66, %s67
    %p71 = pneg %p65
    %p72 = scmp.eq.s32.totalorder %s30, 1
    %p73 = por %p71, %p72
    %p74 = scmp.ne.s32.totalorder %s66, %s69
    %p75 = scmp.eq.s32.totalorder %s30, 0
    %p76 = por %p74, %p75
    %p77 = scmp.ne.s32.totalorder %s66, %s69
    %p78 = scmp.eq.s32.totalorder %s35, 1
    %p79 = por %p77, %p78
    %p80 = scmp.ne.s32.totalorder %s69, %s70
    %p81 = scmp.eq.s32.totalorder %s35, 0
    %p82 = por %p80, %p81
    %p83 = scmp.ne.s32.totalorder %s69, %s70
    %p84 = scmp.eq.s32.totalorder %s36, 1
    %p85 = por %p83, %p84
    %p87 = scmp.ne.s32.totalorder %s70, %s86
    %p88 = scmp.eq.s32.totalorder %s36, 0
    %p89 = por %p87, %p88
    %s90 = ssub.s32 %s30, %s37
    %p91 = scmp.eq.s32.totalorder %s90, 0
    %s93 = sadd.s32 %s92, 1
    %s94 = scalar_select %p91, %s92, %s93
    %p97 = pneg %p91
    %p98 = scmp.eq.s32.totalorder %s30, 1
    %p99 = por %p97, %p98
    %p100 = scmp.ne.s32.totalorder %s92, %s95
    %p101 = scmp.eq.s32.totalorder %s30, 0
    %p102 = por %p100, %p101
    %p103 = scmp.ne.s32.totalorder %s92, %s95
    %p104 = scmp.eq.s32.totalorder %s35, 1
    %p105 = por %p103, %p104
    %p106 = scmp.ne.s32.totalorder %s95, %s96
    %p107 = scmp.eq.s32.totalorder %s35, 0
    %p108 = por %p106, %p107
    %p109 = scmp.ne.s32.totalorder %s95, %s96
    %p110 = scmp.eq.s32.totalorder %s36, 1
    %p111 = por %p109, %p110
    %p113 = scmp.ne.s32.totalorder %s96, %s112
    %p114 = scmp.eq.s32.totalorder %s36, 0
    %p115 = por %p113, %p114
    %s117 = sadd.s32 %s116, 1
    %p120 = scmp.eq.s32.totalorder %s30, 1
    %p121 = scmp.ne.s32.totalorder %s116, %s118
    %p122 = scmp.eq.s32.totalorder %s30, 0
    %p123 = por %p121, %p122
    %p124 = scmp.ne.s32.totalorder %s116, %s118
    %p125 = scmp.eq.s32.totalorder %s35, 1
    %p126 = por %p124, %p125
    %p127 = scmp.ne.s32.totalorder %s118, %s119
    %p128 = scmp.eq.s32.totalorder %s35, 0
    %p129 = por %p127, %p128
    %p130 = scmp.ne.s32.totalorder %s118, %s119
    %p131 = scmp.eq.s32.totalorder %s36, 1
    %p132 = por %p130, %p131
    %p134 = scmp.ne.s32.totalorder %s119, %s133
    %p135 = scmp.eq.s32.totalorder %s36, 0
    %p136 = por %p134, %p135
    %s138 = sadd.s32 %s137, 1
    %p141 = scmp.eq.s32.totalorder %s30, 1
    %p142 = scmp.ne.s32.totalorder %s137, %s139
    %p143 = scmp.eq.s32.totalorder %s30, 0
    %p144 = por %p142, %p143
    %p145 = scmp.ne.s32.totalorder %s137, %s139
    %p146 = scmp.eq.s32.totalorder %s35, 1
    %p147 = por %p145, %p146
    %p148 = scmp.ne.s32.totalorder %s139, %s140
    %p149 = scmp.eq.s32.totalorder %s35, 0
    %p150 = por %p148, %p149
    %p151 = scmp.ne.s32.totalorder %s139, %s140
    %p152 = scmp.eq.s32.totalorder %s36, 1
    %p153 = por %p151, %p152
    %p155 = scmp.ne.s32.totalorder %s140, %s154
    %p156 = scmp.eq.s32.totalorder %s36, 0
    %p157 = por %p155, %p156
    %s159 = sadd.s32 %s158, 1
    %p162 = scmp.eq.s32.totalorder %s30, 1
    %p163 = scmp.ne.s32.totalorder %s158, %s160
    %p164 = scmp.eq.s32.totalorder %s30, 0
    %p165 = por %p163, %p164
    %p166 = scmp.ne.s32.totalorder %s158, %s160
    %p167 = scmp.eq.s32.totalorder %s35, 1
    %p168 = por %p166, %p167
    %p169 = scmp.ne.s32.totalorder %s160, %s161
    %p170 = scmp.eq.s32.totalorder %s35, 0
    %p171 = por %p169, %p170
    %p172 = scmp.ne.s32.totalorder %s160, %s161
    %p173 = scmp.eq.s32.totalorder %s36, 1
    %p174 = por %p172, %p173
    %p176 = scmp.ne.s32.totalorder %s161, %s175
    %p177 = scmp.eq.s32.totalorder %s36, 0
    %p178 = por %p176, %p177
    %s180 = sadd.s32 %s179, 1
    %p183 = scmp.eq.s32.totalorder %s30, 1
    %p184 = scmp.ne.s32.totalorder %s179, %s181
    %p185 = scmp.eq.s32.totalorder %s30, 0
    %p186 = por %p184, %p185
    %p187 = scmp.ne.s32.totalorder %s179, %s181
    %p188 = scmp.eq.s32.totalorder %s35, 1
    %p189 = por %p187, %p188
    %p190 = scmp.ne.s32.totalorder %s181, %s182
    %p191 = scmp.eq.s32.totalorder %s35, 0
    %p192 = por %p190, %p191
    %p193 = scmp.ne.s32.totalorder %s181, %s182
    %p194 = scmp.eq.s32.totalorder %s36, 1
    %p195 = por %p193, %p194
    %p197 = scmp.ne.s32.totalorder %s182, %s196
    %p198 = scmp.eq.s32.totalorder %s36, 0
    %p199 = por %p197, %p198
    %s201 = sadd.s32 %s200, 1
    %p204 = scmp.eq.s32.totalorder %s30, 1
    %p205 = scmp.ne.s32.totalorder %s200, %s202
    %p206 = scmp.eq.s32.totalorder %s30, 0
    %p207 = por %p205, %p206
    %p208 = scmp.ne.s32.totalorder %s200, %s202
    %p209 = scmp.eq.s32.totalorder %s35, 1
    %p210 = por %p208, %p209
    %p211 = scmp.ne.s32.totalorder %s202, %s203
    %p212 = scmp.eq.s32.totalorder %s35, 0
    %p213 = por %p211, %p212
    %p214 = scmp.ne.s32.totalorder %s202, %s203
    %p215 = scmp.eq.s32.totalorder %s36, 1
    %p216 = por %p214, %p215
    %p218 = scmp.ne.s32.totalorder %s203, %s217
    %p219 = scmp.eq.s32.totalorder %s36, 0
    %p220 = por %p218, %p219
    %s222 = sadd.s32 %s221, 1
    %p225 = scmp.eq.s32.totalorder %s30, 1
    %p226 = scmp.ne.s32.totalorder %s221, %s223
    %p227 = scmp.eq.s32.totalorder %s30, 0
    %p228 = por %p226, %p227
    %p229 = scmp.ne.s32.totalorder %s221, %s223
    %p230 = scmp.eq.s32.totalorder %s35, 1
    %p231 = por %p229, %p230
    %p232 = scmp.ne.s32.totalorder %s223, %s224
    %p233 = scmp.eq.s32.totalorder %s35, 0
    %p234 = por %p232, %p233
    %p235 = scmp.ne.s32.totalorder %s223, %s224
    %p236 = scmp.eq.s32.totalorder %s36, 1
    %p237 = por %p235, %p236
    %p239 = scmp.ne.s32.totalorder %s224, %s238
    %p240 = scmp.eq.s32.totalorder %s36, 0
    %p241 = por %p239, %p240
    %s243 = sadd.s32 %s242, 1
    %p246 = scmp.eq.s32.totalorder %s30, 1
    %p247 = scmp.ne.s32.totalorder %s242, %s244
    %p248 = scmp.eq.s32.totalorder %s30, 0
    %p249 = por %p247, %p248
    %p250 = scmp.ne.s32.totalorder %s242, %s244
    %p251 = scmp.eq.s32.totalorder %s35, 1
    %p252 = por %p250, %p251
    %p253 = scmp.ne.s32.totalorder %s244, %s245
    %p254 = scmp.eq.s32.totalorder %s35, 0
    %p255 = por %p253, %p254
    %p256 = scmp.ne.s32.totalorder %s244, %s245
    %p257 = scmp.eq.s32.totalorder %s36, 1
    %p258 = por %p256, %p257
    %p260 = scmp.ne.s32.totalorder %s245, %s259
    %p261 = scmp.eq.s32.totalorder %s36, 0
    %p262 = por %p260, %p261
    %s264 = sadd.s32 %s263, 1
    %p267 = scmp.eq.s32.totalorder %s30, 1
    %p268 = scmp.ne.s32.totalorder %s263, %s265
    %p269 = scmp.eq.s32.totalorder %s30, 0
    %p270 = por %p268, %p269
    %p271 = scmp.ne.s32.totalorder %s263, %s265
    %p272 = scmp.eq.s32.totalorder %s35, 1
    %p273 = por %p271, %p272
    %p274 = scmp.ne.s32.totalorder %s265, %s266
    %p275 = scmp.eq.s32.totalorder %s35, 0
    %p276 = por %p274, %p275
    %p277 = scmp.ne.s32.totalorder %s265, %s266
    %p278 = scmp.eq.s32.totalorder %s36, 1
    %p279 = por %p277, %p278
    %p281 = scmp.ne.s32.totalorder %s266, %s280
    %p282 = scmp.eq.s32.totalorder %s36, 0
    %p283 = por %p281, %p282
    %s285 = sadd.s32 %s284, 1
    %p288 = scmp.eq.s32.totalorder %s30, 1
    %p289 = scmp.ne.s32.totalorder %s284, %s286
    %p290 = scmp.eq.s32.totalorder %s30, 0
    %p291 = por %p289, %p290
    %p292 = scmp.ne.s32.totalorder %s284, %s286
    %p293 = scmp.eq.s32.totalorder %s35, 1
    %p294 = por %p292, %p293
    %p295 = scmp.ne.s32.totalorder %s286, %s287
    %p296 = scmp.eq.s32.totalorder %s35, 0
    %p297 = por %p295, %p296
    %p298 = scmp.ne.s32.totalorder %s286, %s287
    %p299 = scmp.eq.s32.totalorder %s36, 1
    %p300 = por %p298, %p299
    %p302 = scmp.ne.s32.totalorder %s287, %s301
    %p303 = scmp.eq.s32.totalorder %s36, 0
    %p304 = por %p302, %p303
    %s306 = sadd.s32 %s305, 1
    %p309 = scmp.eq.s32.totalorder %s30, 1
    %p310 = scmp.ne.s32.totalorder %s305, %s307
    %p311 = scmp.eq.s32.totalorder %s30, 0
    %p312 = por %p310, %p311
    %p313 = scmp.ne.s32.totalorder %s305, %s307
    %p314 = scmp.eq.s32.totalorder %s35, 1
    %p315 = por %p313, %p314
    %p316 = scmp.ne.s32.totalorder %s307, %s308
    %p317 = scmp.eq.s32.totalorder %s35, 0
    %p318 = por %p316, %p317
    %p319 = scmp.ne.s32.totalorder %s307, %s308
    %p320 = scmp.eq.s32.totalorder %s36, 1
    %p321 = por %p319, %p320
    %p323 = scmp.ne.s32.totalorder %s308, %s322
    %p324 = scmp.eq.s32.totalorder %s36, 0
    %p325 = por %p323, %p324
    %s327 = sadd.s32 %s326, 1
    %p330 = scmp.eq.s32.totalorder %s30, 1
    %p331 = scmp.ne.s32.totalorder %s326, %s328
    %p332 = scmp.eq.s32.totalorder %s30, 0
    %p333 = por %p331, %p332
    %p334 = scmp.ne.s32.totalorder %s326, %s328
    %p335 = scmp.eq.s32.totalorder %s35, 1
    %p336 = por %p334, %p335
    %p337 = scmp.ne.s32.totalorder %s328, %s329
    %p338 = scmp.eq.s32.totalorder %s35, 0
    %p339 = por %p337, %p338
    %p340 = scmp.ne.s32.totalorder %s328, %s329
    %p341 = scmp.eq.s32.totalorder %s36, 1
    %p342 = por %p340, %p341
    %p344 = scmp.ne.s32.totalorder %s329, %s343
    %p345 = scmp.eq.s32.totalorder %s36, 0
    %p346 = por %p344, %p345
    %s348 = sadd.s32 %s347, 1
    %p351 = scmp.eq.s32.totalorder %s30, 1
    %p352 = scmp.ne.s32.totalorder %s347, %s349
    %p353 = scmp.eq.s32.totalorder %s30, 0
    %p354 = por %p352, %p353
    %p355 = scmp.ne.s32.totalorder %s347, %s349
    %p356 = scmp.eq.s32.totalorder %s35, 1
    %p357 = por %p355, %p356
    %p358 = scmp.ne.s32.totalorder %s349, %s350
    %p359 = scmp.eq.s32.totalorder %s35, 0
    %p360 = por %p358, %p359
    %p361 = scmp.ne.s32.totalorder %s349, %s350
    %p362 = scmp.eq.s32.totalorder %s36, 1
    %p363 = por %p361, %p362
    %p365 = scmp.ne.s32.totalorder %s350, %s364
    %p366 = scmp.eq.s32.totalorder %s36, 0
    %p367 = por %p365, %p366
    %s369 = sadd.s32 %s368, 1
    %p372 = scmp.eq.s32.totalorder %s30, 1
    %p373 = scmp.ne.s32.totalorder %s368, %s370
    %p374 = scmp.eq.s32.totalorder %s30, 0
    %p375 = por %p373, %p374
    %p376 = scmp.ne.s32.totalorder %s368, %s370
    %p377 = scmp.eq.s32.totalorder %s35, 1
    %p378 = por %p376, %p377
    %p379 = scmp.ne.s32.totalorder %s370, %s371
    %p380 = scmp.eq.s32.totalorder %s35, 0
    %p381 = por %p379, %p380
    %p382 = scmp.ne.s32.totalorder %s370, %s371
    %p383 = scmp.eq.s32.totalorder %s36, 1
    %p384 = por %p382, %p383
    %p386 = scmp.ne.s32.totalorder %s371, %s385
    %p387 = scmp.eq.s32.totalorder %s36, 0
    %p388 = por %p386, %p387
    %s390 = sadd.s32 %s389, 1
    %p393 = scmp.eq.s32.totalorder %s30, 1
    %p394 = scmp.ne.s32.totalorder %s389, %s391
    %p395 = scmp.eq.s32.totalorder %s30, 0
    %p396 = por %p394, %p395
    %p397 = scmp.ne.s32.totalorder %s389, %s391
    %p398 = scmp.eq.s32.totalorder %s35, 1
    %p399 = por %p397, %p398
    %p400 = scmp.ne.s32.totalorder %s391, %s392
    %p401 = scmp.eq.s32.totalorder %s35, 0
    %p402 = por %p400, %p401
    %p403 = scmp.ne.s32.totalorder %s391, %s392
    %p404 = scmp.eq.s32.totalorder %s36, 1
    %p405 = por %p403, %p404
    %p407 = scmp.ne.s32.totalorder %s392, %s406
    %p408 = scmp.eq.s32.totalorder %s36, 0
    %p409 = por %p407, %p408
    %s411 = sadd.s32 %s410, 1
    %p414 = scmp.eq.s32.totalorder %s30, 1
    %p415 = scmp.ne.s32.totalorder %s410, %s412
    %p416 = scmp.eq.s32.totalorder %s30, 0
    %p417 = por %p415, %p416
    %p418 = scmp.ne.s32.totalorder %s410, %s412
    %p419 = scmp.eq.s32.totalorder %s35, 1
    %p420 = por %p418, %p419
    %p421 = scmp.ne.s32.totalorder %s412, %s413
    %p422 = scmp.eq.s32.totalorder %s35, 0
    %p423 = por %p421, %p422
    %p424 = scmp.ne.s32.totalorder %s412, %s413
    %p425 = scmp.eq.s32.totalorder %s36, 1
    %p426 = por %p424, %p425
    %p428 = scmp.ne.s32.totalorder %s413, %s427
    %p429 = scmp.eq.s32.totalorder %s36, 0
    %p430 = por %p428, %p429
    %s432 = sadd.s32 %s431, 1
    %p435 = scmp.eq.s32.totalorder %s30, 1
    %p436 = scmp.ne.s32.totalorder %s431, %s433
    %p437 = scmp.eq.s32.totalorder %s30, 0
    %p438 = por %p436, %p437
    %p439 = scmp.ne.s32.totalorder %s431, %s433
    %p440 = scmp.eq.s32.totalorder %s35, 1
    %p441 = por %p439, %p440
    %p442 = scmp.ne.s32.totalorder %s433, %s434
    %p443 = scmp.eq.s32.totalorder %s35, 0
    %p444 = por %p442, %p443
    %p445 = scmp.ne.s32.totalorder %s433, %s434
    %p446 = scmp.eq.s32.totalorder %s36, 1
    %p447 = por %p445, %p446
    %p449 = scmp.ne.s32.totalorder %s434, %s448
    %p450 = scmp.eq.s32.totalorder %s36, 0
    %p451 = por %p449, %p450
    %s453 = sadd.s32 %s452, 1
    %p456 = scmp.eq.s32.totalorder %s30, 1
    %p457 = scmp.ne.s32.totalorder %s452, %s454
    %p458 = scmp.eq.s32.totalorder %s30, 0
    %p459 = por %p457, %p458
    %p460 = scmp.ne.s32.totalorder %s452, %s454
    %p461 = scmp.eq.s32.totalorder %s35, 1
    %p462 = por %p460, %p461
    %p463 = scmp.ne.s32.totalorder %s454, %s455
    %p464 = scmp.eq.s32.totalorder %s35, 0
    %p465 = por %p463, %p464
    %p466 = scmp.ne.s32.totalorder %s454, %s455
    %p467 = scmp.eq.s32.totalorder %s36, 1
    %p468 = por %p466, %p467
    %p470 = scmp.ne.s32.totalorder %s455, %s469
    %p471 = scmp.eq.s32.totalorder %s36, 0
    %p472 = por %p470, %p471
    %s474 = sadd.s32 %s473, 1
    %p477 = scmp.eq.s32.totalorder %s30, 1
    %p478 = scmp.ne.s32.totalorder %s473, %s475
    %p479 = scmp.eq.s32.totalorder %s30, 0
    %p480 = por %p478, %p479
    %p481 = scmp.ne.s32.totalorder %s473, %s475
    %p482 = scmp.eq.s32.totalorder %s35, 1
    %p483 = por %p481, %p482
    %p484 = scmp.ne.s32.totalorder %s475, %s476
    %p485 = scmp.eq.s32.totalorder %s35, 0
    %p486 = por %p484, %p485
    %p487 = scmp.ne.s32.totalorder %s475, %s476
    %p488 = scmp.eq.s32.totalorder %s36, 1
    %p489 = por %p487, %p488
    %p491 = scmp.ne.s32.totalorder %s476, %s490
    %p492 = scmp.eq.s32.totalorder %s36, 0
    %p493 = por %p491, %p492
    %s494 = ssub.s32 %s30, %s37
    %p495 = scmp.eq.s32.totalorder %s494, 0
    %s497 = sadd.s32 %s496, 1
    %s498 = scalar_select %p495, %s496, %s497
    %p501 = pneg %p495
    %p502 = scmp.eq.s32.totalorder %s30, 1
    %p503 = por %p501, %p502
    %p504 = scmp.ne.s32.totalorder %s496, %s499
    %p505 = scmp.eq.s32.totalorder %s30, 0
    %p506 = por %p504, %p505
    %p507 = scmp.ne.s32.totalorder %s496, %s499
    %p508 = scmp.eq.s32.totalorder %s35, 1
    %p509 = por %p507, %p508
    %p510 = scmp.ne.s32.totalorder %s499, %s500
    %p511 = scmp.eq.s32.totalorder %s35, 0
    %p512 = por %p510, %p511
    %p513 = scmp.ne.s32.totalorder %s499, %s500
    %p514 = scmp.eq.s32.totalorder %s36, 1
    %p515 = por %p513, %p514
    %p517 = scmp.ne.s32.totalorder %s500, %s516
    %p518 = scmp.eq.s32.totalorder %s36, 0
    %p519 = por %p517, %p518
    %s520 = ssub.s32 %s30, %s37
    %p521 = scmp.eq.s32.totalorder %s520, 0
    %s523 = sadd.s32 %s522, 1
    %s524 = scalar_select %p521, %s522, %s523
    %p527 = pneg %p521
    %p528 = scmp.eq.s32.totalorder %s30, 1
    %p529 = por %p527, %p528
    %p530 = scmp.ne.s32.totalorder %s522, %s525
    %p531 = scmp.eq.s32.totalorder %s30, 0
    %p532 = por %p530, %p531
    %p533 = scmp.ne.s32.totalorder %s522, %s525
    %p534 = scmp.eq.s32.totalorder %s35, 1
    %p535 = por %p533, %p534
    %p536 = scmp.ne.s32.totalorder %s525, %s526
    %p537 = scmp.eq.s32.totalorder %s35, 0
    %p538 = por %p536, %p537
    %p539 = scmp.ne.s32.totalorder %s525, %s526
    %p540 = scmp.eq.s32.totalorder %s36, 1
    %p541 = por %p539, %p540
    %p543 = scmp.ne.s32.totalorder %s526, %s542
    %p544 = scmp.eq.s32.totalorder %s36, 0
    %p545 = por %p543, %p544
    %s546 = ssub.s32 %s30, %s37
    %p547 = scmp.eq.s32.totalorder %s546, 0
    %s549 = sadd.s32 %s548, 1
    %s550 = scalar_select %p547, %s548, %s549
    %p553 = pneg %p547
    %p554 = scmp.eq.s32.totalorder %s30, 1
    %p555 = por %p553, %p554
    %p556 = scmp.ne.s32.totalorder %s548, %s551
    %p557 = scmp.eq.s32.totalorder %s30, 0
    %p558 = por %p556, %p557
    %p559 = scmp.ne.s32.totalorder %s548, %s551
    %p560 = scmp.eq.s32.totalorder %s35, 1
    %p561 = por %p559, %p560
    %p562 = scmp.ne.s32.totalorder %s551, %s552
    %p563 = scmp.eq.s32.totalorder %s35, 0
    %p564 = por %p562, %p563
    %p565 = scmp.ne.s32.totalorder %s551, %s552
    %p566 = scmp.eq.s32.totalorder %s36, 1
    %p567 = por %p565, %p566
    %p569 = scmp.ne.s32.totalorder %s552, %s568
    %p570 = scmp.eq.s32.totalorder %s36, 0
    %p571 = por %p569, %p570
    %p572 = scmp.le.s32.totalorder 1, %s30
    %p573 = scmp.lt.s32.totalorder %s30, 3
    %p574 = pnand %p572, %p573
    %p575 = pneg %p574
    // Predicated region
    $region9: #{sx3hre_forward.1} parent=5 // pred_check
      _
    $region10: #{sx3hre_forward.1} parent=5 // pred_check_branch
      %577 = sbr.rel (%p574) target = $region12
    $region11: #{sx3hre_forward.1} parent=5 // pred_region
      %s578 = ssub.s32 %s30, 1
      // Predicated region
      $region13: #{sx3hre_forward.1} parent=11 // pred_check
        %p579 = pneg %p129
      $region14: #{sx3hre_forward.1} parent=11 // pred_check_branch
        %581 = sbr.rel (%p579) target = $region16
      $region15: #{sx3hre_forward.1} parent=11 // pred_region
        _
      $region16: #{sx3hre_forward.1} parent=11 // pred_fallthru
        _
      // Predicated region
      $region17: #{sx3hre_forward.1} parent=11 // pred_check
        %p582 = pneg %p150
      $region18: #{sx3hre_forward.1} parent=11 // pred_check_branch
        %584 = sbr.rel (%p582) target = $region20
      $region19: #{sx3hre_forward.1} parent=11 // pred_region
        _
      $region20: #{sx3hre_forward.1} parent=11 // pred_fallthru
        _
      // Predicated region
      $region21: #{sx3hre_forward.1} parent=11 // pred_check
        %p585 = pneg %p171
      $region22: #{sx3hre_forward.1} parent=11 // pred_check_branch
        %587 = sbr.rel (%p585) target = $region24
      $region23: #{sx3hre_forward.1} parent=11 // pred_region
        _
      $region24: #{sx3hre_forward.1} parent=11 // pred_fallthru
        _
      // Predicated region
      $region25: #{sx3hre_forward.1} parent=11 // pred_check
        %p588 = pneg %p192
      $region26: #{sx3hre_forward.1} parent=11 // pred_check_branch
        %590 = sbr.rel (%p588) target = $region28
      $region27: #{sx3hre_forward.1} parent=11 // pred_region
        _
      $region28: #{sx3hre_forward.1} parent=11 // pred_fallthru
        _
      // Predicated region
      $region29: #{sx3hre_forward.1} parent=11 // pred_check
        %p591 = pneg %p213
      $region30: #{sx3hre_forward.1} parent=11 // pred_check_branch
        %593 = sbr.rel (%p591) target = $region32
      $region31: #{sx3hre_forward.1} parent=11 // pred_region
        _
      $region32: #{sx3hre_forward.1} parent=11 // pred_fallthru
        _
      // Predicated region
      $region33: #{sx3hre_forward.1} parent=11 // pred_check
        %p594 = pneg %p234
      $region34: #{sx3hre_forward.1} parent=11 // pred_check_branch
        %596 = sbr.rel (%p594) target = $region36
      $region35: #{sx3hre_forward.1} parent=11 // pred_region
        _
      $region36: #{sx3hre_forward.1} parent=11 // pred_fallthru
        _
      // Predicated region
      $region37: #{sx3hre_forward.1} parent=11 // pred_check
        %p597 = pneg %p255
      $region38: #{sx3hre_forward.1} parent=11 // pred_check_branch
        %599 = sbr.rel (%p597) target = $region40
      $region39: #{sx3hre_forward.1} parent=11 // pred_region
        _
      $region40: #{sx3hre_forward.1} parent=11 // pred_fallthru
        _
      // Predicated region
      $region41: #{sx3hre_forward.1} parent=11 // pred_check
        %p600 = pneg %p276
      $region42: #{sx3hre_forward.1} parent=11 // pred_check_branch
        %602 = sbr.rel (%p600) target = $region44
      $region43: #{sx3hre_forward.1} parent=11 // pred_region
        _
      $region44: #{sx3hre_forward.1} parent=11 // pred_fallthru
        _
      // Predicated region
      $region45: #{sx3hre_forward.1} parent=11 // pred_check
        %p603 = pneg %p297
      $region46: #{sx3hre_forward.1} parent=11 // pred_check_branch
        %605 = sbr.rel (%p603) target = $region48
      $region47: #{sx3hre_forward.1} parent=11 // pred_region
        _
      $region48: #{sx3hre_forward.1} parent=11 // pred_fallthru
        _
      // Predicated region
      $region49: #{sx3hre_forward.1} parent=11 // pred_check
        %p606 = pneg %p318
      $region50: #{sx3hre_forward.1} parent=11 // pred_check_branch
        %608 = sbr.rel (%p606) target = $region52
      $region51: #{sx3hre_forward.1} parent=11 // pred_region
        _
      $region52: #{sx3hre_forward.1} parent=11 // pred_fallthru
        _
      // Predicated region
      $region53: #{sx3hre_forward.1} parent=11 // pred_check
        %p609 = pneg %p339
      $region54: #{sx3hre_forward.1} parent=11 // pred_check_branch
        %611 = sbr.rel (%p609) target = $region56
      $region55: #{sx3hre_forward.1} parent=11 // pred_region
        _
      $region56: #{sx3hre_forward.1} parent=11 // pred_fallthru
        _
      // Predicated region
      $region57: #{sx3hre_forward.1} parent=11 // pred_check
        %p612 = pneg %p360
      $region58: #{sx3hre_forward.1} parent=11 // pred_check_branch
        %614 = sbr.rel (%p612) target = $region60
      $region59: #{sx3hre_forward.1} parent=11 // pred_region
        _
      $region60: #{sx3hre_forward.1} parent=11 // pred_fallthru
        _
      // Predicated region
      $region61: #{sx3hre_forward.1} parent=11 // pred_check
        %p615 = pneg %p381
      $region62: #{sx3hre_forward.1} parent=11 // pred_check_branch
        %617 = sbr.rel (%p615) target = $region64
      $region63: #{sx3hre_forward.1} parent=11 // pred_region
        _
      $region64: #{sx3hre_forward.1} parent=11 // pred_fallthru
        _
      // Predicated region
      $region65: #{sx3hre_forward.1} parent=11 // pred_check
        %p618 = pneg %p402
      $region66: #{sx3hre_forward.1} parent=11 // pred_check_branch
        %620 = sbr.rel (%p618) target = $region68
      $region67: #{sx3hre_forward.1} parent=11 // pred_region
        _
      $region68: #{sx3hre_forward.1} parent=11 // pred_fallthru
        _
      // Predicated region
      $region69: #{sx3hre_forward.1} parent=11 // pred_check
        %p621 = pneg %p423
      $region70: #{sx3hre_forward.1} parent=11 // pred_check_branch
        %623 = sbr.rel (%p621) target = $region72
      $region71: #{sx3hre_forward.1} parent=11 // pred_region
        _
      $region72: #{sx3hre_forward.1} parent=11 // pred_fallthru
        _
      // Predicated region
      $region73: #{sx3hre_forward.1} parent=11 // pred_check
        %p624 = pneg %p444
      $region74: #{sx3hre_forward.1} parent=11 // pred_check_branch
        %626 = sbr.rel (%p624) target = $region76
      $region75: #{sx3hre_forward.1} parent=11 // pred_region
        _
      $region76: #{sx3hre_forward.1} parent=11 // pred_fallthru
        _
      // Predicated region
      $region77: #{sx3hre_forward.1} parent=11 // pred_check
        %p627 = pneg %p465
      $region78: #{sx3hre_forward.1} parent=11 // pred_check_branch
        %629 = sbr.rel (%p627) target = $region80
      $region79: #{sx3hre_forward.1} parent=11 // pred_region
        _
      $region80: #{sx3hre_forward.1} parent=11 // pred_fallthru
        _
      // Predicated region
      $region81: #{sx3hre_forward.1} parent=11 // pred_check
        %p630 = pneg %p486
      $region82: #{sx3hre_forward.1} parent=11 // pred_check_branch
        %632 = sbr.rel (%p630) target = $region84
      $region83: #{sx3hre_forward.1} parent=11 // pred_region
        _
      $region84: #{sx3hre_forward.1} parent=11 // pred_fallthru
        _
    $region12: #{sx3hre_forward.1} parent=5 // pred_fallthru
      _
    %p633 = scmp.lt.s32.totalorder %s30, 2
    // Predicated region
    $region85: #{sx3hre_forward.1} parent=5 // pred_check
      %p634 = pneg %p633
    $region86: #{sx3hre_forward.1} parent=5 // pred_check_branch
      %636 = sbr.rel (%p634) target = $region88
    $region87: #{sx3hre_forward.1} parent=5 // pred_region
      // Predicated region
      $region89: #{sx3hre_forward.1} parent=87 // pred_check
        %p637 = pneg %p50
      $region90: #{sx3hre_forward.1} parent=87 // pred_check_branch
        %639 = sbr.rel (%p637) target = $region92
      $region91: #{sx3hre_forward.1} parent=87 // pred_region
        %s640 = smul.u32 2, %s30
        %p641 = scmp.lt.s32.totalorder %s640, 3
        %s642 = scalar_select %p641, %s640, 3
        %s643 = smul.addr %s642, 4
        %s644 = scalar_lea.vmem %s0, %s643
        %s645 = smul.u32 2, %s30
      $region92: #{sx3hre_forward.1} parent=87 // pred_fallthru
        _
      // Predicated region
      $region93: #{sx3hre_forward.1} parent=87 // pred_check
        %p646 = pneg %p76
      $region94: #{sx3hre_forward.1} parent=87 // pred_check_branch
        %648 = sbr.rel (%p646) target = $region96
      $region95: #{sx3hre_forward.1} parent=87 // pred_region
        %s649 = smul.u32 2, %s30
        %p650 = scmp.lt.s32.totalorder %s649, 3
        %s651 = scalar_select %p650, %s649, 3
        %s652 = scalar_lea.vmem %s1, %s651
        %s653 = smul.u32 2, %s30
      $region96: #{sx3hre_forward.1} parent=87 // pred_fallthru
        _
      // Predicated region
      $region97: #{sx3hre_forward.1} parent=87 // pred_check
        %p654 = pneg %p102
      $region98: #{sx3hre_forward.1} parent=87 // pred_check_branch
        %656 = sbr.rel (%p654) target = $region100
      $region99: #{sx3hre_forward.1} parent=87 // pred_region
        %s657 = smul.u32 2, %s30
        %p658 = scmp.lt.s32.totalorder %s657, 3
        %s659 = scalar_select %p658, %s657, 3
        %s660 = scalar_lea.vmem %s2, %s659
        %s661 = smul.u32 2, %s30
      $region100: #{sx3hre_forward.1} parent=87 // pred_fallthru
        _
    $region88: #{sx3hre_forward.1} parent=5 // pred_fallthru
      _
    %p662 = scmp.le.s32.totalorder 1, %s30
    %p663 = scmp.lt.s32.totalorder %s30, 3
    %p664 = pnand %p662, %p663
    %p665 = pneg %p664
    // Predicated region
    $region101: #{sx3hre_forward.1} parent=5 // pred_check
      _
    $region102: #{sx3hre_forward.1} parent=5 // pred_check_branch
      %667 = sbr.rel (%p664) target = $region104
    $region103: #{sx3hre_forward.1} parent=5 // pred_region
      %s668 = ssub.s32 %s30, 1
      %s669 = smul.u32 2, %s35
      %p670 = scmp.lt.s32.totalorder %s669, 3
      %s671 = scalar_select %p670, %s669, 3
      %s672 = smul.addr %s671, 4
      %s673 = scalar_lea.vmem %s0, %s672
      %p674 = pneg %p56
      %p675 = pneg %p53
      %s676 = smul.u32 2, %s35
      %p677 = scmp.lt.s32.totalorder %s676, 3
      %s678 = scalar_select %p677, %s676, 3
      %s679 = scalar_lea.vmem %s1, %s678
      %p680 = pneg %p82
      %p681 = pneg %p79
      %s682 = smul.u32 2, %s35
      %p683 = scmp.lt.s32.totalorder %s682, 3
      %s684 = scalar_select %p683, %s682, 3
      %s685 = scalar_lea.vmem %s2, %s684
      %p686 = pneg %p108
      %p687 = pneg %p105
      %p688 = pneg %p129
      %p689 = pneg %p126
      %p690 = pneg %p150
      %p691 = pneg %p147
      %p692 = pneg %p171
      %p693 = pneg %p168
      %p694 = pneg %p192
      %p695 = pneg %p189
      %p696 = pneg %p213
      %p697 = pneg %p210
      %p698 = pneg %p234
      %p699 = pneg %p231
      %p700 = pneg %p255
      %p701 = pneg %p252
      %p702 = pneg %p276
      %p703 = pneg %p273
      %p704 = pneg %p297
      %p705 = pneg %p294
      %p706 = pneg %p318
      %p707 = pneg %p315
      %p708 = pneg %p339
      %p709 = pneg %p336
      %p710 = pneg %p360
      %p711 = pneg %p357
      %p712 = pneg %p381
      %p713 = pneg %p378
      %p714 = pneg %p402
      %p715 = pneg %p399
      %p716 = pneg %p423
      %p717 = pneg %p420
      %p718 = pneg %p444
      %p719 = pneg %p441
      %p720 = pneg %p465
      %p721 = pneg %p462
      %p722 = pneg %p486
      %p723 = pneg %p483
      %p724 = pneg %p512
      %p725 = pneg %p509
      %s726 = smul.u32 2, %s35
      %p727 = scmp.lt.s32.totalorder %s726, 3
      %s728 = scalar_select %p727, %s726, 3
      %s729 = scalar_lea.vmem %s21, %s728
      %p730 = pneg %p538
      %p731 = pneg %p535
      %s732 = smul.u32 2, %s35
      %p733 = scmp.lt.s32.totalorder %s732, 3
      %s734 = scalar_select %p733, %s732, 3
      %s735 = scalar_lea.vmem %s22, %s734
      %p736 = pneg %p564
      %p737 = pneg %p561
      %s738 = smul.u32 2, %s35
      %p739 = scmp.lt.s32.totalorder %s738, 3
      %s740 = scalar_select %p739, %s738, 3
      %s741 = scalar_lea.vmem %s23, %s740
      %s742 = smul.u32 2, %s35
      %p743 = scmp.lt.s32.totalorder %s742, 3
      %s744 = scalar_select %p743, %s742, 3
      %s745 = smul.addr %s744, 4
      %s746 = scalar_lea.vmem %s0, %s745
      %s747 = smul.u32 2, %s35
      %s748 = smul.u32 2, %s35
      %p749 = scmp.lt.s32.totalorder %s748, 3
      %s750 = scalar_select %p749, %s748, 3
      %s751 = scalar_lea.vmem %s1, %s750
      %s752 = smul.u32 2, %s35
      %s753 = smul.u32 2, %s35
      %p754 = scmp.lt.s32.totalorder %s753, 3
      %s755 = scalar_select %p754, %s753, 3
      %s756 = scalar_lea.vmem %s2, %s755
      %s757 = smul.u32 2, %s35
      %s758 = smul.u32 2, %s35
      %p759 = scmp.lt.s32.totalorder %s758, 3
      %s760 = scalar_select %p759, %s758, 3
      %s761 = scalar_lea.vmem %s21, %s760
      %s762 = smul.u32 2, %s35
      %s763 = smul.u32 2, %s35
      %p764 = scmp.lt.s32.totalorder %s763, 3
      %s765 = scalar_select %p764, %s763, 3
      %s766 = scalar_lea.vmem %s22, %s765
      %s767 = smul.u32 2, %s35
      %s768 = smul.u32 2, %s35
      %p769 = scmp.lt.s32.totalorder %s768, 3
      %s770 = scalar_select %p769, %s768, 3
      %s771 = scalar_lea.vmem %s23, %s770
      %s772 = smul.u32 2, %s35
      %v774 = vld [vmem:[%s746] sm:$0xf]
      %v775 = vld [vmem:[%s746 + $0x4] sm:$0xf]
      %v776 = vunpack.c.l.bf16 %v774
      %v777 = vunpack.c.l.bf16 %v775
      %v778 = vld [vmem:[%s756] sm:$0x1]
      %v779 = vld [vmem:[%s756 + $0x1] sm:$0x1]
      %v782 = vlaneseq
      %v783 = vshrl.u32 %v782, 7
      %v784 = vsub.s32 0, %v783
      %v785 = vrot.slane %v778, %v784
      %v786 = vlaneseq
      %v787 = vshrl.u32 %v786, 7
      %v788 = vsub.s32 0, %v787
      %v789 = vrot.slane %v779, %v788
      %v792 = vadd.f32 %v776, %v785
      %v793 = vadd.f32 %v777, %v789
      %v794 = vld [vmem:[%s751] sm:$0x1]
      %v795 = vld [vmem:[%s751 + $0x1] sm:$0x1]
      %v796 = vmul.f32 %v794, -1e+09
      %v797 = vmul.f32 %v795, -1e+09
      %v798 = vld [vmem:[%s3] sm:$0x1]
      %v799 = vld [vmem:[%s4] sm:$0x1]
      %vm800 = vcmask 261120
      %v801 = vsel %vm800, %v792, 0.0
      %802 = vadd.xlane.f32.xlu0 %v801
      %v803 = vpop.xlane.xlu0 %802
      %v804 = vsel %vm800, %v793, 0.0
      %805 = vadd.xlane.f32.xlu0 %v804
      %v806 = vpop.xlane.xlu0 %805
      %v807 = vrcp.pop 32.0
      %v808 = vmul.f32 %v803, %v807
      %v809 = vmul.f32 %v806, %v807
      %v810 = vsub.f32 %v792, %v808
      %v811 = vsub.f32 %v793, %v809
      %v812 = vmul.f32 %v810, %v810
      %v813 = vmul.f32 %v811, %v811
      %v814 = vsel %vm800, %v812, 0.0
      %815 = vadd.xlane.f32.xlu0 %v814
      %v816 = vpop.xlane.xlu0 %815
      %v817 = vsel %vm800, %v813, 0.0
      %818 = vadd.xlane.f32.xlu0 %v817
      %v819 = vpop.xlane.xlu0 %818
      %v820 = vmul.f32 %v816, %v807
      %v821 = vmul.f32 %v819, %v807
      %v822 = vadd.f32 %v820, 1e-06
      %v823 = vadd.f32 %v821, 1e-06
      %v824 = vrsqrt.pop %v822
      %v825 = vrsqrt.pop %v823
      %v826 = vmul.f32 %v810, %v824
      %v827 = vmul.f32 %v811, %v825
      %v829 = vlaneseq
      %v830 = vshrl.u32 %v829, 7
      %v831 = vsub.s32 0, %v830
      %v832 = vrot.slane %v798, %v831
      %v834 = vmul.f32 %v826, %v832
      %v835 = vmul.f32 %v827, %v832
      %v837 = vlaneseq
      %v838 = vshrl.u32 %v837, 7
      %v839 = vsub.s32 0, %v838
      %v840 = vrot.slane %v799, %v839
      %v842 = vadd.f32 %v834, %v840
      %v843 = vadd.f32 %v835, %v840
      %v844 = vpack.c.bf16 %v843, %v842
      %v845 = vld [vmem:[%s5] sm:$0xf]
      %v846 = vld [vmem:[%s5 + $0x4] sm:$0xf]
      %v847 = vld [vmem:[%s5 + $0x8] sm:$0xf]
      %v848 = vld [vmem:[%s5 + $0xc] sm:$0xf]
      %v849 = vld [vmem:[%s6] sm:$0x1]
      %v851 = vlaneseq
      %v852 = vshrl.u32 %v851, 7
      %v853 = vsub.s32 0, %v852
      %v854 = vrot.slane %v849, %v853
      %v860 = vunpack.c.l.b16 %v845
      %v861 = vunpack.c.l.b16 %v846
      %v862 = vunpack.c.l.b16 %v847
      %v863 = vunpack.c.l.b16 %v848
      %v864 = vpack.c.b16 %v861, %v860
      %v865 = vpack.c.b16 %v863, %v862
      %v869 = vsel %vm800, %v844, 0
      %871 = vmatprep.subr.bf16.mxu0 0
      %872 = vmatpush1.bf16.msra.mxu0 0
      %873 = vmatprep.subr.bf16.mxu0 0
      %874 = vmatpush1.bf16.msra.mxu0 0
      %875 = vmatprep.subr.bf16.mxu0 0
      %876 = vmatpush1.bf16.msra.mxu0 0
      %877 = vmatprep.subr.bf16.mxu0 0
      %878 = vmatpush1.bf16.msra.mxu0 0
      %879 = vmatprep.subr.bf16.mxu0 0
      %880 = vmatpush1.bf16.msra.mxu0 0
      %881 = vmatprep.subr.bf16.mxu0 0
      %882 = vmatpush1.bf16.msra.mxu0 0
      %883 = vmatprep.subr.bf16.mxu0 0
      %884 = vmatpush1.bf16.msra.mxu0 %v865
      %885 = vmatprep.subr.bf16.mxu0 0
      %886 = vmatpush1.bf16.msra.mxu0 %v864
      %887 = vmatprep.subr.bf16.mxu0 0
      %888 = vmatpush2.bf16.msra.mxu0 0
      %889 = vmatprep.subr.bf16.mxu0 0
      %890 = vmatpush2.bf16.msra.mxu0 0
      %891 = vmatprep.subr.bf16.mxu0 0
      %892 = vmatpush2.bf16.msra.mxu0 0
      %893 = vmatprep.subr.bf16.mxu0 0
      %894 = vmatpush2.bf16.msra.mxu0 0
      %895 = vmatprep.subr.bf16.mxu0 0
      %896 = vmatpush2.bf16.msra.mxu0 0
      %897 = vmatprep.subr.bf16.mxu0 0
      %898 = vmatpush2.bf16.msra.mxu0 0
      %899 = vmatprep.subr.bf16.mxu0 0
      %900 = vmatpush2.bf16.msra.mxu0 0
      %901 = vmatprep.subr.bf16.mxu0 0
      %902 = vmatpush2.bf16.msra.mxu0 0
      %903 = vmatprep.mubr.bf16.mxu0 0
      %904 = vmatmul.mubr.bf16.gmra.mxu0 %v869
      %v905 = vpop.f32.mrf.mxu0
      %v906 = vadd.f32 %v854, %v905
      %v907 = vpop.f32.mrf.mxu0
      %v908 = vpop.f32.mrf.mxu0
      %v909 = vadd.f32 %v854, %v908
      %v910 = vpop.f32.mrf.mxu0
      %911 = vdwg.mxu0
      %v912 = vmul.f32 %v906, 0.35355338
      %v913 = vmul.f32 %v909, 0.35355338
      %v914 = vpack.c.bf16 %v913, %v912
      %916 = vrot.lane.b32.xlu0 %v914, 120
      %v917 = vpop.permute.xlu0 %916
      %918 = vrot.lane.b32.xlu0 %v914, 112
      %v919 = vpop.permute.xlu0 %918
      %920 = vrot.lane.b32.xlu0 %v914, 104
      %v921 = vpop.permute.xlu0 %920
      %v924 = vpack.i.b16 %v917, %v914
      %v926 = vshrl.u32 %v914, 16
      %v927 = vshrl.u32 %v917, 16
      %v928 = vpack.i.b16 %v927, %v926
      %v932 = vpack.i.b16 %v921, %v919
      %v934 = vshrl.u32 %v919, 16
      %v935 = vshrl.u32 %v921, 16
      %v936 = vpack.i.b16 %v935, %v934
      %v939 = vpack.i.b16 0, 0
      %v941 = vshrl.u32 0, 16
      %v942 = vpack.i.b16 %v941, %v941
      %v944 = vcombine.high %v924, %v939
      %v946 = vunpack.c.l.s4 1983009808
      %v947 = vunpack.c.0.s8 %v946
      %v948 = vlaneseq
      %v949 = vshrl.u32 %v948, 7
      %v950 = vsub.s32 %v947, %v949
      %v951 = vrot.slane %v924, %v950
      %v953 = vunpack.c.l.s4 1983009808
      %v954 = vunpack.c.0.s8 %v953
      %v955 = vlaneseq
      %v956 = vshrl.u32 %v955, 7
      %v957 = vsub.s32 %v954, %v956
      %v958 = vrot.slane %v944, %v957
      %v959 = vcombine.high %v932, %v939
      %v961 = vunpack.c.l.s4 1983009808
      %v962 = vunpack.c.0.s8 %v961
      %v963 = vlaneseq
      %v964 = vshrl.u32 %v963, 7
      %v965 = vsub.s32 %v962, %v964
      %v966 = vrot.slane %v932, %v965
      %v968 = vunpack.c.l.s4 1983009808
      %v969 = vunpack.c.0.s8 %v968
      %v970 = vlaneseq
      %v971 = vshrl.u32 %v970, 7
      %v972 = vsub.s32 %v969, %v971
      %v973 = vrot.slane %v959, %v972
      %v974 = vcombine.low %v951, %v966
      %v975 = vcombine.high %v951, %v966
      %v977 = vunpack.c.l.s4 1934713408
      %v978 = vunpack.c.0.s8 %v977
      %v979 = vlaneseq
      %v980 = vshrl.u32 %v979, 7
      %v981 = vsub.s32 %v978, %v980
      %v982 = vrot.slane %v974, %v981
      %v984 = vunpack.c.l.s4 1934713408
      %v985 = vunpack.c.0.s8 %v984
      %v986 = vlaneseq
      %v987 = vshrl.u32 %v986, 7
      %v988 = vsub.s32 %v985, %v987
      %v989 = vrot.slane %v975, %v988
      %v990 = vcombine.low %v958, %v973
      %v991 = vcombine.high %v958, %v973
      %v993 = vunpack.c.l.s4 1934713408
      %v994 = vunpack.c.0.s8 %v993
      %v995 = vlaneseq
      %v996 = vshrl.u32 %v995, 7
      %v997 = vsub.s32 %v994, %v996
      %v998 = vrot.slane %v990, %v997
      %v1000 = vunpack.c.l.s4 1934713408
      %v1001 = vunpack.c.0.s8 %v1000
      %v1002 = vlaneseq
      %v1003 = vshrl.u32 %v1002, 7
      %v1004 = vsub.s32 %v1001, %v1003
      %v1005 = vrot.slane %v991, %v1004
      %v1006 = vcombine.high %v982, 0
      %v1007 = vcombine.high %v989, 0
      %v1008 = vcombine.high %v998, 0
      %v1009 = vcombine.high %v1005, 0
      %v1010 = vcombine.high %v928, %v942
      %v1012 = vunpack.c.l.s4 1983009808
      %v1013 = vunpack.c.0.s8 %v1012
      %v1014 = vlaneseq
      %v1015 = vshrl.u32 %v1014, 7
      %v1016 = vsub.s32 %v1013, %v1015
      %v1017 = vrot.slane %v928, %v1016
      %v1019 = vunpack.c.l.s4 1983009808
      %v1020 = vunpack.c.0.s8 %v1019
      %v1021 = vlaneseq
      %v1022 = vshrl.u32 %v1021, 7
      %v1023 = vsub.s32 %v1020, %v1022
      %v1024 = vrot.slane %v1010, %v1023
      %v1025 = vcombine.high %v936, %v942
      %v1027 = vunpack.c.l.s4 1983009808
      %v1028 = vunpack.c.0.s8 %v1027
      %v1029 = vlaneseq
      %v1030 = vshrl.u32 %v1029, 7
      %v1031 = vsub.s32 %v1028, %v1030
      %v1032 = vrot.slane %v936, %v1031
      %v1034 = vunpack.c.l.s4 1983009808
      %v1035 = vunpack.c.0.s8 %v1034
      %v1036 = vlaneseq
      %v1037 = vshrl.u32 %v1036, 7
      %v1038 = vsub.s32 %v1035, %v1037
      %v1039 = vrot.slane %v1025, %v1038
      %v1040 = vcombine.low %v1017, %v1032
      %v1041 = vcombine.high %v1017, %v1032
      %v1043 = vunpack.c.l.s4 1934713408
      %v1044 = vunpack.c.0.s8 %v1043
      %v1045 = vlaneseq
      %v1046 = vshrl.u32 %v1045, 7
      %v1047 = vsub.s32 %v1044, %v1046
      %v1048 = vrot.slane %v1040, %v1047
      %v1050 = vunpack.c.l.s4 1934713408
      %v1051 = vunpack.c.0.s8 %v1050
      %v1052 = vlaneseq
      %v1053 = vshrl.u32 %v1052, 7
      %v1054 = vsub.s32 %v1051, %v1053
      %v1055 = vrot.slane %v1041, %v1054
      %v1056 = vcombine.low %v1024, %v1039
      %v1057 = vcombine.high %v1024, %v1039
      %v1059 = vunpack.c.l.s4 1934713408
      %v1060 = vunpack.c.0.s8 %v1059
      %v1061 = vlaneseq
      %v1062 = vshrl.u32 %v1061, 7
      %v1063 = vsub.s32 %v1060, %v1062
      %v1064 = vrot.slane %v1056, %v1063
      %v1066 = vunpack.c.l.s4 1934713408
      %v1067 = vunpack.c.0.s8 %v1066
      %v1068 = vlaneseq
      %v1069 = vshrl.u32 %v1068, 7
      %v1070 = vsub.s32 %v1067, %v1069
      %v1071 = vrot.slane %v1057, %v1070
      %v1072 = vcombine.high %v1048, 0
      %v1073 = vcombine.high %v1055, 0
      %v1074 = vcombine.high %v1064, 0
      %v1075 = vcombine.high %v1071, 0
      %v1076 = vcombine.low %v982, %v989
      %v1078 = vunpack.c.l.s4 1983009808
      %v1079 = vunpack.c.0.s8 %v1078
      %v1080 = vlaneseq
      %v1081 = vshrl.u32 %v1080, 7
      %v1082 = vsub.s32 %v1079, %v1081
      %v1083 = vrot.slane %v1076, %v1082
      %v1084 = vcombine.low %v1006, %v1007
      %v1086 = vunpack.c.l.s4 1983009808
      %v1087 = vunpack.c.0.s8 %v1086
      %v1088 = vlaneseq
      %v1089 = vshrl.u32 %v1088, 7
      %v1090 = vsub.s32 %v1087, %v1089
      %v1091 = vrot.slane %v1084, %v1090
      %v1092 = vcombine.low %v1083, %v1091
      %v1094 = vunpack.c.l.s4 1934713408
      %v1095 = vunpack.c.0.s8 %v1094
      %v1096 = vlaneseq
      %v1097 = vshrl.u32 %v1096, 7
      %v1098 = vsub.s32 %v1095, %v1097
      %v1099 = vrot.slane %v1092, %v1098
      %v1100 = vcombine.high %v1099, 0
      %v1101 = vcombine.low %v1048, %v1055
      %v1103 = vunpack.c.l.s4 1983009808
      %v1104 = vunpack.c.0.s8 %v1103
      %v1105 = vlaneseq
      %v1106 = vshrl.u32 %v1105, 7
      %v1107 = vsub.s32 %v1104, %v1106
      %v1108 = vrot.slane %v1101, %v1107
      %v1109 = vcombine.low %v1072, %v1073
      %v1111 = vunpack.c.l.s4 1983009808
      %v1112 = vunpack.c.0.s8 %v1111
      %v1113 = vlaneseq
      %v1114 = vshrl.u32 %v1113, 7
      %v1115 = vsub.s32 %v1112, %v1114
      %v1116 = vrot.slane %v1109, %v1115
      %v1117 = vcombine.low %v1108, %v1116
      %v1119 = vunpack.c.l.s4 1934713408
      %v1120 = vunpack.c.0.s8 %v1119
      %v1121 = vlaneseq
      %v1122 = vshrl.u32 %v1121, 7
      %v1123 = vsub.s32 %v1120, %v1122
      %v1124 = vrot.slane %v1117, %v1123
      %v1125 = vcombine.high %v1124, 0
      %v1126 = vcombine.low %v998, %v1005
      %v1128 = vunpack.c.l.s4 1983009808
      %v1129 = vunpack.c.0.s8 %v1128
      %v1130 = vlaneseq
      %v1131 = vshrl.u32 %v1130, 7
      %v1132 = vsub.s32 %v1129, %v1131
      %v1133 = vrot.slane %v1126, %v1132
      %v1134 = vcombine.low %v1008, %v1009
      %v1136 = vunpack.c.l.s4 1983009808
      %v1137 = vunpack.c.0.s8 %v1136
      %v1138 = vlaneseq
      %v1139 = vshrl.u32 %v1138, 7
      %v1140 = vsub.s32 %v1137, %v1139
      %v1141 = vrot.slane %v1134, %v1140
      %v1142 = vcombine.low %v1133, %v1141
      %v1144 = vunpack.c.l.s4 1934713408
      %v1145 = vunpack.c.0.s8 %v1144
      %v1146 = vlaneseq
      %v1147 = vshrl.u32 %v1146, 7
      %v1148 = vsub.s32 %v1145, %v1147
      %v1149 = vrot.slane %v1142, %v1148
      %v1150 = vcombine.high %v1149, 0
      %v1151 = vcombine.low %v1064, %v1071
      %v1153 = vunpack.c.l.s4 1983009808
      %v1154 = vunpack.c.0.s8 %v1153
      %v1155 = vlaneseq
      %v1156 = vshrl.u32 %v1155, 7
      %v1157 = vsub.s32 %v1154, %v1156
      %v1158 = vrot.slane %v1151, %v1157
      %v1159 = vcombine.low %v1074, %v1075
      %v1161 = vunpack.c.l.s4 1983009808
      %v1162 = vunpack.c.0.s8 %v1161
      %v1163 = vlaneseq
      %v1164 = vshrl.u32 %v1163, 7
      %v1165 = vsub.s32 %v1162, %v1164
      %v1166 = vrot.slane %v1159, %v1165
      %v1167 = vcombine.low %v1158, %v1166
      %v1169 = vunpack.c.l.s4 1934713408
      %v1170 = vunpack.c.0.s8 %v1169
      %v1171 = vlaneseq
      %v1172 = vshrl.u32 %v1171, 7
      %v1173 = vsub.s32 %v1170, %v1172
      %v1174 = vrot.slane %v1167, %v1173
      %v1175 = vcombine.high %v1174, 0
      %v1178 = vpack.i.b16 %v1124, %v1099
      %v1179 = vshrl.u32 %v1099, 16
      %v1180 = vshrl.u32 %v1124, 16
      %v1181 = vpack.i.b16 %v1180, %v1179
      %v1184 = vpack.i.b16 %v1125, %v1100
      %v1185 = vshrl.u32 %v1100, 16
      %v1186 = vshrl.u32 %v1125, 16
      %v1187 = vpack.i.b16 %v1186, %v1185
      %v1190 = vpack.i.b16 %v1174, %v1149
      %v1191 = vshrl.u32 %v1149, 16
      %v1192 = vshrl.u32 %v1174, 16
      %v1193 = vpack.i.b16 %v1192, %v1191
      %v1196 = vpack.i.b16 %v1175, %v1150
      %v1197 = vshrl.u32 %v1150, 16
      %v1198 = vshrl.u32 %v1175, 16
      %v1199 = vpack.i.b16 %v1198, %v1197
      %v1200 = vpack.c.bf16 %v909, %v906
      %1202 = vrot.lane.b32.xlu0 %v1200, 120
      %v1203 = vpop.permute.xlu0 %1202
      %1204 = vrot.lane.b32.xlu0 %v1200, 112
      %v1205 = vpop.permute.xlu0 %1204
      %1206 = vrot.lane.b32.xlu0 %v1200, 104
      %v1207 = vpop.permute.xlu0 %1206
      %1208 = vrot.lane.b32.xlu0 %v1200, 96
      %v1209 = vpop.permute.xlu0 %1208
      %1210 = vrot.lane.b32.xlu0 %v1203, 96
      %v1211 = vpop.permute.xlu0 %1210
      %1212 = vrot.lane.b32.xlu0 %v1205, 96
      %v1213 = vpop.permute.xlu0 %1212
      %1214 = vrot.lane.b32.xlu0 %v1207, 96
      %v1215 = vpop.permute.xlu0 %1214
      %v1218 = vpack.i.b16 %v1211, %v1209
      %v1220 = vshrl.u32 %v1209, 16
      %v1221 = vshrl.u32 %v1211, 16
      %v1222 = vpack.i.b16 %v1221, %v1220
      %v1226 = vpack.i.b16 %v1215, %v1213
      %v1228 = vshrl.u32 %v1213, 16
      %v1229 = vshrl.u32 %v1215, 16
      %v1230 = vpack.i.b16 %v1229, %v1228
      %v1232 = vcombine.high %v1218, %v939
      %v1234 = vunpack.c.l.s4 1983009808
      %v1235 = vunpack.c.0.s8 %v1234
      %v1236 = vlaneseq
      %v1237 = vshrl.u32 %v1236, 7
      %v1238 = vsub.s32 %v1235, %v1237
      %v1239 = vrot.slane %v1218, %v1238
      %v1241 = vunpack.c.l.s4 1983009808
      %v1242 = vunpack.c.0.s8 %v1241
      %v1243 = vlaneseq
      %v1244 = vshrl.u32 %v1243, 7
      %v1245 = vsub.s32 %v1242, %v1244
      %v1246 = vrot.slane %v1232, %v1245
      %v1247 = vcombine.high %v1226, %v939
      %v1249 = vunpack.c.l.s4 1983009808
      %v1250 = vunpack.c.0.s8 %v1249
      %v1251 = vlaneseq
      %v1252 = vshrl.u32 %v1251, 7
      %v1253 = vsub.s32 %v1250, %v1252
      %v1254 = vrot.slane %v1226, %v1253
      %v1256 = vunpack.c.l.s4 1983009808
      %v1257 = vunpack.c.0.s8 %v1256
      %v1258 = vlaneseq
      %v1259 = vshrl.u32 %v1258, 7
      %v1260 = vsub.s32 %v1257, %v1259
      %v1261 = vrot.slane %v1247, %v1260
      %v1262 = vcombine.low %v1239, %v1254
      %v1263 = vcombine.high %v1239, %v1254
      %v1265 = vunpack.c.l.s4 1934713408
      %v1266 = vunpack.c.0.s8 %v1265
      %v1267 = vlaneseq
      %v1268 = vshrl.u32 %v1267, 7
      %v1269 = vsub.s32 %v1266, %v1268
      %v1270 = vrot.slane %v1262, %v1269
      %v1272 = vunpack.c.l.s4 1934713408
      %v1273 = vunpack.c.0.s8 %v1272
      %v1274 = vlaneseq
      %v1275 = vshrl.u32 %v1274, 7
      %v1276 = vsub.s32 %v1273, %v1275
      %v1277 = vrot.slane %v1263, %v1276
      %v1278 = vcombine.low %v1246, %v1261
      %v1279 = vcombine.high %v1246, %v1261
      %v1281 = vunpack.c.l.s4 1934713408
      %v1282 = vunpack.c.0.s8 %v1281
      %v1283 = vlaneseq
      %v1284 = vshrl.u32 %v1283, 7
      %v1285 = vsub.s32 %v1282, %v1284
      %v1286 = vrot.slane %v1278, %v1285
      %v1288 = vunpack.c.l.s4 1934713408
      %v1289 = vunpack.c.0.s8 %v1288
      %v1290 = vlaneseq
      %v1291 = vshrl.u32 %v1290, 7
      %v1292 = vsub.s32 %v1289, %v1291
      %v1293 = vrot.slane %v1279, %v1292
      %v1294 = vcombine.high %v1270, 0
      %v1295 = vcombine.high %v1277, 0
      %v1296 = vcombine.high %v1286, 0
      %v1297 = vcombine.high %v1293, 0
      %v1298 = vcombine.high %v1222, %v942
      %v1300 = vunpack.c.l.s4 1983009808
      %v1301 = vunpack.c.0.s8 %v1300
      %v1302 = vlaneseq
      %v1303 = vshrl.u32 %v1302, 7
      %v1304 = vsub.s32 %v1301, %v1303
      %v1305 = vrot.slane %v1222, %v1304
      %v1307 = vunpack.c.l.s4 1983009808
      %v1308 = vunpack.c.0.s8 %v1307
      %v1309 = vlaneseq
      %v1310 = vshrl.u32 %v1309, 7
      %v1311 = vsub.s32 %v1308, %v1310
      %v1312 = vrot.slane %v1298, %v1311
      %v1313 = vcombine.high %v1230, %v942
      %v1315 = vunpack.c.l.s4 1983009808
      %v1316 = vunpack.c.0.s8 %v1315
      %v1317 = vlaneseq
      %v1318 = vshrl.u32 %v1317, 7
      %v1319 = vsub.s32 %v1316, %v1318
      %v1320 = vrot.slane %v1230, %v1319
      %v1322 = vunpack.c.l.s4 1983009808
      %v1323 = vunpack.c.0.s8 %v1322
      %v1324 = vlaneseq
      %v1325 = vshrl.u32 %v1324, 7
      %v1326 = vsub.s32 %v1323, %v1325
      %v1327 = vrot.slane %v1313, %v1326
      %v1328 = vcombine.low %v1305, %v1320
      %v1329 = vcombine.high %v1305, %v1320
      %v1331 = vunpack.c.l.s4 1934713408
      %v1332 = vunpack.c.0.s8 %v1331
      %v1333 = vlaneseq
      %v1334 = vshrl.u32 %v1333, 7
      %v1335 = vsub.s32 %v1332, %v1334
      %v1336 = vrot.slane %v1328, %v1335
      %v1338 = vunpack.c.l.s4 1934713408
      %v1339 = vunpack.c.0.s8 %v1338
      %v1340 = vlaneseq
      %v1341 = vshrl.u32 %v1340, 7
      %v1342 = vsub.s32 %v1339, %v1341
      %v1343 = vrot.slane %v1329, %v1342
      %v1344 = vcombine.low %v1312, %v1327
      %v1345 = vcombine.high %v1312, %v1327
      %v1347 = vunpack.c.l.s4 1934713408
      %v1348 = vunpack.c.0.s8 %v1347
      %v1349 = vlaneseq
      %v1350 = vshrl.u32 %v1349, 7
      %v1351 = vsub.s32 %v1348, %v1350
      %v1352 = vrot.slane %v1344, %v1351
      %v1354 = vunpack.c.l.s4 1934713408
      %v1355 = vunpack.c.0.s8 %v1354
      %v1356 = vlaneseq
      %v1357 = vshrl.u32 %v1356, 7
      %v1358 = vsub.s32 %v1355, %v1357
      %v1359 = vrot.slane %v1345, %v1358
      %v1360 = vcombine.high %v1336, 0
      %v1361 = vcombine.high %v1343, 0
      %v1362 = vcombine.high %v1352, 0
      %v1363 = vcombine.high %v1359, 0
      %v1364 = vcombine.low %v1270, %v1277
      %v1366 = vunpack.c.l.s4 1983009808
      %v1367 = vunpack.c.0.s8 %v1366
      %v1368 = vlaneseq
      %v1369 = vshrl.u32 %v1368, 7
      %v1370 = vsub.s32 %v1367, %v1369
      %v1371 = vrot.slane %v1364, %v1370
      %v1372 = vcombine.low %v1294, %v1295
      %v1374 = vunpack.c.l.s4 1983009808
      %v1375 = vunpack.c.0.s8 %v1374
      %v1376 = vlaneseq
      %v1377 = vshrl.u32 %v1376, 7
      %v1378 = vsub.s32 %v1375, %v1377
      %v1379 = vrot.slane %v1372, %v1378
      %v1380 = vcombine.low %v1371, %v1379
      %v1382 = vunpack.c.l.s4 1934713408
      %v1383 = vunpack.c.0.s8 %v1382
      %v1384 = vlaneseq
      %v1385 = vshrl.u32 %v1384, 7
      %v1386 = vsub.s32 %v1383, %v1385
      %v1387 = vrot.slane %v1380, %v1386
      %v1388 = vcombine.high %v1387, 0
      %v1389 = vcombine.low %v1336, %v1343
      %v1391 = vunpack.c.l.s4 1983009808
      %v1392 = vunpack.c.0.s8 %v1391
      %v1393 = vlaneseq
      %v1394 = vshrl.u32 %v1393, 7
      %v1395 = vsub.s32 %v1392, %v1394
      %v1396 = vrot.slane %v1389, %v1395
      %v1397 = vcombine.low %v1360, %v1361
      %v1399 = vunpack.c.l.s4 1983009808
      %v1400 = vunpack.c.0.s8 %v1399
      %v1401 = vlaneseq
      %v1402 = vshrl.u32 %v1401, 7
      %v1403 = vsub.s32 %v1400, %v1402
      %v1404 = vrot.slane %v1397, %v1403
      %v1405 = vcombine.low %v1396, %v1404
      %v1407 = vunpack.c.l.s4 1934713408
      %v1408 = vunpack.c.0.s8 %v1407
      %v1409 = vlaneseq
      %v1410 = vshrl.u32 %v1409, 7
      %v1411 = vsub.s32 %v1408, %v1410
      %v1412 = vrot.slane %v1405, %v1411
      %v1413 = vcombine.high %v1412, 0
      %v1414 = vcombine.low %v1286, %v1293
      %v1416 = vunpack.c.l.s4 1983009808
      %v1417 = vunpack.c.0.s8 %v1416
      %v1418 = vlaneseq
      %v1419 = vshrl.u32 %v1418, 7
      %v1420 = vsub.s32 %v1417, %v1419
      %v1421 = vrot.slane %v1414, %v1420
      %v1422 = vcombine.low %v1296, %v1297
      %v1424 = vunpack.c.l.s4 1983009808
      %v1425 = vunpack.c.0.s8 %v1424
      %v1426 = vlaneseq
      %v1427 = vshrl.u32 %v1426, 7
      %v1428 = vsub.s32 %v1425, %v1427
      %v1429 = vrot.slane %v1422, %v1428
      %v1430 = vcombine.low %v1421, %v1429
      %v1432 = vunpack.c.l.s4 1934713408
      %v1433 = vunpack.c.0.s8 %v1432
      %v1434 = vlaneseq
      %v1435 = vshrl.u32 %v1434, 7
      %v1436 = vsub.s32 %v1433, %v1435
      %v1437 = vrot.slane %v1430, %v1436
      %v1438 = vcombine.high %v1437, 0
      %v1439 = vcombine.low %v1352, %v1359
      %v1441 = vunpack.c.l.s4 1983009808
      %v1442 = vunpack.c.0.s8 %v1441
      %v1443 = vlaneseq
      %v1444 = vshrl.u32 %v1443, 7
      %v1445 = vsub.s32 %v1442, %v1444
      %v1446 = vrot.slane %v1439, %v1445
      %v1447 = vcombine.low %v1362, %v1363
      %v1449 = vunpack.c.l.s4 1983009808
      %v1450 = vunpack.c.0.s8 %v1449
      %v1451 = vlaneseq
      %v1452 = vshrl.u32 %v1451, 7
      %v1453 = vsub.s32 %v1450, %v1452
      %v1454 = vrot.slane %v1447, %v1453
      %v1455 = vcombine.low %v1446, %v1454
      %v1457 = vunpack.c.l.s4 1934713408
      %v1458 = vunpack.c.0.s8 %v1457
      %v1459 = vlaneseq
      %v1460 = vshrl.u32 %v1459, 7
      %v1461 = vsub.s32 %v1458, %v1460
      %v1462 = vrot.slane %v1455, %v1461
      %v1463 = vcombine.high %v1462, 0
      %v1466 = vpack.i.b16 %v1412, %v1387
      %v1467 = vshrl.u32 %v1387, 16
      %v1468 = vshrl.u32 %v1412, 16
      %v1469 = vpack.i.b16 %v1468, %v1467
      %v1472 = vpack.i.b16 %v1413, %v1388
      %v1473 = vshrl.u32 %v1388, 16
      %v1474 = vshrl.u32 %v1413, 16
      %v1475 = vpack.i.b16 %v1474, %v1473
      %v1478 = vpack.i.b16 %v1462, %v1437
      %v1479 = vshrl.u32 %v1437, 16
      %v1480 = vshrl.u32 %v1462, 16
      %v1481 = vpack.i.b16 %v1480, %v1479
      %v1484 = vpack.i.b16 %v1463, %v1438
      %v1485 = vshrl.u32 %v1438, 16
      %v1486 = vshrl.u32 %v1463, 16
      %v1487 = vpack.i.b16 %v1486, %v1485
      %1488 = vrot.lane.b32.xlu0 %v1200, 64
      %v1489 = vpop.permute.xlu0 %1488
      %1490 = vrot.lane.b32.xlu0 %v1203, 64
      %v1491 = vpop.permute.xlu0 %1490
      %1492 = vrot.lane.b32.xlu0 %v1205, 64
      %v1493 = vpop.permute.xlu0 %1492
      %1494 = vrot.lane.b32.xlu0 %v1207, 64
      %v1495 = vpop.permute.xlu0 %1494
      %v1498 = vpack.i.b16 %v1491, %v1489
      %v1500 = vshrl.u32 %v1489, 16
      %v1501 = vshrl.u32 %v1491, 16
      %v1502 = vpack.i.b16 %v1501, %v1500
      %v1506 = vpack.i.b16 %v1495, %v1493
      %v1508 = vshrl.u32 %v1493, 16
      %v1509 = vshrl.u32 %v1495, 16
      %v1510 = vpack.i.b16 %v1509, %v1508
      %v1512 = vcombine.high %v1498, %v939
      %v1514 = vunpack.c.l.s4 1983009808
      %v1515 = vunpack.c.0.s8 %v1514
      %v1516 = vlaneseq
      %v1517 = vshrl.u32 %v1516, 7
      %v1518 = vsub.s32 %v1515, %v1517
      %v1519 = vrot.slane %v1498, %v1518
      %v1521 = vunpack.c.l.s4 1983009808
      %v1522 = vunpack.c.0.s8 %v1521
      %v1523 = vlaneseq
      %v1524 = vshrl.u32 %v1523, 7
      %v1525 = vsub.s32 %v1522, %v1524
      %v1526 = vrot.slane %v1512, %v1525
      %v1527 = vcombine.high %v1506, %v939
      %v1529 = vunpack.c.l.s4 1983009808
      %v1530 = vunpack.c.0.s8 %v1529
      %v1531 = vlaneseq
      %v1532 = vshrl.u32 %v1531, 7
      %v1533 = vsub.s32 %v1530, %v1532
      %v1534 = vrot.slane %v1506, %v1533
      %v1536 = vunpack.c.l.s4 1983009808
      %v1537 = vunpack.c.0.s8 %v1536
      %v1538 = vlaneseq
      %v1539 = vshrl.u32 %v1538, 7
      %v1540 = vsub.s32 %v1537, %v1539
      %v1541 = vrot.slane %v1527, %v1540
      %v1542 = vcombine.low %v1519, %v1534
      %v1543 = vcombine.high %v1519, %v1534
      %v1545 = vunpack.c.l.s4 1934713408
      %v1546 = vunpack.c.0.s8 %v1545
      %v1547 = vlaneseq
      %v1548 = vshrl.u32 %v1547, 7
      %v1549 = vsub.s32 %v1546, %v1548
      %v1550 = vrot.slane %v1542, %v1549
      %v1552 = vunpack.c.l.s4 1934713408
      %v1553 = vunpack.c.0.s8 %v1552
      %v1554 = vlaneseq
      %v1555 = vshrl.u32 %v1554, 7
      %v1556 = vsub.s32 %v1553, %v1555
      %v1557 = vrot.slane %v1543, %v1556
      %v1558 = vcombine.low %v1526, %v1541
      %v1559 = vcombine.high %v1526, %v1541
      %v1561 = vunpack.c.l.s4 1934713408
      %v1562 = vunpack.c.0.s8 %v1561
      %v1563 = vlaneseq
      %v1564 = vshrl.u32 %v1563, 7
      %v1565 = vsub.s32 %v1562, %v1564
      %v1566 = vrot.slane %v1558, %v1565
      %v1568 = vunpack.c.l.s4 1934713408
      %v1569 = vunpack.c.0.s8 %v1568
      %v1570 = vlaneseq
      %v1571 = vshrl.u32 %v1570, 7
      %v1572 = vsub.s32 %v1569, %v1571
      %v1573 = vrot.slane %v1559, %v1572
      %v1574 = vcombine.high %v1550, 0
      %v1575 = vcombine.high %v1557, 0
      %v1576 = vcombine.high %v1566, 0
      %v1577 = vcombine.high %v1573, 0
      %v1578 = vcombine.high %v1502, %v942
      %v1580 = vunpack.c.l.s4 1983009808
      %v1581 = vunpack.c.0.s8 %v1580
      %v1582 = vlaneseq
      %v1583 = vshrl.u32 %v1582, 7
      %v1584 = vsub.s32 %v1581, %v1583
      %v1585 = vrot.slane %v1502, %v1584
      %v1587 = vunpack.c.l.s4 1983009808
      %v1588 = vunpack.c.0.s8 %v1587
      %v1589 = vlaneseq
      %v1590 = vshrl.u32 %v1589, 7
      %v1591 = vsub.s32 %v1588, %v1590
      %v1592 = vrot.slane %v1578, %v1591
      %v1593 = vcombine.high %v1510, %v942
      %v1595 = vunpack.c.l.s4 1983009808
      %v1596 = vunpack.c.0.s8 %v1595
      %v1597 = vlaneseq
      %v1598 = vshrl.u32 %v1597, 7
      %v1599 = vsub.s32 %v1596, %v1598
      %v1600 = vrot.slane %v1510, %v1599
      %v1602 = vunpack.c.l.s4 1983009808
      %v1603 = vunpack.c.0.s8 %v1602
      %v1604 = vlaneseq
      %v1605 = vshrl.u32 %v1604, 7
      %v1606 = vsub.s32 %v1603, %v1605
      %v1607 = vrot.slane %v1593, %v1606
      %v1608 = vcombine.low %v1585, %v1600
      %v1609 = vcombine.high %v1585, %v1600
      %v1611 = vunpack.c.l.s4 1934713408
      %v1612 = vunpack.c.0.s8 %v1611
      %v1613 = vlaneseq
      %v1614 = vshrl.u32 %v1613, 7
      %v1615 = vsub.s32 %v1612, %v1614
      %v1616 = vrot.slane %v1608, %v1615
      %v1618 = vunpack.c.l.s4 1934713408
      %v1619 = vunpack.c.0.s8 %v1618
      %v1620 = vlaneseq
      %v1621 = vshrl.u32 %v1620, 7
      %v1622 = vsub.s32 %v1619, %v1621
      %v1623 = vrot.slane %v1609, %v1622
      %v1624 = vcombine.low %v1592, %v1607
      %v1625 = vcombine.high %v1592, %v1607
      %v1627 = vunpack.c.l.s4 1934713408
      %v1628 = vunpack.c.0.s8 %v1627
      %v1629 = vlaneseq
      %v1630 = vshrl.u32 %v1629, 7
      %v1631 = vsub.s32 %v1628, %v1630
      %v1632 = vrot.slane %v1624, %v1631
      %v1634 = vunpack.c.l.s4 1934713408
      %v1635 = vunpack.c.0.s8 %v1634
      %v1636 = vlaneseq
      %v1637 = vshrl.u32 %v1636, 7
      %v1638 = vsub.s32 %v1635, %v1637
      %v1639 = vrot.slane %v1625, %v1638
      %v1640 = vcombine.high %v1616, 0
      %v1641 = vcombine.high %v1623, 0
      %v1642 = vcombine.high %v1632, 0
      %v1643 = vcombine.high %v1639, 0
      %v1644 = vcombine.low %v1550, %v1557
      %v1646 = vunpack.c.l.s4 1983009808
      %v1647 = vunpack.c.0.s8 %v1646
      %v1648 = vlaneseq
      %v1649 = vshrl.u32 %v1648, 7
      %v1650 = vsub.s32 %v1647, %v1649
      %v1651 = vrot.slane %v1644, %v1650
      %v1652 = vcombine.low %v1574, %v1575
      %v1654 = vunpack.c.l.s4 1983009808
      %v1655 = vunpack.c.0.s8 %v1654
      %v1656 = vlaneseq
      %v1657 = vshrl.u32 %v1656, 7
      %v1658 = vsub.s32 %v1655, %v1657
      %v1659 = vrot.slane %v1652, %v1658
      %v1660 = vcombine.low %v1651, %v1659
      %v1662 = vunpack.c.l.s4 1934713408
      %v1663 = vunpack.c.0.s8 %v1662
      %v1664 = vlaneseq
      %v1665 = vshrl.u32 %v1664, 7
      %v1666 = vsub.s32 %v1663, %v1665
      %v1667 = vrot.slane %v1660, %v1666
      %v1668 = vcombine.high %v1667, 0
      %v1669 = vcombine.low %v1616, %v1623
      %v1671 = vunpack.c.l.s4 1983009808
      %v1672 = vunpack.c.0.s8 %v1671
      %v1673 = vlaneseq
      %v1674 = vshrl.u32 %v1673, 7
      %v1675 = vsub.s32 %v1672, %v1674
      %v1676 = vrot.slane %v1669, %v1675
      %v1677 = vcombine.low %v1640, %v1641
      %v1679 = vunpack.c.l.s4 1983009808
      %v1680 = vunpack.c.0.s8 %v1679
      %v1681 = vlaneseq
      %v1682 = vshrl.u32 %v1681, 7
      %v1683 = vsub.s32 %v1680, %v1682
      %v1684 = vrot.slane %v1677, %v1683
      %v1685 = vcombine.low %v1676, %v1684
      %v1687 = vunpack.c.l.s4 1934713408
      %v1688 = vunpack.c.0.s8 %v1687
      %v1689 = vlaneseq
      %v1690 = vshrl.u32 %v1689, 7
      %v1691 = vsub.s32 %v1688, %v1690
      %v1692 = vrot.slane %v1685, %v1691
      %v1693 = vcombine.high %v1692, 0
      %v1694 = vcombine.low %v1566, %v1573
      %v1696 = vunpack.c.l.s4 1983009808
      %v1697 = vunpack.c.0.s8 %v1696
      %v1698 = vlaneseq
      %v1699 = vshrl.u32 %v1698, 7
      %v1700 = vsub.s32 %v1697, %v1699
      %v1701 = vrot.slane %v1694, %v1700
      %v1702 = vcombine.low %v1576, %v1577
      %v1704 = vunpack.c.l.s4 1983009808
      %v1705 = vunpack.c.0.s8 %v1704
      %v1706 = vlaneseq
      %v1707 = vshrl.u32 %v1706, 7
      %v1708 = vsub.s32 %v1705, %v1707
      %v1709 = vrot.slane %v1702, %v1708
      %v1710 = vcombine.low %v1701, %v1709
      %v1712 = vunpack.c.l.s4 1934713408
      %v1713 = vunpack.c.0.s8 %v1712
      %v1714 = vlaneseq
      %v1715 = vshrl.u32 %v1714, 7
      %v1716 = vsub.s32 %v1713, %v1715
      %v1717 = vrot.slane %v1710, %v1716
      %v1718 = vcombine.high %v1717, 0
      %v1719 = vcombine.low %v1632, %v1639
      %v1721 = vunpack.c.l.s4 1983009808
      %v1722 = vunpack.c.0.s8 %v1721
      %v1723 = vlaneseq
      %v1724 = vshrl.u32 %v1723, 7
      %v1725 = vsub.s32 %v1722, %v1724
      %v1726 = vrot.slane %v1719, %v1725
      %v1727 = vcombine.low %v1642, %v1643
      %v1729 = vunpack.c.l.s4 1983009808
      %v1730 = vunpack.c.0.s8 %v1729
      %v1731 = vlaneseq
      %v1732 = vshrl.u32 %v1731, 7
      %v1733 = vsub.s32 %v1730, %v1732
      %v1734 = vrot.slane %v1727, %v1733
      %v1735 = vcombine.low %v1726, %v1734
      %v1737 = vunpack.c.l.s4 1934713408
      %v1738 = vunpack.c.0.s8 %v1737
      %v1739 = vlaneseq
      %v1740 = vshrl.u32 %v1739, 7
      %v1741 = vsub.s32 %v1738, %v1740
      %v1742 = vrot.slane %v1735, %v1741
      %v1743 = vcombine.high %v1742, 0
      %v1746 = vpack.i.b16 %v1692, %v1667
      %v1747 = vshrl.u32 %v1667, 16
      %v1748 = vshrl.u32 %v1692, 16
      %v1749 = vpack.i.b16 %v1748, %v1747
      %v1752 = vpack.i.b16 %v1693, %v1668
      %v1753 = vshrl.u32 %v1668, 16
      %v1754 = vshrl.u32 %v1693, 16
      %v1755 = vpack.i.b16 %v1754, %v1753
      %v1758 = vpack.i.b16 %v1742, %v1717
      %v1759 = vshrl.u32 %v1717, 16
      %v1760 = vshrl.u32 %v1742, 16
      %v1761 = vpack.i.b16 %v1760, %v1759
      %v1764 = vpack.i.b16 %v1743, %v1718
      %v1765 = vshrl.u32 %v1718, 16
      %v1766 = vshrl.u32 %v1743, 16
      %v1767 = vpack.i.b16 %v1766, %v1765
      %v1770 = vlaneseq
      %v1771 = vshrl.u32 %v1770, 7
      %v1772 = vsub.s32 0, %v1771
      %v1773 = vrot.slane %v796, %v1772
      %v1774 = vlaneseq
      %v1775 = vshrl.u32 %v1774, 7
      %v1776 = vsub.s32 0, %v1775
      %v1777 = vrot.slane %v797, %v1776
      %vm1780 = vcmask 64512
      %v1782 = vsel %vm1780, %v1178, 0
      %v1785 = vsel %vm1780, %v1466, 0
      %1787 = vmatprep.subr.bf16.mxu0 0
      %1788 = vmatpush1.bf16.xpose.msra.mxu0 0
      %1789 = vmatprep.subr.bf16.mxu0 0
      %1790 = vmatpush1.bf16.xpose.msra.mxu0 0
      %1791 = vmatprep.subr.bf16.mxu0 0
      %1792 = vmatpush1.bf16.xpose.msra.mxu0 0
      %1793 = vmatprep.subr.bf16.mxu0 0
      %1794 = vmatpush1.bf16.xpose.msra.mxu0 0
      %1795 = vmatprep.subr.bf16.mxu0 0
      %1796 = vmatpush1.bf16.xpose.msra.mxu0 0
      %1797 = vmatprep.subr.bf16.mxu0 0
      %1798 = vmatpush1.bf16.xpose.msra.mxu0 0
      %1799 = vmatprep.subr.bf16.mxu0 0
      %1800 = vmatpush1.bf16.xpose.msra.mxu0 0
      %1801 = vmatprep.subr.bf16.mxu0 0
      %1802 = vmatpush1.bf16.xpose.msra.mxu0 %v1785
      %1803 = vmatprep.subr.bf16.mxu0 0
      %1804 = vmatpush2.bf16.xpose.msra.mxu0 0
      %1805 = vmatprep.subr.bf16.mxu0 0
      %1806 = vmatpush2.bf16.xpose.msra.mxu0 0
      %1807 = vmatprep.subr.bf16.mxu0 0
      %1808 = vmatpush2.bf16.xpose.msra.mxu0 0
      %1809 = vmatprep.subr.bf16.mxu0 0
      %1810 = vmatpush2.bf16.xpose.msra.mxu0 0
      %1811 = vmatprep.subr.bf16.mxu0 0
      %1812 = vmatpush2.bf16.xpose.msra.mxu0 0
      %1813 = vmatprep.subr.bf16.mxu0 0
      %1814 = vmatpush2.bf16.xpose.msra.mxu0 0
      %1815 = vmatprep.subr.bf16.mxu0 0
      %1816 = vmatpush2.bf16.xpose.msra.mxu0 0
      %1817 = vmatprep.subr.bf16.mxu0 0
      %1818 = vmatpush2.bf16.xpose.msra.mxu0 0
      %1819 = vmatprep.mubr.bf16.mxu0 0
      %1820 = vmatmul.mubr.bf16.gmra.mxu0 %v1782
      %v1821 = vpop.f32.mrf.mxu0
      %v1822 = vadd.f32 %v1773, %v1821
      %v1823 = vpop.f32.mrf.mxu0
      %v1824 = vpop.f32.mrf.mxu0
      %v1825 = vpop.f32.mrf.mxu0
      %1826 = vdwg.mxu0
      %v1828 = vsel %vm1780, %v1181, 0
      %v1831 = vsel %vm1780, %v1469, 0
      %1833 = vmatprep.subr.bf16.mxu0 0
      %1834 = vmatpush1.bf16.xpose.msra.mxu0 0
      %1835 = vmatprep.subr.bf16.mxu0 0
      %1836 = vmatpush1.bf16.xpose.msra.mxu0 0
      %1837 = vmatprep.subr.bf16.mxu0 0
      %1838 = vmatpush1.bf16.xpose.msra.mxu0 0
      %1839 = vmatprep.subr.bf16.mxu0 0
      %1840 = vmatpush1.bf16.xpose.msra.mxu0 0
      %1841 = vmatprep.subr.bf16.mxu0 0
      %1842 = vmatpush1.bf16.xpose.msra.mxu0 0
      %1843 = vmatprep.subr.bf16.mxu0 0
      %1844 = vmatpush1.bf16.xpose.msra.mxu0 0
      %1845 = vmatprep.subr.bf16.mxu0 0
      %1846 = vmatpush1.bf16.xpose.msra.mxu0 0
      %1847 = vmatprep.subr.bf16.mxu0 0
      %1848 = vmatpush1.bf16.xpose.msra.mxu0 %v1831
      %1849 = vmatprep.subr.bf16.mxu0 0
      %1850 = vmatpush2.bf16.xpose.msra.mxu0 0
      %1851 = vmatprep.subr.bf16.mxu0 0
      %1852 = vmatpush2.bf16.xpose.msra.mxu0 0
      %1853 = vmatprep.subr.bf16.mxu0 0
      %1854 = vmatpush2.bf16.xpose.msra.mxu0 0
      %1855 = vmatprep.subr.bf16.mxu0 0
      %1856 = vmatpush2.bf16.xpose.msra.mxu0 0
      %1857 = vmatprep.subr.bf16.mxu0 0
      %1858 = vmatpush2.bf16.xpose.msra.mxu0 0
      %1859 = vmatprep.subr.bf16.mxu0 0
      %1860 = vmatpush2.bf16.xpose.msra.mxu0 0
      %1861 = vmatprep.subr.bf16.mxu0 0
      %1862 = vmatpush2.bf16.xpose.msra.mxu0 0
      %1863 = vmatprep.subr.bf16.mxu0 0
      %1864 = vmatpush2.bf16.xpose.msra.mxu0 0
      %1865 = vmatprep.mubr.bf16.mxu0 0
      %1866 = vmatmul.mubr.bf16.gmra.mxu0 %v1828
      %v1867 = vpop.f32.mrf.mxu0
      %v1868 = vadd.f32 %v1773, %v1867
      %v1869 = vpop.f32.mrf.mxu0
      %v1870 = vpop.f32.mrf.mxu0
      %v1871 = vpop.f32.mrf.mxu0
      %1872 = vdwg.mxu0
      %v1874 = vsel %vm1780, %v1184, 0
      %v1877 = vsel %vm1780, %v1472, 0
      %1879 = vmatprep.subr.bf16.mxu0 0
      %1880 = vmatpush1.bf16.xpose.msra.mxu0 0
      %1881 = vmatprep.subr.bf16.mxu0 0
      %1882 = vmatpush1.bf16.xpose.msra.mxu0 0
      %1883 = vmatprep.subr.bf16.mxu0 0
      %1884 = vmatpush1.bf16.xpose.msra.mxu0 0
      %1885 = vmatprep.subr.bf16.mxu0 0
      %1886 = vmatpush1.bf16.xpose.msra.mxu0 0
      %1887 = vmatprep.subr.bf16.mxu0 0
      %1888 = vmatpush1.bf16.xpose.msra.mxu0 0
      %1889 = vmatprep.subr.bf16.mxu0 0
      %1890 = vmatpush1.bf16.xpose.msra.mxu0 0
      %1891 = vmatprep.subr.bf16.mxu0 0
      %1892 = vmatpush1.bf16.xpose.msra.mxu0 0
      %1893 = vmatprep.subr.bf16.mxu0 0
      %1894 = vmatpush1.bf16.xpose.msra.mxu0 %v1877
      %1895 = vmatprep.subr.bf16.mxu0 0
      %1896 = vmatpush2.bf16.xpose.msra.mxu0 0
      %1897 = vmatprep.subr.bf16.mxu0 0
      %1898 = vmatpush2.bf16.xpose.msra.mxu0 0
      %1899 = vmatprep.subr.bf16.mxu0 0
      %1900 = vmatpush2.bf16.xpose.msra.mxu0 0
      %1901 = vmatprep.subr.bf16.mxu0 0
      %1902 = vmatpush2.bf16.xpose.msra.mxu0 0
      %1903 = vmatprep.subr.bf16.mxu0 0
      %1904 = vmatpush2.bf16.xpose.msra.mxu0 0
      %1905 = vmatprep.subr.bf16.mxu0 0
      %1906 = vmatpush2.bf16.xpose.msra.mxu0 0
      %1907 = vmatprep.subr.bf16.mxu0 0
      %1908 = vmatpush2.bf16.xpose.msra.mxu0 0
      %1909 = vmatprep.subr.bf16.mxu0 0
      %1910 = vmatpush2.bf16.xpose.msra.mxu0 0
      %1911 = vmatprep.mubr.bf16.mxu0 0
      %1912 = vmatmul.mubr.bf16.gmra.mxu0 %v1874
      %v1913 = vpop.f32.mrf.mxu0
      %v1914 = vadd.f32 %v1773, %v1913
      %v1915 = vpop.f32.mrf.mxu0
      %v1916 = vpop.f32.mrf.mxu0
      %v1917 = vpop.f32.mrf.mxu0
      %1918 = vdwg.mxu0
      %v1920 = vsel %vm1780, %v1187, 0
      %v1923 = vsel %vm1780, %v1475, 0
      %1925 = vmatprep.subr.bf16.mxu0 0
      %1926 = vmatpush1.bf16.xpose.msra.mxu0 0
      %1927 = vmatprep.subr.bf16.mxu0 0
      %1928 = vmatpush1.bf16.xpose.msra.mxu0 0
      %1929 = vmatprep.subr.bf16.mxu0 0
      %1930 = vmatpush1.bf16.xpose.msra.mxu0 0
      %1931 = vmatprep.subr.bf16.mxu0 0
      %1932 = vmatpush1.bf16.xpose.msra.mxu0 0
      %1933 = vmatprep.subr.bf16.mxu0 0
      %1934 = vmatpush1.bf16.xpose.msra.mxu0 0
      %1935 = vmatprep.subr.bf16.mxu0 0
      %1936 = vmatpush1.bf16.xpose.msra.mxu0 0
      %1937 = vmatprep.subr.bf16.mxu0 0
      %1938 = vmatpush1.bf16.xpose.msra.mxu0 0
      %1939 = vmatprep.subr.bf16.mxu0 0
      %1940 = vmatpush1.bf16.xpose.msra.mxu0 %v1923
      %1941 = vmatprep.subr.bf16.mxu0 0
      %1942 = vmatpush2.bf16.xpose.msra.mxu0 0
      %1943 = vmatprep.subr.bf16.mxu0 0
      %1944 = vmatpush2.bf16.xpose.msra.mxu0 0
      %1945 = vmatprep.subr.bf16.mxu0 0
      %1946 = vmatpush2.bf16.xpose.msra.mxu0 0
      %1947 = vmatprep.subr.bf16.mxu0 0
      %1948 = vmatpush2.bf16.xpose.msra.mxu0 0
      %1949 = vmatprep.subr.bf16.mxu0 0
      %1950 = vmatpush2.bf16.xpose.msra.mxu0 0
      %1951 = vmatprep.subr.bf16.mxu0 0
      %1952 = vmatpush2.bf16.xpose.msra.mxu0 0
      %1953 = vmatprep.subr.bf16.mxu0 0
      %1954 = vmatpush2.bf16.xpose.msra.mxu0 0
      %1955 = vmatprep.subr.bf16.mxu0 0
      %1956 = vmatpush2.bf16.xpose.msra.mxu0 0
      %1957 = vmatprep.mubr.bf16.mxu0 0
      %1958 = vmatmul.mubr.bf16.gmra.mxu0 %v1920
      %v1959 = vpop.f32.mrf.mxu0
      %v1960 = vadd.f32 %v1773, %v1959
      %v1961 = vpop.f32.mrf.mxu0
      %v1962 = vpop.f32.mrf.mxu0
      %v1963 = vpop.f32.mrf.mxu0
      %1964 = vdwg.mxu0
      %v1966 = vsel %vm1780, %v1190, 0
      %v1969 = vsel %vm1780, %v1478, 0
      %1971 = vmatprep.subr.bf16.mxu0 0
      %1972 = vmatpush1.bf16.xpose.msra.mxu0 0
      %1973 = vmatprep.subr.bf16.mxu0 0
      %1974 = vmatpush1.bf16.xpose.msra.mxu0 0
      %1975 = vmatprep.subr.bf16.mxu0 0
      %1976 = vmatpush1.bf16.xpose.msra.mxu0 0
      %1977 = vmatprep.subr.bf16.mxu0 0
      %1978 = vmatpush1.bf16.xpose.msra.mxu0 0
      %1979 = vmatprep.subr.bf16.mxu0 0
      %1980 = vmatpush1.bf16.xpose.msra.mxu0 0
      %1981 = vmatprep.subr.bf16.mxu0 0
      %1982 = vmatpush1.bf16.xpose.msra.mxu0 0
      %1983 = vmatprep.subr.bf16.mxu0 0
      %1984 = vmatpush1.bf16.xpose.msra.mxu0 0
      %1985 = vmatprep.subr.bf16.mxu0 0
      %1986 = vmatpush1.bf16.xpose.msra.mxu0 %v1969
      %1987 = vmatprep.subr.bf16.mxu0 0
      %1988 = vmatpush2.bf16.xpose.msra.mxu0 0
      %1989 = vmatprep.subr.bf16.mxu0 0
      %1990 = vmatpush2.bf16.xpose.msra.mxu0 0
      %1991 = vmatprep.subr.bf16.mxu0 0
      %1992 = vmatpush2.bf16.xpose.msra.mxu0 0
      %1993 = vmatprep.subr.bf16.mxu0 0
      %1994 = vmatpush2.bf16.xpose.msra.mxu0 0
      %1995 = vmatprep.subr.bf16.mxu0 0
      %1996 = vmatpush2.bf16.xpose.msra.mxu0 0
      %1997 = vmatprep.subr.bf16.mxu0 0
      %1998 = vmatpush2.bf16.xpose.msra.mxu0 0
      %1999 = vmatprep.subr.bf16.mxu0 0
      %2000 = vmatpush2.bf16.xpose.msra.mxu0 0
      %2001 = vmatprep.subr.bf16.mxu0 0
      %2002 = vmatpush2.bf16.xpose.msra.mxu0 0
      %2003 = vmatprep.mubr.bf16.mxu0 0
      %2004 = vmatmul.mubr.bf16.gmra.mxu0 %v1966
      %v2005 = vpop.f32.mrf.mxu0
      %v2006 = vadd.f32 %v1777, %v2005
      %v2007 = vpop.f32.mrf.mxu0
      %v2008 = vpop.f32.mrf.mxu0
      %v2009 = vpop.f32.mrf.mxu0
      %2010 = vdwg.mxu0
      %v2012 = vsel %vm1780, %v1193, 0
      %v2015 = vsel %vm1780, %v1481, 0
      %2017 = vmatprep.subr.bf16.mxu0 0
      %2018 = vmatpush1.bf16.xpose.msra.mxu0 0
      %2019 = vmatprep.subr.bf16.mxu0 0
      %2020 = vmatpush1.bf16.xpose.msra.mxu0 0
      %2021 = vmatprep.subr.bf16.mxu0 0
      %2022 = vmatpush1.bf16.xpose.msra.mxu0 0
      %2023 = vmatprep.subr.bf16.mxu0 0
      %2024 = vmatpush1.bf16.xpose.msra.mxu0 0
      %2025 = vmatprep.subr.bf16.mxu0 0
      %2026 = vmatpush1.bf16.xpose.msra.mxu0 0
      %2027 = vmatprep.subr.bf16.mxu0 0
      %2028 = vmatpush1.bf16.xpose.msra.mxu0 0
      %2029 = vmatprep.subr.bf16.mxu0 0
      %2030 = vmatpush1.bf16.xpose.msra.mxu0 0
      %2031 = vmatprep.subr.bf16.mxu0 0
      %2032 = vmatpush1.bf16.xpose.msra.mxu0 %v2015
      %2033 = vmatprep.subr.bf16.mxu0 0
      %2034 = vmatpush2.bf16.xpose.msra.mxu0 0
      %2035 = vmatprep.subr.bf16.mxu0 0
      %2036 = vmatpush2.bf16.xpose.msra.mxu0 0
      %2037 = vmatprep.subr.bf16.mxu0 0
      %2038 = vmatpush2.bf16.xpose.msra.mxu0 0
      %2039 = vmatprep.subr.bf16.mxu0 0
      %2040 = vmatpush2.bf16.xpose.msra.mxu0 0
      %2041 = vmatprep.subr.bf16.mxu0 0
      %2042 = vmatpush2.bf16.xpose.msra.mxu0 0
      %2043 = vmatprep.subr.bf16.mxu0 0
      %2044 = vmatpush2.bf16.xpose.msra.mxu0 0
      %2045 = vmatprep.subr.bf16.mxu0 0
      %2046 = vmatpush2.bf16.xpose.msra.mxu0 0
      %2047 = vmatprep.subr.bf16.mxu0 0
      %2048 = vmatpush2.bf16.xpose.msra.mxu0 0
      %2049 = vmatprep.mubr.bf16.mxu0 0
      %2050 = vmatmul.mubr.bf16.gmra.mxu0 %v2012
      %v2051 = vpop.f32.mrf.mxu0
      %v2052 = vadd.f32 %v1777, %v2051
      %v2053 = vpop.f32.mrf.mxu0
      %v2054 = vpop.f32.mrf.mxu0
      %v2055 = vpop.f32.mrf.mxu0
      %2056 = vdwg.mxu0
      %v2058 = vsel %vm1780, %v1196, 0
      %v2061 = vsel %vm1780, %v1484, 0
      %2063 = vmatprep.subr.bf16.mxu0 0
      %2064 = vmatpush1.bf16.xpose.msra.mxu0 0
      %2065 = vmatprep.subr.bf16.mxu0 0
      %2066 = vmatpush1.bf16.xpose.msra.mxu0 0
      %2067 = vmatprep.subr.bf16.mxu0 0
      %2068 = vmatpush1.bf16.xpose.msra.mxu0 0
      %2069 = vmatprep.subr.bf16.mxu0 0
      %2070 = vmatpush1.bf16.xpose.msra.mxu0 0
      %2071 = vmatprep.subr.bf16.mxu0 0
      %2072 = vmatpush1.bf16.xpose.msra.mxu0 0
      %2073 = vmatprep.subr.bf16.mxu0 0
      %2074 = vmatpush1.bf16.xpose.msra.mxu0 0
      %2075 = vmatprep.subr.bf16.mxu0 0
      %2076 = vmatpush1.bf16.xpose.msra.mxu0 0
      %2077 = vmatprep.subr.bf16.mxu0 0
      %2078 = vmatpush1.bf16.xpose.msra.mxu0 %v2061
      %2079 = vmatprep.subr.bf16.mxu0 0
      %2080 = vmatpush2.bf16.xpose.msra.mxu0 0
      %2081 = vmatprep.subr.bf16.mxu0 0
      %2082 = vmatpush2.bf16.xpose.msra.mxu0 0
      %2083 = vmatprep.subr.bf16.mxu0 0
      %2084 = vmatpush2.bf16.xpose.msra.mxu0 0
      %2085 = vmatprep.subr.bf16.mxu0 0
      %2086 = vmatpush2.bf16.xpose.msra.mxu0 0
      %2087 = vmatprep.subr.bf16.mxu0 0
      %2088 = vmatpush2.bf16.xpose.msra.mxu0 0
      %2089 = vmatprep.subr.bf16.mxu0 0
      %2090 = vmatpush2.bf16.xpose.msra.mxu0 0
      %2091 = vmatprep.subr.bf16.mxu0 0
      %2092 = vmatpush2.bf16.xpose.msra.mxu0 0
      %2093 = vmatprep.subr.bf16.mxu0 0
      %2094 = vmatpush2.bf16.xpose.msra.mxu0 0
      %2095 = vmatprep.mubr.bf16.mxu0 0
      %2096 = vmatmul.mubr.bf16.gmra.mxu0 %v2058
      %v2097 = vpop.f32.mrf.mxu0
      %v2098 = vadd.f32 %v1777, %v2097
      %v2099 = vpop.f32.mrf.mxu0
      %v2100 = vpop.f32.mrf.mxu0
      %v2101 = vpop.f32.mrf.mxu0
      %2102 = vdwg.mxu0
      %v2104 = vsel %vm1780, %v1199, 0
      %v2107 = vsel %vm1780, %v1487, 0
      %2109 = vmatprep.subr.bf16.mxu0 0
      %2110 = vmatpush1.bf16.xpose.msra.mxu0 0
      %2111 = vmatprep.subr.bf16.mxu0 0
      %2112 = vmatpush1.bf16.xpose.msra.mxu0 0
      %2113 = vmatprep.subr.bf16.mxu0 0
      %2114 = vmatpush1.bf16.xpose.msra.mxu0 0
      %2115 = vmatprep.subr.bf16.mxu0 0
      %2116 = vmatpush1.bf16.xpose.msra.mxu0 0
      %2117 = vmatprep.subr.bf16.mxu0 0
      %2118 = vmatpush1.bf16.xpose.msra.mxu0 0
      %2119 = vmatprep.subr.bf16.mxu0 0
      %2120 = vmatpush1.bf16.xpose.msra.mxu0 0
      %2121 = vmatprep.subr.bf16.mxu0 0
      %2122 = vmatpush1.bf16.xpose.msra.mxu0 0
      %2123 = vmatprep.subr.bf16.mxu0 0
      %2124 = vmatpush1.bf16.xpose.msra.mxu0 %v2107
      %2125 = vmatprep.subr.bf16.mxu0 0
      %2126 = vmatpush2.bf16.xpose.msra.mxu0 0
      %2127 = vmatprep.subr.bf16.mxu0 0
      %2128 = vmatpush2.bf16.xpose.msra.mxu0 0
      %2129 = vmatprep.subr.bf16.mxu0 0
      %2130 = vmatpush2.bf16.xpose.msra.mxu0 0
      %2131 = vmatprep.subr.bf16.mxu0 0
      %2132 = vmatpush2.bf16.xpose.msra.mxu0 0
      %2133 = vmatprep.subr.bf16.mxu0 0
      %2134 = vmatpush2.bf16.xpose.msra.mxu0 0
      %2135 = vmatprep.subr.bf16.mxu0 0
      %2136 = vmatpush2.bf16.xpose.msra.mxu0 0
      %2137 = vmatprep.subr.bf16.mxu0 0
      %2138 = vmatpush2.bf16.xpose.msra.mxu0 0
      %2139 = vmatprep.subr.bf16.mxu0 0
      %2140 = vmatpush2.bf16.xpose.msra.mxu0 0
      %2141 = vmatprep.mubr.bf16.mxu0 0
      %2142 = vmatmul.mubr.bf16.gmra.mxu0 %v2104
      %v2143 = vpop.f32.mrf.mxu0
      %v2144 = vadd.f32 %v1777, %v2143
      %v2145 = vpop.f32.mrf.mxu0
      %v2146 = vpop.f32.mrf.mxu0
      %v2147 = vpop.f32.mrf.mxu0
      %2148 = vdwg.mxu0
      %v2149 = vsel %vm1780, %v1822, -inf
      %2150 = vmax.xlane.f32.xlu0 %v2149
      %v2151 = vpop.xlane.xlu0 %2150
      %v2152 = vsel %vm1780, %v1868, -inf
      %2153 = vmax.xlane.f32.xlu0 %v2152
      %v2154 = vpop.xlane.xlu0 %2153
      %v2155 = vsel %vm1780, %v1914, -inf
      %2156 = vmax.xlane.f32.xlu0 %v2155
      %v2157 = vpop.xlane.xlu0 %2156
      %v2158 = vsel %vm1780, %v1960, -inf
      %2159 = vmax.xlane.f32.xlu0 %v2158
      %v2160 = vpop.xlane.xlu0 %2159
      %v2161 = vsel %vm1780, %v2006, -inf
      %2162 = vmax.xlane.f32.xlu0 %v2161
      %v2163 = vpop.xlane.xlu0 %2162
      %v2164 = vsel %vm1780, %v2052, -inf
      %2165 = vmax.xlane.f32.xlu0 %v2164
      %v2166 = vpop.xlane.xlu0 %2165
      %v2167 = vsel %vm1780, %v2098, -inf
      %2168 = vmax.xlane.f32.xlu0 %v2167
      %v2169 = vpop.xlane.xlu0 %2168
      %v2170 = vsel %vm1780, %v2144, -inf
      %2171 = vmax.xlane.f32.xlu0 %v2170
      %v2172 = vpop.xlane.xlu0 %2171
      %v2173 = vsub.f32 %v1822, %v2151
      %v2174 = vsub.f32 %v1868, %v2154
      %v2175 = vsub.f32 %v1914, %v2157
      %v2176 = vsub.f32 %v1960, %v2160
      %v2177 = vsub.f32 %v2006, %v2163
      %v2178 = vsub.f32 %v2052, %v2166
      %v2179 = vsub.f32 %v2098, %v2169
      %v2180 = vsub.f32 %v2144, %v2172
      %v2181 = vmul.f32 %v2173, 1.442695
      %v2182 = vpow.pop %v2181
      %v2183 = vmul.f32 %v2174, 1.442695
      %v2184 = vpow.pop %v2183
      %v2185 = vmul.f32 %v2175, 1.442695
      %v2186 = vpow.pop %v2185
      %v2187 = vmul.f32 %v2176, 1.442695
      %v2188 = vpow.pop %v2187
      %v2189 = vmul.f32 %v2177, 1.442695
      %v2190 = vpow.pop %v2189
      %v2191 = vmul.f32 %v2178, 1.442695
      %v2192 = vpow.pop %v2191
      %v2193 = vmul.f32 %v2179, 1.442695
      %v2194 = vpow.pop %v2193
      %v2195 = vmul.f32 %v2180, 1.442695
      %v2196 = vpow.pop %v2195
      %v2197 = vsel %vm1780, %v2182, 0.0
      %2198 = vadd.xlane.f32.xlu0 %v2197
      %v2199 = vpop.xlane.xlu0 %2198
      %v2200 = vsel %vm1780, %v2184, 0.0
      %2201 = vadd.xlane.f32.xlu0 %v2200
      %v2202 = vpop.xlane.xlu0 %2201
      %v2203 = vsel %vm1780, %v2186, 0.0
      %2204 = vadd.xlane.f32.xlu0 %v2203
      %v2205 = vpop.xlane.xlu0 %2204
      %v2206 = vsel %vm1780, %v2188, 0.0
      %2207 = vadd.xlane.f32.xlu0 %v2206
      %v2208 = vpop.xlane.xlu0 %2207
      %v2209 = vsel %vm1780, %v2190, 0.0
      %2210 = vadd.xlane.f32.xlu0 %v2209
      %v2211 = vpop.xlane.xlu0 %2210
      %v2212 = vsel %vm1780, %v2192, 0.0
      %2213 = vadd.xlane.f32.xlu0 %v2212
      %v2214 = vpop.xlane.xlu0 %2213
      %v2215 = vsel %vm1780, %v2194, 0.0
      %2216 = vadd.xlane.f32.xlu0 %v2215
      %v2217 = vpop.xlane.xlu0 %2216
      %v2218 = vsel %vm1780, %v2196, 0.0
      %2219 = vadd.xlane.f32.xlu0 %v2218
      %v2220 = vpop.xlane.xlu0 %2219
      %v2221 = vrcp.pop %v2199
      %v2222 = vrcp.pop %v2202
      %v2223 = vrcp.pop %v2205
      %v2224 = vrcp.pop %v2208
      %v2225 = vrcp.pop %v2211
      %v2226 = vrcp.pop %v2214
      %v2227 = vrcp.pop %v2217
      %v2228 = vrcp.pop %v2220
      %v2229 = vmul.f32 %v2182, %v2221
      %v2230 = vmul.f32 %v2184, %v2222
      %v2231 = vmul.f32 %v2186, %v2223
      %v2232 = vmul.f32 %v2188, %v2224
      %v2233 = vmul.f32 %v2190, %v2225
      %v2234 = vmul.f32 %v2192, %v2226
      %v2235 = vmul.f32 %v2194, %v2227
      %v2236 = vmul.f32 %v2196, %v2228
      %v2237 = vpack.c.bf16 %v2229, %v2229
      %v2238 = vpack.c.bf16 %v2230, %v2230
      %v2239 = vpack.c.bf16 %v2231, %v2231
      %v2240 = vpack.c.bf16 %v2232, %v2232
      %v2241 = vpack.c.bf16 %v2233, %v2233
      %v2242 = vpack.c.bf16 %v2234, %v2234
      %v2243 = vpack.c.bf16 %v2235, %v2235
      %v2244 = vpack.c.bf16 %v2236, %v2236
      %v2246 = vsel %vm1780, %v2237, 0
      %vm2248 = vcmask 1043456
      %v2250 = vsel %vm2248, %v1746, 0
      %2252 = vmatprep.subr.bf16.mxu0 0
      %2253 = vmatpush1.bf16.msra.mxu0 0
      %2254 = vmatprep.subr.bf16.mxu0 0
      %2255 = vmatpush1.bf16.msra.mxu0 0
      %2256 = vmatprep.subr.bf16.mxu0 0
      %2257 = vmatpush1.bf16.msra.mxu0 0
      %2258 = vmatprep.subr.bf16.mxu0 0
      %2259 = vmatpush1.bf16.msra.mxu0 0
      %2260 = vmatprep.subr.bf16.mxu0 0
      %2261 = vmatpush1.bf16.msra.mxu0 0
      %2262 = vmatprep.subr.bf16.mxu0 0
      %2263 = vmatpush1.bf16.msra.mxu0 0
      %2264 = vmatprep.subr.bf16.mxu0 0
      %2265 = vmatpush1.bf16.msra.mxu0 0
      %2266 = vmatprep.subr.bf16.mxu0 0
      %2267 = vmatpush1.bf16.msra.mxu0 %v2250
      %2268 = vmatprep.subr.bf16.mxu0 0
      %2269 = vmatpush2.bf16.msra.mxu0 0
      %2270 = vmatprep.subr.bf16.mxu0 0
      %2271 = vmatpush2.bf16.msra.mxu0 0
      %2272 = vmatprep.subr.bf16.mxu0 0
      %2273 = vmatpush2.bf16.msra.mxu0 0
      %2274 = vmatprep.subr.bf16.mxu0 0
      %2275 = vmatpush2.bf16.msra.mxu0 0
      %2276 = vmatprep.subr.bf16.mxu0 0
      %2277 = vmatpush2.bf16.msra.mxu0 0
      %2278 = vmatprep.subr.bf16.mxu0 0
      %2279 = vmatpush2.bf16.msra.mxu0 0
      %2280 = vmatprep.subr.bf16.mxu0 0
      %2281 = vmatpush2.bf16.msra.mxu0 0
      %2282 = vmatprep.subr.bf16.mxu0 0
      %2283 = vmatpush2.bf16.msra.mxu0 0
      %2284 = vmatprep.mubr.bf16.mxu0 0
      %2285 = vmatmul.mubr.bf16.gmra.mxu0 %v2246
      %v2286 = vpop.f32.mrf.mxu0
      %v2287 = vadd.f32 0.0, %v2286
      %v2288 = vpop.f32.mrf.mxu0
      %v2289 = vpop.f32.mrf.mxu0
      %v2290 = vpop.f32.mrf.mxu0
      %2291 = vdwg.mxu0
      %v2293 = vsel %vm1780, %v2238, 0
      %v2296 = vsel %vm2248, %v1749, 0
      %2298 = vmatprep.subr.bf16.mxu0 0
      %2299 = vmatpush1.bf16.msra.mxu0 0
      %2300 = vmatprep.subr.bf16.mxu0 0
      %2301 = vmatpush1.bf16.msra.mxu0 0
      %2302 = vmatprep.subr.bf16.mxu0 0
      %2303 = vmatpush1.bf16.msra.mxu0 0
      %2304 = vmatprep.subr.bf16.mxu0 0
      %2305 = vmatpush1.bf16.msra.mxu0 0
      %2306 = vmatprep.subr.bf16.mxu0 0
      %2307 = vmatpush1.bf16.msra.mxu0 0
      %2308 = vmatprep.subr.bf16.mxu0 0
      %2309 = vmatpush1.bf16.msra.mxu0 0
      %2310 = vmatprep.subr.bf16.mxu0 0
      %2311 = vmatpush1.bf16.msra.mxu0 0
      %2312 = vmatprep.subr.bf16.mxu0 0
      %2313 = vmatpush1.bf16.msra.mxu0 %v2296
      %2314 = vmatprep.subr.bf16.mxu0 0
      %2315 = vmatpush2.bf16.msra.mxu0 0
      %2316 = vmatprep.subr.bf16.mxu0 0
      %2317 = vmatpush2.bf16.msra.mxu0 0
      %2318 = vmatprep.subr.bf16.mxu0 0
      %2319 = vmatpush2.bf16.msra.mxu0 0
      %2320 = vmatprep.subr.bf16.mxu0 0
      %2321 = vmatpush2.bf16.msra.mxu0 0
      %2322 = vmatprep.subr.bf16.mxu0 0
      %2323 = vmatpush2.bf16.msra.mxu0 0
      %2324 = vmatprep.subr.bf16.mxu0 0
      %2325 = vmatpush2.bf16.msra.mxu0 0
      %2326 = vmatprep.subr.bf16.mxu0 0
      %2327 = vmatpush2.bf16.msra.mxu0 0
      %2328 = vmatprep.subr.bf16.mxu0 0
      %2329 = vmatpush2.bf16.msra.mxu0 0
      %2330 = vmatprep.mubr.bf16.mxu0 0
      %2331 = vmatmul.mubr.bf16.gmra.mxu0 %v2293
      %v2332 = vpop.f32.mrf.mxu0
      %v2333 = vadd.f32 0.0, %v2332
      %v2334 = vpop.f32.mrf.mxu0
      %v2335 = vpop.f32.mrf.mxu0
      %v2336 = vpop.f32.mrf.mxu0
      %2337 = vdwg.mxu0
      %v2339 = vsel %vm1780, %v2239, 0
      %v2342 = vsel %vm2248, %v1752, 0
      %2344 = vmatprep.subr.bf16.mxu0 0
      %2345 = vmatpush1.bf16.msra.mxu0 0
      %2346 = vmatprep.subr.bf16.mxu0 0
      %2347 = vmatpush1.bf16.msra.mxu0 0
      %2348 = vmatprep.subr.bf16.mxu0 0
      %2349 = vmatpush1.bf16.msra.mxu0 0
      %2350 = vmatprep.subr.bf16.mxu0 0
      %2351 = vmatpush1.bf16.msra.mxu0 0
      %2352 = vmatprep.subr.bf16.mxu0 0
      %2353 = vmatpush1.bf16.msra.mxu0 0
      %2354 = vmatprep.subr.bf16.mxu0 0
      %2355 = vmatpush1.bf16.msra.mxu0 0
      %2356 = vmatprep.subr.bf16.mxu0 0
      %2357 = vmatpush1.bf16.msra.mxu0 0
      %2358 = vmatprep.subr.bf16.mxu0 0
      %2359 = vmatpush1.bf16.msra.mxu0 %v2342
      %2360 = vmatprep.subr.bf16.mxu0 0
      %2361 = vmatpush2.bf16.msra.mxu0 0
      %2362 = vmatprep.subr.bf16.mxu0 0
      %2363 = vmatpush2.bf16.msra.mxu0 0
      %2364 = vmatprep.subr.bf16.mxu0 0
      %2365 = vmatpush2.bf16.msra.mxu0 0
      %2366 = vmatprep.subr.bf16.mxu0 0
      %2367 = vmatpush2.bf16.msra.mxu0 0
      %2368 = vmatprep.subr.bf16.mxu0 0
      %2369 = vmatpush2.bf16.msra.mxu0 0
      %2370 = vmatprep.subr.bf16.mxu0 0
      %2371 = vmatpush2.bf16.msra.mxu0 0
      %2372 = vmatprep.subr.bf16.mxu0 0
      %2373 = vmatpush2.bf16.msra.mxu0 0
      %2374 = vmatprep.subr.bf16.mxu0 0
      %2375 = vmatpush2.bf16.msra.mxu0 0
      %2376 = vmatprep.mubr.bf16.mxu0 0
      %2377 = vmatmul.mubr.bf16.gmra.mxu0 %v2339
      %v2378 = vpop.f32.mrf.mxu0
      %v2379 = vadd.f32 0.0, %v2378
      %v2380 = vpop.f32.mrf.mxu0
      %v2381 = vpop.f32.mrf.mxu0
      %v2382 = vpop.f32.mrf.mxu0
      %2383 = vdwg.mxu0
      %v2385 = vsel %vm1780, %v2240, 0
      %v2388 = vsel %vm2248, %v1755, 0
      %2390 = vmatprep.subr.bf16.mxu0 0
      %2391 = vmatpush1.bf16.msra.mxu0 0
      %2392 = vmatprep.subr.bf16.mxu0 0
      %2393 = vmatpush1.bf16.msra.mxu0 0
      %2394 = vmatprep.subr.bf16.mxu0 0
      %2395 = vmatpush1.bf16.msra.mxu0 0
      %2396 = vmatprep.subr.bf16.mxu0 0
      %2397 = vmatpush1.bf16.msra.mxu0 0
      %2398 = vmatprep.subr.bf16.mxu0 0
      %2399 = vmatpush1.bf16.msra.mxu0 0
      %2400 = vmatprep.subr.bf16.mxu0 0
      %2401 = vmatpush1.bf16.msra.mxu0 0
      %2402 = vmatprep.subr.bf16.mxu0 0
      %2403 = vmatpush1.bf16.msra.mxu0 0
      %2404 = vmatprep.subr.bf16.mxu0 0
      %2405 = vmatpush1.bf16.msra.mxu0 %v2388
      %2406 = vmatprep.subr.bf16.mxu0 0
      %2407 = vmatpush2.bf16.msra.mxu0 0
      %2408 = vmatprep.subr.bf16.mxu0 0
      %2409 = vmatpush2.bf16.msra.mxu0 0
      %2410 = vmatprep.subr.bf16.mxu0 0
      %2411 = vmatpush2.bf16.msra.mxu0 0
      %2412 = vmatprep.subr.bf16.mxu0 0
      %2413 = vmatpush2.bf16.msra.mxu0 0
      %2414 = vmatprep.subr.bf16.mxu0 0
      %2415 = vmatpush2.bf16.msra.mxu0 0
      %2416 = vmatprep.subr.bf16.mxu0 0
      %2417 = vmatpush2.bf16.msra.mxu0 0
      %2418 = vmatprep.subr.bf16.mxu0 0
      %2419 = vmatpush2.bf16.msra.mxu0 0
      %2420 = vmatprep.subr.bf16.mxu0 0
      %2421 = vmatpush2.bf16.msra.mxu0 0
      %2422 = vmatprep.mubr.bf16.mxu0 0
      %2423 = vmatmul.mubr.bf16.gmra.mxu0 %v2385
      %v2424 = vpop.f32.mrf.mxu0
      %v2425 = vadd.f32 0.0, %v2424
      %v2426 = vpop.f32.mrf.mxu0
      %v2427 = vpop.f32.mrf.mxu0
      %v2428 = vpop.f32.mrf.mxu0
      %2429 = vdwg.mxu0
      %v2431 = vsel %vm1780, %v2241, 0
      %v2434 = vsel %vm2248, %v1758, 0
      %2436 = vmatprep.subr.bf16.mxu0 0
      %2437 = vmatpush1.bf16.msra.mxu0 0
      %2438 = vmatprep.subr.bf16.mxu0 0
      %2439 = vmatpush1.bf16.msra.mxu0 0
      %2440 = vmatprep.subr.bf16.mxu0 0
      %2441 = vmatpush1.bf16.msra.mxu0 0
      %2442 = vmatprep.subr.bf16.mxu0 0
      %2443 = vmatpush1.bf16.msra.mxu0 0
      %2444 = vmatprep.subr.bf16.mxu0 0
      %2445 = vmatpush1.bf16.msra.mxu0 0
      %2446 = vmatprep.subr.bf16.mxu0 0
      %2447 = vmatpush1.bf16.msra.mxu0 0
      %2448 = vmatprep.subr.bf16.mxu0 0
      %2449 = vmatpush1.bf16.msra.mxu0 0
      %2450 = vmatprep.subr.bf16.mxu0 0
      %2451 = vmatpush1.bf16.msra.mxu0 %v2434
      %2452 = vmatprep.subr.bf16.mxu0 0
      %2453 = vmatpush2.bf16.msra.mxu0 0
      %2454 = vmatprep.subr.bf16.mxu0 0
      %2455 = vmatpush2.bf16.msra.mxu0 0
      %2456 = vmatprep.subr.bf16.mxu0 0
      %2457 = vmatpush2.bf16.msra.mxu0 0
      %2458 = vmatprep.subr.bf16.mxu0 0
      %2459 = vmatpush2.bf16.msra.mxu0 0
      %2460 = vmatprep.subr.bf16.mxu0 0
      %2461 = vmatpush2.bf16.msra.mxu0 0
      %2462 = vmatprep.subr.bf16.mxu0 0
      %2463 = vmatpush2.bf16.msra.mxu0 0
      %2464 = vmatprep.subr.bf16.mxu0 0
      %2465 = vmatpush2.bf16.msra.mxu0 0
      %2466 = vmatprep.subr.bf16.mxu0 0
      %2467 = vmatpush2.bf16.msra.mxu0 0
      %2468 = vmatprep.mubr.bf16.mxu0 0
      %2469 = vmatmul.mubr.bf16.gmra.mxu0 %v2431
      %v2470 = vpop.f32.mrf.mxu0
      %v2471 = vadd.f32 0.0, %v2470
      %v2472 = vpop.f32.mrf.mxu0
      %v2473 = vpop.f32.mrf.mxu0
      %v2474 = vpop.f32.mrf.mxu0
      %2475 = vdwg.mxu0
      %v2477 = vsel %vm1780, %v2242, 0
      %v2480 = vsel %vm2248, %v1761, 0
      %2482 = vmatprep.subr.bf16.mxu0 0
      %2483 = vmatpush1.bf16.msra.mxu0 0
      %2484 = vmatprep.subr.bf16.mxu0 0
      %2485 = vmatpush1.bf16.msra.mxu0 0
      %2486 = vmatprep.subr.bf16.mxu0 0
      %2487 = vmatpush1.bf16.msra.mxu0 0
      %2488 = vmatprep.subr.bf16.mxu0 0
      %2489 = vmatpush1.bf16.msra.mxu0 0
      %2490 = vmatprep.subr.bf16.mxu0 0
      %2491 = vmatpush1.bf16.msra.mxu0 0
      %2492 = vmatprep.subr.bf16.mxu0 0
      %2493 = vmatpush1.bf16.msra.mxu0 0
      %2494 = vmatprep.subr.bf16.mxu0 0
      %2495 = vmatpush1.bf16.msra.mxu0 0
      %2496 = vmatprep.subr.bf16.mxu0 0
      %2497 = vmatpush1.bf16.msra.mxu0 %v2480
      %2498 = vmatprep.subr.bf16.mxu0 0
      %2499 = vmatpush2.bf16.msra.mxu0 0
      %2500 = vmatprep.subr.bf16.mxu0 0
      %2501 = vmatpush2.bf16.msra.mxu0 0
      %2502 = vmatprep.subr.bf16.mxu0 0
      %2503 = vmatpush2.bf16.msra.mxu0 0
      %2504 = vmatprep.subr.bf16.mxu0 0
      %2505 = vmatpush2.bf16.msra.mxu0 0
      %2506 = vmatprep.subr.bf16.mxu0 0
      %2507 = vmatpush2.bf16.msra.mxu0 0
      %2508 = vmatprep.subr.bf16.mxu0 0
      %2509 = vmatpush2.bf16.msra.mxu0 0
      %2510 = vmatprep.subr.bf16.mxu0 0
      %2511 = vmatpush2.bf16.msra.mxu0 0
      %2512 = vmatprep.subr.bf16.mxu0 0
      %2513 = vmatpush2.bf16.msra.mxu0 0
      %2514 = vmatprep.mubr.bf16.mxu0 0
      %2515 = vmatmul.mubr.bf16.gmra.mxu0 %v2477
      %v2516 = vpop.f32.mrf.mxu0
      %v2517 = vadd.f32 0.0, %v2516
      %v2518 = vpop.f32.mrf.mxu0
      %v2519 = vpop.f32.mrf.mxu0
      %v2520 = vpop.f32.mrf.mxu0
      %2521 = vdwg.mxu0
      %v2523 = vsel %vm1780, %v2243, 0
      %v2526 = vsel %vm2248, %v1764, 0
      %2528 = vmatprep.subr.bf16.mxu0 0
      %2529 = vmatpush1.bf16.msra.mxu0 0
      %2530 = vmatprep.subr.bf16.mxu0 0
      %2531 = vmatpush1.bf16.msra.mxu0 0
      %2532 = vmatprep.subr.bf16.mxu0 0
      %2533 = vmatpush1.bf16.msra.mxu0 0
      %2534 = vmatprep.subr.bf16.mxu0 0
      %2535 = vmatpush1.bf16.msra.mxu0 0
      %2536 = vmatprep.subr.bf16.mxu0 0
      %2537 = vmatpush1.bf16.msra.mxu0 0
      %2538 = vmatprep.subr.bf16.mxu0 0
      %2539 = vmatpush1.bf16.msra.mxu0 0
      %2540 = vmatprep.subr.bf16.mxu0 0
      %2541 = vmatpush1.bf16.msra.mxu0 0
      %2542 = vmatprep.subr.bf16.mxu0 0
      %2543 = vmatpush1.bf16.msra.mxu0 %v2526
      %2544 = vmatprep.subr.bf16.mxu0 0
      %2545 = vmatpush2.bf16.msra.mxu0 0
      %2546 = vmatprep.subr.bf16.mxu0 0
      %2547 = vmatpush2.bf16.msra.mxu0 0
      %2548 = vmatprep.subr.bf16.mxu0 0
      %2549 = vmatpush2.bf16.msra.mxu0 0
      %2550 = vmatprep.subr.bf16.mxu0 0
      %2551 = vmatpush2.bf16.msra.mxu0 0
      %2552 = vmatprep.subr.bf16.mxu0 0
      %2553 = vmatpush2.bf16.msra.mxu0 0
      %2554 = vmatprep.subr.bf16.mxu0 0
      %2555 = vmatpush2.bf16.msra.mxu0 0
      %2556 = vmatprep.subr.bf16.mxu0 0
      %2557 = vmatpush2.bf16.msra.mxu0 0
      %2558 = vmatprep.subr.bf16.mxu0 0
      %2559 = vmatpush2.bf16.msra.mxu0 0
      %2560 = vmatprep.mubr.bf16.mxu0 0
      %2561 = vmatmul.mubr.bf16.gmra.mxu0 %v2523
      %v2562 = vpop.f32.mrf.mxu0
      %v2563 = vadd.f32 0.0, %v2562
      %v2564 = vpop.f32.mrf.mxu0
      %v2565 = vpop.f32.mrf.mxu0
      %v2566 = vpop.f32.mrf.mxu0
      %2567 = vdwg.mxu0
      %v2569 = vsel %vm1780, %v2244, 0
      %v2572 = vsel %vm2248, %v1767, 0
      %2574 = vmatprep.subr.bf16.mxu0 0
      %2575 = vmatpush1.bf16.msra.mxu0 0
      %2576 = vmatprep.subr.bf16.mxu0 0
      %2577 = vmatpush1.bf16.msra.mxu0 0
      %2578 = vmatprep.subr.bf16.mxu0 0
      %2579 = vmatpush1.bf16.msra.mxu0 0
      %2580 = vmatprep.subr.bf16.mxu0 0
      %2581 = vmatpush1.bf16.msra.mxu0 0
      %2582 = vmatprep.subr.bf16.mxu0 0
      %2583 = vmatpush1.bf16.msra.mxu0 0
      %2584 = vmatprep.subr.bf16.mxu0 0
      %2585 = vmatpush1.bf16.msra.mxu0 0
      %2586 = vmatprep.subr.bf16.mxu0 0
      %2587 = vmatpush1.bf16.msra.mxu0 0
      %2588 = vmatprep.subr.bf16.mxu0 0
      %2589 = vmatpush1.bf16.msra.mxu0 %v2572
      %2590 = vmatprep.subr.bf16.mxu0 0
      %2591 = vmatpush2.bf16.msra.mxu0 0
      %2592 = vmatprep.subr.bf16.mxu0 0
      %2593 = vmatpush2.bf16.msra.mxu0 0
      %2594 = vmatprep.subr.bf16.mxu0 0
      %2595 = vmatpush2.bf16.msra.mxu0 0
      %2596 = vmatprep.subr.bf16.mxu0 0
      %2597 = vmatpush2.bf16.msra.mxu0 0
      %2598 = vmatprep.subr.bf16.mxu0 0
      %2599 = vmatpush2.bf16.msra.mxu0 0
      %2600 = vmatprep.subr.bf16.mxu0 0
      %2601 = vmatpush2.bf16.msra.mxu0 0
      %2602 = vmatprep.subr.bf16.mxu0 0
      %2603 = vmatpush2.bf16.msra.mxu0 0
      %2604 = vmatprep.subr.bf16.mxu0 0
      %2605 = vmatpush2.bf16.msra.mxu0 0
      %2606 = vmatprep.mubr.bf16.mxu0 0
      %2607 = vmatmul.mubr.bf16.gmra.mxu0 %v2569
      %v2608 = vpop.f32.mrf.mxu0
      %v2609 = vadd.f32 0.0, %v2608
      %v2610 = vpop.f32.mrf.mxu0
      %v2611 = vpop.f32.mrf.mxu0
      %v2612 = vpop.f32.mrf.mxu0
      %2613 = vdwg.mxu0
      %v2614 = vpack.c.bf16 %v2287, %v2287
      %v2616 = vunpack.c.l.s4 1983009808
      %v2617 = vunpack.c.0.s8 %v2616
      %v2618 = vlaneseq
      %v2619 = vshrl.u32 %v2618, 7
      %v2620 = vsub.s32 %v2617, %v2619
      %v2621 = vrot.slane %v2614, %v2620
      %v2622 = vpack.c.bf16 %v2379, %v2379
      %v2624 = vunpack.c.l.s4 1983009808
      %v2625 = vunpack.c.0.s8 %v2624
      %v2626 = vlaneseq
      %v2627 = vshrl.u32 %v2626, 7
      %v2628 = vsub.s32 %v2625, %v2627
      %v2629 = vrot.slane %v2622, %v2628
      %v2630 = vcombine.low %v2621, %v2629
      %v2631 = vcombine.high %v2621, %v2629
      %v2633 = vunpack.c.l.s4 1934713408
      %v2634 = vunpack.c.0.s8 %v2633
      %v2635 = vlaneseq
      %v2636 = vshrl.u32 %v2635, 7
      %v2637 = vsub.s32 %v2634, %v2636
      %v2638 = vrot.slane %v2630, %v2637
      %v2640 = vunpack.c.l.s4 1934713408
      %v2641 = vunpack.c.0.s8 %v2640
      %v2642 = vlaneseq
      %v2643 = vshrl.u32 %v2642, 7
      %v2644 = vsub.s32 %v2641, %v2643
      %v2645 = vrot.slane %v2631, %v2644
      %v2646 = vcombine.high %v2638, 0
      %v2647 = vcombine.high %v2645, 0
      %v2648 = vpack.c.bf16 %v2333, %v2333
      %v2650 = vunpack.c.l.s4 1983009808
      %v2651 = vunpack.c.0.s8 %v2650
      %v2652 = vlaneseq
      %v2653 = vshrl.u32 %v2652, 7
      %v2654 = vsub.s32 %v2651, %v2653
      %v2655 = vrot.slane %v2648, %v2654
      %v2656 = vpack.c.bf16 %v2425, %v2425
      %v2658 = vunpack.c.l.s4 1983009808
      %v2659 = vunpack.c.0.s8 %v2658
      %v2660 = vlaneseq
      %v2661 = vshrl.u32 %v2660, 7
      %v2662 = vsub.s32 %v2659, %v2661
      %v2663 = vrot.slane %v2656, %v2662
      %v2664 = vcombine.low %v2655, %v2663
      %v2665 = vcombine.high %v2655, %v2663
      %v2667 = vunpack.c.l.s4 1934713408
      %v2668 = vunpack.c.0.s8 %v2667
      %v2669 = vlaneseq
      %v2670 = vshrl.u32 %v2669, 7
      %v2671 = vsub.s32 %v2668, %v2670
      %v2672 = vrot.slane %v2664, %v2671
      %v2674 = vunpack.c.l.s4 1934713408
      %v2675 = vunpack.c.0.s8 %v2674
      %v2676 = vlaneseq
      %v2677 = vshrl.u32 %v2676, 7
      %v2678 = vsub.s32 %v2675, %v2677
      %v2679 = vrot.slane %v2665, %v2678
      %v2680 = vcombine.high %v2672, 0
      %v2681 = vcombine.high %v2679, 0
      %v2682 = vpack.c.bf16 %v2471, %v2471
      %v2684 = vunpack.c.l.s4 1983009808
      %v2685 = vunpack.c.0.s8 %v2684
      %v2686 = vlaneseq
      %v2687 = vshrl.u32 %v2686, 7
      %v2688 = vsub.s32 %v2685, %v2687
      %v2689 = vrot.slane %v2682, %v2688
      %v2690 = vpack.c.bf16 %v2563, %v2563
      %v2692 = vunpack.c.l.s4 1983009808
      %v2693 = vunpack.c.0.s8 %v2692
      %v2694 = vlaneseq
      %v2695 = vshrl.u32 %v2694, 7
      %v2696 = vsub.s32 %v2693, %v2695
      %v2697 = vrot.slane %v2690, %v2696
      %v2698 = vcombine.low %v2689, %v2697
      %v2699 = vcombine.high %v2689, %v2697
      %v2701 = vunpack.c.l.s4 1934713408
      %v2702 = vunpack.c.0.s8 %v2701
      %v2703 = vlaneseq
      %v2704 = vshrl.u32 %v2703, 7
      %v2705 = vsub.s32 %v2702, %v2704
      %v2706 = vrot.slane %v2698, %v2705
      %v2708 = vunpack.c.l.s4 1934713408
      %v2709 = vunpack.c.0.s8 %v2708
      %v2710 = vlaneseq
      %v2711 = vshrl.u32 %v2710, 7
      %v2712 = vsub.s32 %v2709, %v2711
      %v2713 = vrot.slane %v2699, %v2712
      %v2714 = vcombine.high %v2706, 0
      %v2715 = vcombine.high %v2713, 0
      %v2716 = vpack.c.bf16 %v2517, %v2517
      %v2718 = vunpack.c.l.s4 1983009808
      %v2719 = vunpack.c.0.s8 %v2718
      %v2720 = vlaneseq
      %v2721 = vshrl.u32 %v2720, 7
      %v2722 = vsub.s32 %v2719, %v2721
      %v2723 = vrot.slane %v2716, %v2722
      %v2724 = vpack.c.bf16 %v2609, %v2609
      %v2726 = vunpack.c.l.s4 1983009808
      %v2727 = vunpack.c.0.s8 %v2726
      %v2728 = vlaneseq
      %v2729 = vshrl.u32 %v2728, 7
      %v2730 = vsub.s32 %v2727, %v2729
      %v2731 = vrot.slane %v2724, %v2730
      %v2732 = vcombine.low %v2723, %v2731
      %v2733 = vcombine.high %v2723, %v2731
      %v2735 = vunpack.c.l.s4 1934713408
      %v2736 = vunpack.c.0.s8 %v2735
      %v2737 = vlaneseq
      %v2738 = vshrl.u32 %v2737, 7
      %v2739 = vsub.s32 %v2736, %v2738
      %v2740 = vrot.slane %v2732, %v2739
      %v2742 = vunpack.c.l.s4 1934713408
      %v2743 = vunpack.c.0.s8 %v2742
      %v2744 = vlaneseq
      %v2745 = vshrl.u32 %v2744, 7
      %v2746 = vsub.s32 %v2743, %v2745
      %v2747 = vrot.slane %v2733, %v2746
      %v2748 = vcombine.high %v2740, 0
      %v2749 = vcombine.high %v2747, 0
      %v2752 = vpack.i.b16 %v2672, %v2638
      %v2754 = vshrl.u32 %v2638, 16
      %v2755 = vshrl.u32 %v2672, 16
      %v2756 = vpack.i.b16 %v2755, %v2754
      %v2760 = vpack.i.b16 %v2680, %v2646
      %v2762 = vshrl.u32 %v2646, 16
      %v2763 = vshrl.u32 %v2680, 16
      %v2764 = vpack.i.b16 %v2763, %v2762
      %v2768 = vpack.i.b16 %v2679, %v2645
      %v2770 = vshrl.u32 %v2645, 16
      %v2771 = vshrl.u32 %v2679, 16
      %v2772 = vpack.i.b16 %v2771, %v2770
      %v2776 = vpack.i.b16 %v2681, %v2647
      %v2778 = vshrl.u32 %v2647, 16
      %v2779 = vshrl.u32 %v2681, 16
      %v2780 = vpack.i.b16 %v2779, %v2778
      %v2784 = vpack.i.b16 %v2740, %v2706
      %v2786 = vshrl.u32 %v2706, 16
      %v2787 = vshrl.u32 %v2740, 16
      %v2788 = vpack.i.b16 %v2787, %v2786
      %v2792 = vpack.i.b16 %v2748, %v2714
      %v2794 = vshrl.u32 %v2714, 16
      %v2795 = vshrl.u32 %v2748, 16
      %v2796 = vpack.i.b16 %v2795, %v2794
      %v2800 = vpack.i.b16 %v2747, %v2713
      %v2802 = vshrl.u32 %v2713, 16
      %v2803 = vshrl.u32 %v2747, 16
      %v2804 = vpack.i.b16 %v2803, %v2802
      %v2808 = vpack.i.b16 %v2749, %v2715
      %v2810 = vshrl.u32 %v2715, 16
      %v2811 = vshrl.u32 %v2749, 16
      %v2812 = vpack.i.b16 %v2811, %v2810
      %v2814 = vcombine.low %v2752, %v2768
      %v2816 = vunpack.c.l.s4 1983009808
      %v2817 = vunpack.c.0.s8 %v2816
      %v2818 = vlaneseq
      %v2819 = vshrl.u32 %v2818, 7
      %v2820 = vsub.s32 %v2817, %v2819
      %v2821 = vrot.slane %v2814, %v2820
      %v2822 = vcombine.low %v2760, %v2776
      %v2824 = vunpack.c.l.s4 1983009808
      %v2825 = vunpack.c.0.s8 %v2824
      %v2826 = vlaneseq
      %v2827 = vshrl.u32 %v2826, 7
      %v2828 = vsub.s32 %v2825, %v2827
      %v2829 = vrot.slane %v2822, %v2828
      %v2830 = vcombine.low %v2784, %v2800
      %v2832 = vunpack.c.l.s4 1983009808
      %v2833 = vunpack.c.0.s8 %v2832
      %v2834 = vlaneseq
      %v2835 = vshrl.u32 %v2834, 7
      %v2836 = vsub.s32 %v2833, %v2835
      %v2837 = vrot.slane %v2830, %v2836
      %v2838 = vcombine.low %v2792, %v2808
      %v2840 = vunpack.c.l.s4 1983009808
      %v2841 = vunpack.c.0.s8 %v2840
      %v2842 = vlaneseq
      %v2843 = vshrl.u32 %v2842, 7
      %v2844 = vsub.s32 %v2841, %v2843
      %v2845 = vrot.slane %v2838, %v2844
      %v2846 = vcombine.low %v2821, %v2829
      %v2848 = vunpack.c.l.s4 1934713408
      %v2849 = vunpack.c.0.s8 %v2848
      %v2850 = vlaneseq
      %v2851 = vshrl.u32 %v2850, 7
      %v2852 = vsub.s32 %v2849, %v2851
      %v2853 = vrot.slane %v2846, %v2852
      %v2854 = vcombine.low %v2837, %v2845
      %v2856 = vunpack.c.l.s4 1934713408
      %v2857 = vunpack.c.0.s8 %v2856
      %v2858 = vlaneseq
      %v2859 = vshrl.u32 %v2858, 7
      %v2860 = vsub.s32 %v2857, %v2859
      %v2861 = vrot.slane %v2854, %v2860
      %v2862 = vcombine.low %v2853, %v2861
      %v2863 = vcombine.high %v2853, %v2861
      %v2864 = vcombine.low %v2756, %v2772
      %v2866 = vunpack.c.l.s4 1983009808
      %v2867 = vunpack.c.0.s8 %v2866
      %v2868 = vlaneseq
      %v2869 = vshrl.u32 %v2868, 7
      %v2870 = vsub.s32 %v2867, %v2869
      %v2871 = vrot.slane %v2864, %v2870
      %v2872 = vcombine.low %v2764, %v2780
      %v2874 = vunpack.c.l.s4 1983009808
      %v2875 = vunpack.c.0.s8 %v2874
      %v2876 = vlaneseq
      %v2877 = vshrl.u32 %v2876, 7
      %v2878 = vsub.s32 %v2875, %v2877
      %v2879 = vrot.slane %v2872, %v2878
      %v2880 = vcombine.low %v2788, %v2804
      %v2882 = vunpack.c.l.s4 1983009808
      %v2883 = vunpack.c.0.s8 %v2882
      %v2884 = vlaneseq
      %v2885 = vshrl.u32 %v2884, 7
      %v2886 = vsub.s32 %v2883, %v2885
      %v2887 = vrot.slane %v2880, %v2886
      %v2888 = vcombine.low %v2796, %v2812
      %v2890 = vunpack.c.l.s4 1983009808
      %v2891 = vunpack.c.0.s8 %v2890
      %v2892 = vlaneseq
      %v2893 = vshrl.u32 %v2892, 7
      %v2894 = vsub.s32 %v2891, %v2893
      %v2895 = vrot.slane %v2888, %v2894
      %v2896 = vcombine.low %v2871, %v2879
      %v2898 = vunpack.c.l.s4 1934713408
      %v2899 = vunpack.c.0.s8 %v2898
      %v2900 = vlaneseq
      %v2901 = vshrl.u32 %v2900, 7
      %v2902 = vsub.s32 %v2899, %v2901
      %v2903 = vrot.slane %v2896, %v2902
      %v2904 = vcombine.low %v2887, %v2895
      %v2906 = vunpack.c.l.s4 1934713408
      %v2907 = vunpack.c.0.s8 %v2906
      %v2908 = vlaneseq
      %v2909 = vshrl.u32 %v2908, 7
      %v2910 = vsub.s32 %v2907, %v2909
      %v2911 = vrot.slane %v2904, %v2910
      %v2912 = vcombine.low %v2903, %v2911
      %v2913 = vcombine.high %v2903, %v2911
      %v2916 = vpack.i.b16 %v2912, %v2862
      %v2917 = vshrl.u32 %v2862, 16
      %v2918 = vshrl.u32 %v2912, 16
      %v2919 = vpack.i.b16 %v2918, %v2917
      %v2922 = vpack.i.b16 %v2913, %v2863
      %v2923 = vshrl.u32 %v2863, 16
      %v2924 = vshrl.u32 %v2913, 16
      %v2925 = vpack.i.b16 %v2924, %v2923
      %2926 = vrot.lane.b32.xlu0 %v2919, 8
      %v2927 = vpop.permute.xlu0 %2926
      %2928 = vrot.lane.b32.xlu0 %v2922, 16
      %v2929 = vpop.permute.xlu0 %2928
      %2930 = vrot.lane.b32.xlu0 %v2925, 24
      %v2931 = vpop.permute.xlu0 %2930
      %v2934 = vsel %vm1780, %v2916, %v2927
      %vm2935 = vcmask 130048
      %v2937 = vsel %vm2935, %v2934, %v2929
      %vm2938 = vcmask 195584
      %v2940 = vsel %vm2938, %v2937, %v2931
      %v2941 = vld [vmem:[%s7] sm:$0xf]
      %v2942 = vld [vmem:[%s7 + $0x4] sm:$0xf]
      %v2943 = vld [vmem:[%s7 + $0x8] sm:$0xf]
      %v2944 = vld [vmem:[%s7 + $0xc] sm:$0xf]
      %v2945 = vld [vmem:[%s8] sm:$0x1]
      %v2947 = vlaneseq
      %v2948 = vshrl.u32 %v2947, 7
      %v2949 = vsub.s32 0, %v2948
      %v2950 = vrot.slane %v2945, %v2949
      %v2956 = vunpack.c.l.b16 %v2941
      %v2957 = vunpack.c.l.b16 %v2942
      %v2958 = vunpack.c.l.b16 %v2943
      %v2959 = vunpack.c.l.b16 %v2944
      %v2960 = vpack.c.b16 %v2957, %v2956
      %v2961 = vpack.c.b16 %v2959, %v2958
      %v2964 = vsel %vm800, %v2940, 0
      %2966 = vmatprep.subr.bf16.mxu0 0
      %2967 = vmatpush1.bf16.msra.mxu0 0
      %2968 = vmatprep.subr.bf16.mxu0 0
      %2969 = vmatpush1.bf16.msra.mxu0 0
      %2970 = vmatprep.subr.bf16.mxu0 0
      %2971 = vmatpush1.bf16.msra.mxu0 0
      %2972 = vmatprep.subr.bf16.mxu0 0
      %2973 = vmatpush1.bf16.msra.mxu0 0
      %2974 = vmatprep.subr.bf16.mxu0 0
      %2975 = vmatpush1.bf16.msra.mxu0 0
      %2976 = vmatprep.subr.bf16.mxu0 0
      %2977 = vmatpush1.bf16.msra.mxu0 0
      %2978 = vmatprep.subr.bf16.mxu0 0
      %2979 = vmatpush1.bf16.msra.mxu0 %v2961
      %2980 = vmatprep.subr.bf16.mxu0 0
      %2981 = vmatpush1.bf16.msra.mxu0 %v2960
      %2982 = vmatprep.subr.bf16.mxu0 0
      %2983 = vmatpush2.bf16.msra.mxu0 0
      %2984 = vmatprep.subr.bf16.mxu0 0
      %2985 = vmatpush2.bf16.msra.mxu0 0
      %2986 = vmatprep.subr.bf16.mxu0 0
      %2987 = vmatpush2.bf16.msra.mxu0 0
      %2988 = vmatprep.subr.bf16.mxu0 0
      %2989 = vmatpush2.bf16.msra.mxu0 0
      %2990 = vmatprep.subr.bf16.mxu0 0
      %2991 = vmatpush2.bf16.msra.mxu0 0
      %2992 = vmatprep.subr.bf16.mxu0 0
      %2993 = vmatpush2.bf16.msra.mxu0 0
      %2994 = vmatprep.subr.bf16.mxu0 0
      %2995 = vmatpush2.bf16.msra.mxu0 0
      %2996 = vmatprep.subr.bf16.mxu0 0
      %2997 = vmatpush2.bf16.msra.mxu0 0
      %2998 = vmatprep.mubr.bf16.mxu0 0
      %2999 = vmatmul.mubr.bf16.gmra.mxu0 %v2964
      %v3000 = vpop.f32.mrf.mxu0
      %v3001 = vadd.f32 %v2950, %v3000
      %v3002 = vpop.f32.mrf.mxu0
      %v3003 = vpop.f32.mrf.mxu0
      %v3004 = vadd.f32 %v2950, %v3003
      %v3005 = vpop.f32.mrf.mxu0
      %3006 = vdwg.mxu0
      %v3007 = vld [vmem:[%s9] sm:$0x1]
      %v3009 = vlaneseq
      %v3010 = vshrl.u32 %v3009, 7
      %v3011 = vsub.s32 0, %v3010
      %v3012 = vrot.slane %v3007, %v3011
      %v3014 = vmul.f32 %v3012, %v3001
      %v3015 = vmul.f32 %v3012, %v3004
      %v3016 = vadd.f32 %v792, %v3014
      %v3017 = vadd.f32 %v793, %v3015
      %v3018 = vld [vmem:[%s10] sm:$0x1]
      %v3019 = vld [vmem:[%s11] sm:$0x1]
      %v3020 = vsel %vm800, %v3016, 0.0
      %3021 = vadd.xlane.f32.xlu0 %v3020
      %v3022 = vpop.xlane.xlu0 %3021
      %v3023 = vsel %vm800, %v3017, 0.0
      %3024 = vadd.xlane.f32.xlu0 %v3023
      %v3025 = vpop.xlane.xlu0 %3024
      %v3026 = vmul.f32 %v3022, %v807
      %v3027 = vmul.f32 %v3025, %v807
      %v3028 = vsub.f32 %v3016, %v3026
      %v3029 = vsub.f32 %v3017, %v3027
      %v3030 = vmul.f32 %v3028, %v3028
      %v3031 = vmul.f32 %v3029, %v3029
      %v3032 = vsel %vm800, %v3030, 0.0
      %3033 = vadd.xlane.f32.xlu0 %v3032
      %v3034 = vpop.xlane.xlu0 %3033
      %v3035 = vsel %vm800, %v3031, 0.0
      %3036 = vadd.xlane.f32.xlu0 %v3035
      %v3037 = vpop.xlane.xlu0 %3036
      %v3038 = vmul.f32 %v3034, %v807
      %v3039 = vmul.f32 %v3037, %v807
      %v3040 = vadd.f32 %v3038, 1e-06
      %v3041 = vadd.f32 %v3039, 1e-06
      %v3042 = vrsqrt.pop %v3040
      %v3043 = vrsqrt.pop %v3041
      %v3044 = vmul.f32 %v3028, %v3042
      %v3045 = vmul.f32 %v3029, %v3043
      %v3047 = vlaneseq
      %v3048 = vshrl.u32 %v3047, 7
      %v3049 = vsub.s32 0, %v3048
      %v3050 = vrot.slane %v3018, %v3049
      %v3052 = vmul.f32 %v3044, %v3050
      %v3053 = vmul.f32 %v3045, %v3050
      %v3055 = vlaneseq
      %v3056 = vshrl.u32 %v3055, 7
      %v3057 = vsub.s32 0, %v3056
      %v3058 = vrot.slane %v3019, %v3057
      %v3060 = vadd.f32 %v3052, %v3058
      %v3061 = vadd.f32 %v3053, %v3058
      %v3062 = vpack.c.bf16 %v3061, %v3060
      %v3063 = vld [vmem:[%s12] sm:$0xf]
      %v3064 = vld [vmem:[%s12 + $0x4] sm:$0xf]
      %v3065 = vld [vmem:[%s12 + $0x8] sm:$0xf]
      %v3066 = vld [vmem:[%s12 + $0xc] sm:$0xf]
      %v3067 = vld [vmem:[%s13] sm:$0x1]
      %v3069 = vlaneseq
      %v3070 = vshrl.u32 %v3069, 7
      %v3071 = vsub.s32 0, %v3070
      %v3072 = vrot.slane %v3067, %v3071
      %v3078 = vunpack.c.l.b16 %v3063
      %v3079 = vunpack.c.l.b16 %v3064
      %v3080 = vunpack.c.l.b16 %v3065
      %v3081 = vunpack.c.l.b16 %v3066
      %v3082 = vpack.c.b16 %v3079, %v3078
      %v3083 = vpack.c.b16 %v3081, %v3080
      %v3087 = vsel %vm800, %v3062, 0
      %3089 = vmatprep.subr.bf16.mxu0 0
      %3090 = vmatpush1.bf16.msra.mxu0 0
      %3091 = vmatprep.subr.bf16.mxu0 0
      %3092 = vmatpush1.bf16.msra.mxu0 0
      %3093 = vmatprep.subr.bf16.mxu0 0
      %3094 = vmatpush1.bf16.msra.mxu0 0
      %3095 = vmatprep.subr.bf16.mxu0 0
      %3096 = vmatpush1.bf16.msra.mxu0 0
      %3097 = vmatprep.subr.bf16.mxu0 0
      %3098 = vmatpush1.bf16.msra.mxu0 0
      %3099 = vmatprep.subr.bf16.mxu0 0
      %3100 = vmatpush1.bf16.msra.mxu0 0
      %3101 = vmatprep.subr.bf16.mxu0 0
      %3102 = vmatpush1.bf16.msra.mxu0 %v3083
      %3103 = vmatprep.subr.bf16.mxu0 0
      %3104 = vmatpush1.bf16.msra.mxu0 %v3082
      %3105 = vmatprep.subr.bf16.mxu0 0
      %3106 = vmatpush2.bf16.msra.mxu0 0
      %3107 = vmatprep.subr.bf16.mxu0 0
      %3108 = vmatpush2.bf16.msra.mxu0 0
      %3109 = vmatprep.subr.bf16.mxu0 0
      %3110 = vmatpush2.bf16.msra.mxu0 0
      %3111 = vmatprep.subr.bf16.mxu0 0
      %3112 = vmatpush2.bf16.msra.mxu0 0
      %3113 = vmatprep.subr.bf16.mxu0 0
      %3114 = vmatpush2.bf16.msra.mxu0 0
      %3115 = vmatprep.subr.bf16.mxu0 0
      %3116 = vmatpush2.bf16.msra.mxu0 0
      %3117 = vmatprep.subr.bf16.mxu0 0
      %3118 = vmatpush2.bf16.msra.mxu0 0
      %3119 = vmatprep.subr.bf16.mxu0 0
      %3120 = vmatpush2.bf16.msra.mxu0 0
      %3121 = vmatprep.mubr.bf16.mxu0 0
      %3122 = vmatmul.mubr.bf16.gmra.mxu0 %v3087
      %v3123 = vpop.f32.mrf.mxu0
      %v3124 = vadd.f32 %v3072, %v3123
      %v3125 = vpop.f32.mrf.mxu0
      %v3126 = vpop.f32.mrf.mxu0
      %v3127 = vadd.f32 %v3072, %v3126
      %v3128 = vpop.f32.mrf.mxu0
      %3129 = vdwg.mxu0
      %v3130 = vmul.f32 %v3124, %v3124
      %v3131 = vmul.f32 %v3127, %v3127
      %v3132 = vmul.f32 %v3124, %v3130
      %v3133 = vmul.f32 %v3127, %v3131
      %v3134 = vmul.f32 %v3132, 0.044715
      %v3135 = vmul.f32 %v3133, 0.044715
      %v3136 = vadd.f32 %v3124, %v3134
      %v3137 = vadd.f32 %v3127, %v3135
      %v3138 = vmul.f32 %v3136, 0.7978846
      %v3139 = vmul.f32 %v3137, 0.7978846
      %v3140 = vtanh.pop %v3138
      %v3141 = vtanh.pop %v3139
      %v3142 = vadd.f32 %v3140, 1.0
      %v3143 = vadd.f32 %v3141, 1.0
      %v3144 = vmul.f32 %v3142, 0.5
      %v3145 = vmul.f32 %v3143, 0.5
      %v3146 = vmul.f32 %v3124, %v3144
      %v3147 = vmul.f32 %v3127, %v3145
      %v3148 = vpack.c.bf16 %v3147, %v3146
      %v3149 = vld [vmem:[%s14] sm:$0xf]
      %v3150 = vld [vmem:[%s14 + $0x4] sm:$0xf]
      %v3151 = vld [vmem:[%s14 + $0x8] sm:$0xf]
      %v3152 = vld [vmem:[%s14 + $0xc] sm:$0xf]
      %v3153 = vld [vmem:[%s14 + $0x10] sm:$0xf]
      %v3154 = vld [vmem:[%s14 + $0x14] sm:$0xf]
      %v3155 = vld [vmem:[%s14 + $0x18] sm:$0xf]
      %v3156 = vld [vmem:[%s14 + $0x1c] sm:$0xf]
      %v3157 = vld [vmem:[%s14 + $0x20] sm:$0xf]
      %v3158 = vld [vmem:[%s14 + $0x24] sm:$0xf]
      %v3159 = vld [vmem:[%s14 + $0x28] sm:$0xf]
      %v3160 = vld [vmem:[%s14 + $0x2c] sm:$0xf]
      %v3161 = vld [vmem:[%s14 + $0x30] sm:$0xf]
      %v3162 = vld [vmem:[%s14 + $0x34] sm:$0xf]
      %v3163 = vld [vmem:[%s14 + $0x38] sm:$0xf]
      %v3164 = vld [vmem:[%s14 + $0x3c] sm:$0xf]
      %v3165 = vld [vmem:[%s15] sm:$0x1]
      %v3167 = vlaneseq
      %v3168 = vshrl.u32 %v3167, 7
      %v3169 = vsub.s32 0, %v3168
      %v3170 = vrot.slane %v3165, %v3169
      %v3188 = vunpack.c.l.b16 %v3149
      %v3189 = vunpack.c.l.b16 %v3150
      %v3190 = vunpack.c.l.b16 %v3151
      %v3191 = vunpack.c.l.b16 %v3152
      %v3192 = vunpack.c.l.b16 %v3153
      %v3193 = vunpack.c.l.b16 %v3154
      %v3194 = vunpack.c.l.b16 %v3155
      %v3195 = vunpack.c.l.b16 %v3156
      %v3196 = vunpack.c.l.b16 %v3157
      %v3197 = vunpack.c.l.b16 %v3158
      %v3198 = vunpack.c.l.b16 %v3159
      %v3199 = vunpack.c.l.b16 %v3160
      %v3200 = vunpack.c.l.b16 %v3161
      %v3201 = vunpack.c.l.b16 %v3162
      %v3202 = vunpack.c.l.b16 %v3163
      %v3203 = vunpack.c.l.b16 %v3164
      %v3204 = vpack.c.b16 %v3189, %v3188
      %v3205 = vpack.c.b16 %v3191, %v3190
      %v3206 = vpack.c.b16 %v3193, %v3192
      %v3207 = vpack.c.b16 %v3195, %v3194
      %v3208 = vpack.c.b16 %v3197, %v3196
      %v3209 = vpack.c.b16 %v3199, %v3198
      %v3210 = vpack.c.b16 %v3201, %v3200
      %v3211 = vpack.c.b16 %v3203, %v3202
      %3220 = vmatprep.subr.bf16.mxu0 0
      %3221 = vmatpush1.bf16.msra.mxu0 %v3211
      %3222 = vmatprep.subr.bf16.mxu0 0
      %3223 = vmatpush1.bf16.msra.mxu0 %v3210
      %3224 = vmatprep.subr.bf16.mxu0 0
      %3225 = vmatpush1.bf16.msra.mxu0 %v3209
      %3226 = vmatprep.subr.bf16.mxu0 0
      %3227 = vmatpush1.bf16.msra.mxu0 %v3208
      %3228 = vmatprep.subr.bf16.mxu0 0
      %3229 = vmatpush1.bf16.msra.mxu0 %v3207
      %3230 = vmatprep.subr.bf16.mxu0 0
      %3231 = vmatpush1.bf16.msra.mxu0 %v3206
      %3232 = vmatprep.subr.bf16.mxu0 0
      %3233 = vmatpush1.bf16.msra.mxu0 %v3205
      %3234 = vmatprep.subr.bf16.mxu0 0
      %3235 = vmatpush1.bf16.msra.mxu0 %v3204
      %3236 = vmatprep.subr.bf16.mxu0 0
      %3237 = vmatpush2.bf16.msra.mxu0 0
      %3238 = vmatprep.subr.bf16.mxu0 0
      %3239 = vmatpush2.bf16.msra.mxu0 0
      %3240 = vmatprep.subr.bf16.mxu0 0
      %3241 = vmatpush2.bf16.msra.mxu0 0
      %3242 = vmatprep.subr.bf16.mxu0 0
      %3243 = vmatpush2.bf16.msra.mxu0 0
      %3244 = vmatprep.subr.bf16.mxu0 0
      %3245 = vmatpush2.bf16.msra.mxu0 0
      %3246 = vmatprep.subr.bf16.mxu0 0
      %3247 = vmatpush2.bf16.msra.mxu0 0
      %3248 = vmatprep.subr.bf16.mxu0 0
      %3249 = vmatpush2.bf16.msra.mxu0 0
      %3250 = vmatprep.subr.bf16.mxu0 0
      %3251 = vmatpush2.bf16.msra.mxu0 0
      %3252 = vmatprep.mubr.bf16.mxu0 0
      %3253 = vmatmul.mubr.bf16.gmra.mxu0 %v3148
      %v3254 = vpop.f32.mrf.mxu0
      %v3255 = vadd.f32 %v3170, %v3254
      %v3256 = vpop.f32.mrf.mxu0
      %v3257 = vpop.f32.mrf.mxu0
      %v3258 = vadd.f32 %v3170, %v3257
      %v3259 = vpop.f32.mrf.mxu0
      %3260 = vdwg.mxu0
      %v3261 = vld [vmem:[%s16] sm:$0x1]
      %v3263 = vlaneseq
      %v3264 = vshrl.u32 %v3263, 7
      %v3265 = vsub.s32 0, %v3264
      %v3266 = vrot.slane %v3261, %v3265
      %v3268 = vmul.f32 %v3266, %v3255
      %v3269 = vmul.f32 %v3266, %v3258
      %v3270 = vadd.f32 %v3016, %v3268
      %v3271 = vadd.f32 %v3017, %v3269
      %v3272 = vld [vmem:[%s17] sm:$0x1]
      %v3273 = vld [vmem:[%s18] sm:$0x1]
      %v3276 = vrot.slane %v3271, 7
      %vm3277 = vcmask 1041409
      %v3278 = vsel %vm3277, %v3276, %v3270
      %vm3280 = vcmask 254976
      %v3281 = vsel %vm3280, %v3278, 0.0
      %3282 = vadd.xlane.f32.xlu0 %v3281
      %v3283 = vpop.xlane.xlu0 %3282
      %v3284 = vmul.f32 %v3283, %v807
      %v3286 = vrot.slane %v3284, 1
      %v3289 = vsub.f32 %v3270, %v3284
      %v3290 = vsub.f32 %v3271, %v3286
      %v3291 = vmul.f32 %v3289, %v3289
      %v3292 = vmul.f32 %v3290, %v3290
      %v3295 = vrot.slane %v3292, 7
      %v3296 = vsel %vm3277, %v3295, %v3291
      %v3298 = vsel %vm3280, %v3296, 0.0
      %3299 = vadd.xlane.f32.xlu0 %v3298
      %v3300 = vpop.xlane.xlu0 %3299
      %v3301 = vmul.f32 %v3300, %v807
      %v3302 = vadd.f32 %v3301, 1e-06
      %v3303 = vrsqrt.pop %v3302
      %v3305 = vrot.slane %v3303, 1
      %v3308 = vmul.f32 %v3289, %v3303
      %v3309 = vmul.f32 %v3290, %v3305
      %v3311 = vlaneseq
      %v3312 = vshrl.u32 %v3311, 7
      %v3313 = vsub.s32 0, %v3312
      %v3314 = vrot.slane %v3272, %v3313
      %v3316 = vmul.f32 %v3308, %v3314
      %v3317 = vmul.f32 %v3309, %v3314
      %v3319 = vlaneseq
      %v3320 = vshrl.u32 %v3319, 7
      %v3321 = vsub.s32 0, %v3320
      %v3322 = vrot.slane %v3273, %v3321
      %v3324 = vadd.f32 %v3316, %v3322
      %v3325 = vadd.f32 %v3317, %v3322
      %v3326 = vpack.c.bf16 %v3324, %v3324
      %v3327 = vpack.c.bf16 %v3325, %v3325
      %v3328 = vld [vmem:[%s19] sm:$0xf]
      %v3329 = vld [vmem:[%s19 + $0x4] sm:$0xf]
      %v3330 = vld [vmem:[%s19 + $0x8] sm:$0xf]
      %v3331 = vld [vmem:[%s19 + $0xc] sm:$0xf]
      %v3332 = vld [vmem:[%s20] sm:$0x1]
      %v3334 = vlaneseq
      %v3335 = vshrl.u32 %v3334, 7
      %v3336 = vsub.s32 0, %v3335
      %v3337 = vrot.slane %v3332, %v3336
      %v3341 = vunpack.c.l.b16 %v3326
      %v3342 = vunpack.c.l.b16 %v3327
      %v3343 = vrot.slane %v3342, 7
      %v3344 = vsel %vm3277, %v3343, %v3341
      %v3345 = vpack.c.b16 %v3344, %v3344
      %v3350 = vunpack.c.l.b16 %v3328
      %v3351 = vunpack.c.l.b16 %v3329
      %v3352 = vunpack.c.l.b16 %v3330
      %v3353 = vunpack.c.l.b16 %v3331
      %v3354 = vpack.c.b16 %v3351, %v3350
      %v3355 = vpack.c.b16 %v3353, %v3352
      %v3359 = vsel %vm800, %v3345, 0
      %3361 = vmatprep.subr.bf16.mxu0 0
      %3362 = vmatpush1.bf16.msra.mxu0 0
      %3363 = vmatprep.subr.bf16.mxu0 0
      %3364 = vmatpush1.bf16.msra.mxu0 0
      %3365 = vmatprep.subr.bf16.mxu0 0
      %3366 = vmatpush1.bf16.msra.mxu0 0
      %3367 = vmatprep.subr.bf16.mxu0 0
      %3368 = vmatpush1.bf16.msra.mxu0 0
      %3369 = vmatprep.subr.bf16.mxu0 0
      %3370 = vmatpush1.bf16.msra.mxu0 0
      %3371 = vmatprep.subr.bf16.mxu0 0
      %3372 = vmatpush1.bf16.msra.mxu0 0
      %3373 = vmatprep.subr.bf16.mxu0 0
      %3374 = vmatpush1.bf16.msra.mxu0 %v3355
      %3375 = vmatprep.subr.bf16.mxu0 0
      %3376 = vmatpush1.bf16.msra.mxu0 %v3354
      %3377 = vmatprep.subr.bf16.mxu0 0
      %3378 = vmatpush2.bf16.msra.mxu0 0
      %3379 = vmatprep.subr.bf16.mxu0 0
      %3380 = vmatpush2.bf16.msra.mxu0 0
      %3381 = vmatprep.subr.bf16.mxu0 0
      %3382 = vmatpush2.bf16.msra.mxu0 0
      %3383 = vmatprep.subr.bf16.mxu0 0
      %3384 = vmatpush2.bf16.msra.mxu0 0
      %3385 = vmatprep.subr.bf16.mxu0 0
      %3386 = vmatpush2.bf16.msra.mxu0 0
      %3387 = vmatprep.subr.bf16.mxu0 0
      %3388 = vmatpush2.bf16.msra.mxu0 0
      %3389 = vmatprep.subr.bf16.mxu0 0
      %3390 = vmatpush2.bf16.msra.mxu0 0
      %3391 = vmatprep.subr.bf16.mxu0 0
      %3392 = vmatpush2.bf16.msra.mxu0 0
      %3393 = vmatprep.mubr.bf16.mxu0 0
      %3394 = vmatmul.mubr.bf16.gmra.mxu0 %v3359
      %v3395 = vpop.f32.mrf.mxu0
      %v3396 = vadd.f32 %v3337, %v3395
      %v3397 = vpop.f32.mrf.mxu0
      %v3398 = vpop.f32.mrf.mxu0
      %v3399 = vpop.f32.mrf.mxu0
      %3400 = vdwg.mxu0
      %v3403 = vunpack.c.l.s4 1966171168
      %v3404 = vunpack.c.0.s8 %v3403
      %v3405 = vlaneseq
      %v3406 = vshrl.u32 %v3405, 7
      %v3407 = vsub.s32 %v3404, %v3406
      %v3408 = vrot.slane %v3396, %v3407
      %v3409 = vcombine.high %v3408, %v3408
      %v3411 = vunpack.c.l.s4 1966171168
      %v3412 = vunpack.c.0.s8 %v3411
      %v3413 = vlaneseq
      %v3414 = vshrl.u32 %v3413, 7
      %v3415 = vsub.s32 %v3412, %v3414
      %v3416 = vrot.slane %v3408, %v3415
      %v3418 = vunpack.c.l.s4 1966171168
      %v3419 = vunpack.c.0.s8 %v3418
      %v3420 = vlaneseq
      %v3421 = vshrl.u32 %v3420, 7
      %v3422 = vsub.s32 %v3419, %v3421
      %v3423 = vrot.slane %v3409, %v3422
      %vm3426 = vcmask 253952
      %3427 = vst.msk [vmem:[%s761] sm:$0x1] %vm3426, %v3416
      %3428 = vst.msk [vmem:[%s761 + $0x1] sm:$0x1] %vm3426, %v3423
      %v3429 = vmul.f32 %v3270, %v3270
      %v3430 = vmul.f32 %v3271, %v3271
      %v3433 = vrot.slane %v3430, 7
      %v3434 = vsel %vm3277, %v3433, %v3429
      %v3436 = vsel %vm3280, %v3434, 0.0
      %3437 = vadd.xlane.f32.xlu0 %v3436
      %v3438 = vpop.xlane.xlu0 %3437
      %v3439 = vadd.f32 %v3438, 1e-12
      %v3440 = vrsqrt.pop %v3439
      %v3442 = vrot.slane %v3440, 1
      %v3445 = vmul.f32 %v3270, %v3440
      %v3446 = vmul.f32 %v3271, %v3442
      %3447 = vst.msk [vmem:[%s766] sm:$0x1] %vm3426, %v3445
      %3448 = vst.msk [vmem:[%s766 + $0x1] sm:$0x1] %vm3426, %v3446
      %v3449 = vmul.f32 %v3016, %v3016
      %v3450 = vmul.f32 %v3017, %v3017
      %v3453 = vrot.slane %v3450, 7
      %v3454 = vsel %vm3277, %v3453, %v3449
      %v3456 = vsel %vm3280, %v3454, 0.0
      %3457 = vadd.xlane.f32.xlu0 %v3456
      %v3458 = vpop.xlane.xlu0 %3457
      %v3459 = vadd.f32 %v3458, 1e-12
      %v3460 = vrsqrt.pop %v3459
      %v3462 = vrot.slane %v3460, 1
      %v3465 = vmul.f32 %v3016, %v3460
      %v3466 = vmul.f32 %v3017, %v3462
      %3467 = vst.msk [vmem:[%s771] sm:$0x1] %vm3426, %v3465
      %3468 = vst.msk [vmem:[%s771 + $0x1] sm:$0x1] %vm3426, %v3466
      %s3469 = smul.u32 2, %s35
      %p3470 = scmp.lt.s32.totalorder %s3469, 3
      %s3471 = scalar_select %p3470, %s3469, 3
      %s3472 = scalar_lea.vmem %s21, %s3471
      %s3473 = smul.u32 2, %s35
      %p3474 = scmp.lt.s32.totalorder %s3473, 3
      %s3475 = scalar_select %p3474, %s3473, 3
      %s3476 = scalar_lea.vmem %s22, %s3475
      %s3477 = smul.u32 2, %s35
      %p3478 = scmp.lt.s32.totalorder %s3477, 3
      %s3479 = scalar_select %p3478, %s3477, 3
      %s3480 = scalar_lea.vmem %s23, %s3479
      // Predicated region
      $region105: #{sx3hre_forward.1} parent=103 // pred_check
        %p3481 = pneg %p509
      $region106: #{sx3hre_forward.1} parent=103 // pred_check_branch
        %3483 = sbr.rel (%p3481) target = $region108
      $region107: #{sx3hre_forward.1} parent=103 // pred_region
        %s3484 = smul.u32 2, %s35
      $region108: #{sx3hre_forward.1} parent=103 // pred_fallthru
        _
      // Predicated region
      $region109: #{sx3hre_forward.1} parent=103 // pred_check
        %p3485 = pneg %p535
      $region110: #{sx3hre_forward.1} parent=103 // pred_check_branch
        %3487 = sbr.rel (%p3485) target = $region112
      $region111: #{sx3hre_forward.1} parent=103 // pred_region
        %s3488 = smul.u32 2, %s35
      $region112: #{sx3hre_forward.1} parent=103 // pred_fallthru
        _
      // Predicated region
      $region113: #{sx3hre_forward.1} parent=103 // pred_check
        %p3489 = pneg %p561
      $region114: #{sx3hre_forward.1} parent=103 // pred_check_branch
        %3491 = sbr.rel (%p3489) target = $region116
      $region115: #{sx3hre_forward.1} parent=103 // pred_region
        %s3492 = smul.u32 2, %s35
      $region116: #{sx3hre_forward.1} parent=103 // pred_fallthru
        _
    $region104: #{sx3hre_forward.1} parent=5 // pred_fallthru
      _
    %p3493 = scmp.le.s32.totalorder 2, %s30
    // Predicated region
    $region117: #{sx3hre_forward.1} parent=5 // pred_check
      %p3494 = pneg %p3493
    $region118: #{sx3hre_forward.1} parent=5 // pred_check_branch
      %3496 = sbr.rel (%p3494) target = $region120
    $region119: #{sx3hre_forward.1} parent=5 // pred_region
      %s3497 = ssub.s32 %s30, 2
      // Predicated region
      $region121: #{sx3hre_forward.1} parent=119 // pred_check
        %p3498 = pneg %p515
      $region122: #{sx3hre_forward.1} parent=119 // pred_check_branch
        %3500 = sbr.rel (%p3498) target = $region124
      $region123: #{sx3hre_forward.1} parent=119 // pred_region
        %s3501 = smul.u32 2, %s36
        %p3502 = scmp.lt.s32.totalorder %s3501, 3
        %s3503 = scalar_select %p3502, %s3501, 3
        %s3504 = scalar_lea.vmem %s21, %s3503
      $region124: #{sx3hre_forward.1} parent=119 // pred_fallthru
        _
      // Predicated region
      $region125: #{sx3hre_forward.1} parent=119 // pred_check
        %p3505 = pneg %p541
      $region126: #{sx3hre_forward.1} parent=119 // pred_check_branch
        %3507 = sbr.rel (%p3505) target = $region128
      $region127: #{sx3hre_forward.1} parent=119 // pred_region
        %s3508 = smul.u32 2, %s36
        %p3509 = scmp.lt.s32.totalorder %s3508, 3
        %s3510 = scalar_select %p3509, %s3508, 3
        %s3511 = scalar_lea.vmem %s22, %s3510
      $region128: #{sx3hre_forward.1} parent=119 // pred_fallthru
        _
      // Predicated region
      $region129: #{sx3hre_forward.1} parent=119 // pred_check
        %p3512 = pneg %p567
      $region130: #{sx3hre_forward.1} parent=119 // pred_check_branch
        %3514 = sbr.rel (%p3512) target = $region132
      $region131: #{sx3hre_forward.1} parent=119 // pred_region
        %s3515 = smul.u32 2, %s36
        %p3516 = scmp.lt.s32.totalorder %s3515, 3
        %s3517 = scalar_select %p3516, %s3515, 3
        %s3518 = scalar_lea.vmem %s23, %s3517
      $region132: #{sx3hre_forward.1} parent=119 // pred_fallthru
        _
    $region120: #{sx3hre_forward.1} parent=5 // pred_fallthru
      _
  $region6: #{sx3hre_forward.1} parent=0 // loop_footer
    %s34 = sadd.s32 1, %s30
  $region7: #{sx3hre_forward.1} parent=0 // loop_footer_branch
    %29 = sbr.rel target = $region3
  $region8: #{sx3hre_forward.1} parent=0 // loop_exit
    _

</llo_original>
